<compile_context>
chip_gen: v7x
topology: tpu7x:2x2x1
jax: 0.10.0
libtpu: 0.0.40
codegen_flags: <defaults>
</compile_context>

<pallas_src>
from functools import partial

import jax
import jax.numpy as jnp
from jax.experimental import pallas as pl
from jax.experimental.pallas import tpu as pltpu

# ---- model hyper-parameters (the `args` of ModelPaperBaseline_real) ----
NUM_INPUT_TYPES = 4      # len(args.inputs_type)
WORD_SIZE       = 16     # args.word_size
OUT_CHANNEL0    = 32     # args.out_channel0
OUT_CHANNEL1    = 32     # args.out_channel1 (== out_channel0 for the residual add)
NUM_LAYERS      = 2      # args.numLayers
HIDDEN1         = 32     # args.hidden1
BN_EPS          = 0.01
BATCH           = 2

NOUT_PAD = 128           # fc3 output padded to a full lane register (lane-dense store)


def _round_up(x, m):
    return ((x + m - 1) // m) * m


# --------------------------------------------------------------------------
# Pallas kernel: full forward pass for one batch tile per grid step.
# Activations live as (Bt, W*C) with lane-dense (word, channel) packing.
# --------------------------------------------------------------------------
def _model_kernel(num_res_convs,
                  x_ref, a0_ref, b0_ref, acw_ref, acb_ref,
                  fc1w_ref, fc1b_ref, fc2w_ref, fc2b_ref, fc3w_ref, fc3b_ref,
                  out_ref):
    cdt = a0_ref.dtype                       # matmul compute dtype (bf16 or f32)
    x = x_ref[...]                           # (Bt, W*Cin) f32

    # conv0 (k=1) + folded BN0 + ReLU  ->  one block-diagonal matmul
    h = jnp.dot(x.astype(cdt), a0_ref[...],
                preferred_element_type=jnp.float32) + b0_ref[...]
    h = jnp.maximum(h, 0.0)                  # (Bt, W*C) f32
    shortcut = h

    # residual tower: 2*numLayers convs (k=3, pad=1) with folded BN + ReLU,
    # shortcut added after every second conv. Each conv is ONE banded matmul.
    for l in range(num_res_convs):
        y = jnp.dot(h.astype(cdt), acw_ref[l],
                    preferred_element_type=jnp.float32) + acb_ref[l]
        h = jnp.maximum(y, 0.0)
        if l % 2 == 1:                       # end of a residual block
            h = h + shortcut

    # fc1 + BN5 + relu (fc1 columns already permuted for torch's flatten order)
    z = jnp.dot(h.astype(cdt), fc1w_ref[...],
                preferred_element_type=jnp.float32) + fc1b_ref[...]
    z = jnp.maximum(z, 0.0)
    # fc2 + BN6 + relu
    z = jnp.dot(z.astype(cdt), fc2w_ref[...],
                preferred_element_type=jnp.float32) + fc2b_ref[...]
    z = jnp.maximum(z, 0.0)
    # fc3 (zero-padded to 128 output lanes)
    z = jnp.dot(z.astype(cdt), fc3w_ref[...],
                preferred_element_type=jnp.float32) + fc3b_ref[...]   # (Bt, 128)
    # sigmoid on the EUP (exp + approx reciprocal); only column 0 is meaningful.
    out_ref[...] = pl.reciprocal(1.0 + jnp.exp(-z), approx=True)


# --------------------------------------------------------------------------
# One-time weight preprocessing (hoisted out of the inference path).
# --------------------------------------------------------------------------
def _fold_bn(gamma, beta, mean, var):
    scale = gamma / jnp.sqrt(var + BN_EPS)
    shift = beta - scale * mean
    return scale, shift


def prepare_params(p, compute_dtype=jnp.bfloat16):
    """Fold BN (eval mode), build block-diagonal / block-banded conv matrices,
    permute fc1 columns, pad fc3 to a lane-dense 128-wide output and cast the
    matmul operands to `compute_dtype`. Call ONCE; pass the result to model_pallas."""
    C, Cin, W, H1 = OUT_CHANNEL1, NUM_INPUT_TYPES, WORD_SIZE, HIDDEN1
    L2 = 2 * NUM_LAYERS
    cdt = compute_dtype
    eyeW = jnp.eye(W, dtype=jnp.float32)

    # conv0 (k=1) + BN0  ->  block-diagonal (W*Cin, W*C).
    # a0[w*Cin + c, w*C + o] = w0f[o, c]
    s0, t0 = _fold_bn(*p["bn0"])
    w0f = p["conv0_w"][:, :, 0] * s0[:, None]                       # (C, Cin)
    a0 = jnp.kron(eyeW, w0f.T)                                      # (W*Cin, W*C)
    b0 = jnp.tile(p["conv0_b"] * s0 + t0, W)[None, :]               # (1, W*C)

    # residual convs (k=3, pad=1) + BN_l  ->  block-banded (W*C, W*C).
    # band[w_in*C + c, w_out*C + o] = wkf[o, c, k] with k = w_in - w_out + 1;
    # zero-padding at the word boundaries is encoded by the missing (zero) blocks.
    acw, acb = [], []
    for l in range(L2):
        sl, tl = _fold_bn(*p["bns"][l])
        wkf = p["convs_w"][l] * sl[:, None, None]                   # (o, c, 3)
        band = sum(jnp.kron(jnp.eye(W, k=1 - k, dtype=jnp.float32), wkf[:, :, k].T)
                   for k in range(3))                               # (W*C, W*C)
        acw.append(band)
        acb.append(jnp.tile(p["convs_b"][l] * sl + tl, W)[None, :]) # (1, W*C)
    acw = jnp.stack(acw)                                            # (L2, W*C, W*C)
    acb = jnp.stack(acb)                                            # (L2, 1, W*C)

    # fc1: permute columns from torch's (c*W + w) flatten order to kernel's (w*C + c)
    s5, t5 = _fold_bn(*p["bn5"])
    fc1w = jnp.transpose(p["fc1_w"].reshape(H1, C, W), (2, 1, 0)).reshape(W * C, H1)
    fc1w = fc1w * s5[None, :]
    fc1b = (p["fc1_b"] * s5 + t5)[None, :]

    s6, t6 = _fold_bn(*p["bn6"])
    fc2w = p["fc2_w"].T * s6[None, :]                               # (H1, H1)
    fc2b = (p["fc2_b"] * s6 + t6)[None, :]

    # fc3 zero-padded to 128 output lanes (lane-dense store; wrapper keeps col 0)
    fc3w = jnp.zeros((H1, NOUT_PAD), jnp.float32).at[:, 0].set(p["fc3_w"][0])
    fc3b = jnp.zeros((1, NOUT_PAD), jnp.float32).at[0, 0].set(p["fc3_b"][0])

    return (a0.astype(cdt), b0.astype(jnp.float32),
            acw.astype(cdt), acb.astype(jnp.float32),
            fc1w.astype(cdt), fc1b.astype(jnp.float32),
            fc2w.astype(cdt), fc2b.astype(jnp.float32),
            fc3w.astype(cdt), fc3b.astype(jnp.float32))


# --------------------------------------------------------------------------
# Wrapper: tile the batch over a "parallel" grid axis, launch the kernel.
# --------------------------------------------------------------------------
def _const_index_map(ndim):
    return lambda i: (0,) * ndim


def model_pallas(x_ncw, prepared, *, b_tile=128):
    """x_ncw: (B, Cin, W) float32, PyTorch layout.  prepared: prepare_params(...).
    Returns (B, 1) sigmoid outputs."""
    B = x_ncw.shape[0]
    Cin, W = NUM_INPUT_TYPES, WORD_SIZE

    # batch tile: multiple of 8, minimize padding, then maximize tile size
    bt_max = min(b_tile, _round_up(max(B, 1), 8))
    best = None
    for bt_c in range(8, bt_max + 1, 8):
        pad = _round_up(B, bt_c)
        if best is None or pad < best[0] or (pad == best[0] and bt_c > best[1]):
            best = (pad, bt_c)
    B_pad, bt = best
    grid = (B_pad // bt,)

    # (B, Cin, W) -> (B, W*Cin) with (word, channel) lane packing
    x2 = jnp.transpose(x_ncw, (0, 2, 1)).reshape(B, W * Cin).astype(jnp.float32)
    if B_pad != B:
        x2 = jnp.pad(x2, ((0, B_pad - B), (0, 0)))

    weight_specs = [pl.BlockSpec(w.shape, _const_index_map(w.ndim)) for w in prepared]

    out = pl.pallas_call(
        partial(_model_kernel, 2 * NUM_LAYERS),
        out_shape=jax.ShapeDtypeStruct((B_pad, NOUT_PAD), jnp.float32),
        grid=grid,
        in_specs=[pl.BlockSpec((bt, W * Cin), lambda i: (i, 0))] + weight_specs,
        out_specs=pl.BlockSpec((bt, NOUT_PAD), lambda i: (i, 0)),
        compiler_params=pltpu.CompilerParams(
            dimension_semantics=("parallel",)),       # megacore sharding on v7x
    )(x2, *prepared)
    return out[:B, 0:1]


# --------------------------------------------------------------------------
# Pure-JAX reference in PyTorch (NCW, unfused-BN eval mode) semantics.
# --------------------------------------------------------------------------
def reference_forward(x, p):
    def bn(y, g, b, m, v):
        if y.ndim == 3:
            return g[None, :, None] * (y - m[None, :, None]) / jnp.sqrt(v[None, :, None] + BN_EPS) \
                   + b[None, :, None]
        return g[None, :] * (y - m[None, :]) / jnp.sqrt(v[None, :] + BN_EPS) + b[None, :]

    def conv1(y, w, b):                                  # kernel_size=1
        return jnp.einsum("bcw,oc->bow", y, w[:, :, 0]) + b[None, :, None]

    def conv3(y, w, b):                                  # kernel_size=3, padding=1
        yp = jnp.pad(y, ((0, 0), (0, 0), (1, 1)))
        Wd = y.shape[2]
        out = sum(jnp.einsum("bcw,oc->bow", yp[:, :, k:k + Wd], w[:, :, k]) for k in range(3))
        return out + b[None, :, None]

    h = jax.nn.relu(bn(conv1(x, p["conv0_w"], p["conv0_b"]), *p["bn0"]))
    sc = h
    for i in range(NUM_LAYERS):
        h = jax.nn.relu(bn(conv3(h, p["convs_w"][2 * i], p["convs_b"][2 * i]), *p["bns"][2 * i]))
        h = jax.nn.relu(bn(conv3(h, p["convs_w"][2 * i + 1], p["convs_b"][2 * i + 1]), *p["bns"][2 * i + 1]))
        h = h + sc
    flat = h.reshape(h.shape[0], -1)                    # torch flatten: channel-major
    z = jax.nn.relu(bn(flat @ p["fc1_w"].T + p["fc1_b"], *p["bn5"]))
    z = jax.nn.relu(bn(z @ p["fc2_w"].T + p["fc2_b"], *p["bn6"]))
    return jax.nn.sigmoid(z @ p["fc3_w"].T + p["fc3_b"])


# --------------------------------------------------------------------------
# Deterministic parameter construction (shapes match the nn.Module __init__).
# --------------------------------------------------------------------------
def make_params(key):
    C1, Cin, W, H1 = OUT_CHANNEL1, NUM_INPUT_TYPES, WORD_SIZE, HIDDEN1
    L2 = 2 * NUM_LAYERS
    keys = iter(jax.random.split(key, 64))

    def normal(shape, s=0.1):
        return s * jax.random.normal(next(keys), shape, jnp.float32)

    def bn_params(c):
        return (1.0 + normal((c,), 0.05),        # gamma
                normal((c,), 0.05),              # beta
                normal((c,), 0.05),              # running_mean
                0.5 + jax.random.uniform(next(keys), (c,), jnp.float32))  # running_var

    p = {
        "conv0_w": normal((C1, Cin, 1)), "conv0_b": normal((C1,)),
        "bn0": bn_params(C1),
        "convs_w": [normal((C1, C1, 3)) for _ in range(L2)],
        "convs_b": [normal((C1,)) for _ in range(L2)],
        "bns": [bn_params(C1) for _ in range(L2)],
        "fc1_w": normal((H1, C1 * W)), "fc1_b": normal((H1,)),
        "bn5": bn_params(H1),
        "fc2_w": normal((H1, H1)), "fc2_b": normal((H1,)),
        "bn6": bn_params(H1),
        "fc3_w": normal((1, H1)), "fc3_b": normal((1,)),
    }
    return p


if __name__ == "__main__":
    key = jax.random.PRNGKey(0)
    kx, kp, kx2 = jax.random.split(key, 3)
    params = make_params(kp)

    # input consistent with x.view(-1, len(inputs_type), word_size)
    x = jax.random.normal(kx, (BATCH, NUM_INPUT_TYPES, WORD_SIZE), jnp.float32)
    ref = reference_forward(x, params)

    fwd = jax.jit(model_pallas)

    # ---- strict check: f32 matmul operands (only the approx reciprocal differs) ----
    prep_f32 = prepare_params(params, compute_dtype=jnp.float32)
    out_f32 = jax.block_until_ready(fwd(x, prep_f32))
    assert out_f32.shape == (BATCH, 1)
    assert jnp.allclose(out_f32, ref, rtol=1e-3, atol=3e-3), (out_f32, ref)

    # ---- bf16 matmul operands (MXU-native on v5e/v6e), f32 accumulation ----
    prep_bf16 = prepare_params(params, compute_dtype=jnp.bfloat16)
    out_bf16 = jax.block_until_ready(fwd(x, prep_bf16))
    assert jnp.allclose(out_bf16, ref, atol=5e-2), (out_bf16, ref)

    # ---- larger batch: exercises the batch tiling (no padding at B=96) ----
    xb = jax.random.normal(kx2, (96, NUM_INPUT_TYPES, WORD_SIZE), jnp.float32)
    refb = reference_forward(xb, params)
    outb = jax.block_until_ready(fwd(xb, prep_f32))
    assert outb.shape == (96, 1)
    assert jnp.allclose(outb, refb, rtol=1e-3, atol=3e-3), (outb, refb)

    print("KERNEL_OK")
</pallas_src>

<mosaic_0001>
module attributes {stable_mosaic.version = 11 : i64} {
  func.func @_model_kernel(%arg0: i32, %arg1: memref<8x64xf32, #tpu.memory_space<vmem>>, %arg2: memref<64x512xf32, #tpu.memory_space<vmem>>, %arg3: memref<1x512xf32, #tpu.memory_space<vmem>>, %arg4: memref<4x512x512xf32, #tpu.memory_space<vmem>>, %arg5: memref<4x1x512xf32, #tpu.memory_space<vmem>>, %arg6: memref<512x32xf32, #tpu.memory_space<vmem>>, %arg7: memref<1x32xf32, #tpu.memory_space<vmem>>, %arg8: memref<32x32xf32, #tpu.memory_space<vmem>>, %arg9: memref<1x32xf32, #tpu.memory_space<vmem>>, %arg10: memref<32x128xf32, #tpu.memory_space<vmem>>, %arg11: memref<1x128xf32, #tpu.memory_space<vmem>>, %arg12: memref<8x128xf32, #tpu.memory_space<vmem>>) attributes {dimension_semantics = [#tpu.dimension_semantics<parallel>], iteration_bounds = array<i64: 1>, scalar_prefetch = 0 : i64, scratch_operands = 0 : i64, tpu.core_type = #tpu.core_type<tc>, window_params = [{transform_indices = @transform_0, window_bounds = array<i64: 8, 64>}, {pipeline_mode = #tpu.pipeline_mode<synchronous>, transform_indices = @transform_1, window_bounds = array<i64: 64, 512>}, {pipeline_mode = #tpu.pipeline_mode<synchronous>, transform_indices = @transform_2, window_bounds = array<i64: 1, 512>}, {pipeline_mode = #tpu.pipeline_mode<synchronous>, transform_indices = @transform_3, window_bounds = array<i64: 4, 512, 512>}, {pipeline_mode = #tpu.pipeline_mode<synchronous>, transform_indices = @transform_4, window_bounds = array<i64: 4, 1, 512>}, {pipeline_mode = #tpu.pipeline_mode<synchronous>, transform_indices = @transform_5, window_bounds = array<i64: 512, 32>}, {pipeline_mode = #tpu.pipeline_mode<synchronous>, transform_indices = @transform_6, window_bounds = array<i64: 1, 32>}, {pipeline_mode = #tpu.pipeline_mode<synchronous>, transform_indices = @transform_7, window_bounds = array<i64: 32, 32>}, {pipeline_mode = #tpu.pipeline_mode<synchronous>, transform_indices = @transform_8, window_bounds = array<i64: 1, 32>}, {pipeline_mode = #tpu.pipeline_mode<synchronous>, transform_indices = @transform_9, window_bounds = array<i64: 32, 128>}, {pipeline_mode = #tpu.pipeline_mode<synchronous>, transform_indices = @transform_10, window_bounds = array<i64: 1, 128>}, {transform_indices = @transform_11, window_bounds = array<i64: 8, 128>}]} {
    %c0 = arith.constant 0 : index
    %c0_0 = arith.constant 0 : index
    %0 = vector.load %arg1[%c0, %c0_0] : memref<8x64xf32, #tpu.memory_space<vmem>>, vector<8x64xf32>
    %c0_1 = arith.constant 0 : index
    %c0_2 = arith.constant 0 : index
    %1 = vector.load %arg2[%c0_1, %c0_2] : memref<64x512xf32, #tpu.memory_space<vmem>>, vector<64x512xf32>
    %cst = arith.constant dense<0.000000e+00> : vector<8x512xf32>
    %2 = tpu.matmul %0, %1, %cst {dimension_numbers = #tpu.dot_dimension_numbers<[1], [0], [0], [1], [0, 0, 1, 1], [], []>} : vector<8x64xf32>, vector<64x512xf32>, vector<8x512xf32> -> vector<8x512xf32>
    %c0_3 = arith.constant 0 : index
    %c0_4 = arith.constant 0 : index
    %3 = vector.load %arg3[%c0_3, %c0_4] : memref<1x512xf32, #tpu.memory_space<vmem>>, vector<1x512xf32>
    %4 = vector.broadcast %3 : vector<1x512xf32> to vector<8x512xf32>
    %5 = arith.addf %2, %4 : vector<8x512xf32>
    %cst_5 = arith.constant 0.000000e+00 : f32
    %6 = vector.broadcast %cst_5 : f32 to vector<8x512xf32>
    %7 = arith.maximumf %5, %6 : vector<8x512xf32>
    %c0_6 = arith.constant 0 : index
    %c0_7 = arith.constant 0 : index
    %c0_8 = arith.constant 0 : index
    %8 = vector.load %arg4[%c0_6, %c0_7, %c0_8] : memref<4x512x512xf32, #tpu.memory_space<vmem>>, vector<1x512x512xf32>
    %9 = vector.shape_cast %8 : vector<1x512x512xf32> to vector<512x512xf32>
    %cst_9 = arith.constant dense<0.000000e+00> : vector<8x512xf32>
    %10 = tpu.matmul %7, %9, %cst_9 {dimension_numbers = #tpu.dot_dimension_numbers<[1], [0], [0], [1], [0, 0, 1, 1], [], []>} : vector<8x512xf32>, vector<512x512xf32>, vector<8x512xf32> -> vector<8x512xf32>
    %c0_10 = arith.constant 0 : index
    %c0_11 = arith.constant 0 : index
    %c0_12 = arith.constant 0 : index
    %11 = vector.load %arg5[%c0_10, %c0_11, %c0_12] : memref<4x1x512xf32, #tpu.memory_space<vmem>>, vector<1x1x512xf32>
    %12 = vector.shape_cast %11 : vector<1x1x512xf32> to vector<1x512xf32>
    %13 = vector.broadcast %12 : vector<1x512xf32> to vector<8x512xf32>
    %14 = arith.addf %10, %13 : vector<8x512xf32>
    %cst_13 = arith.constant 0.000000e+00 : f32
    %15 = vector.broadcast %cst_13 : f32 to vector<8x512xf32>
    %16 = arith.maximumf %14, %15 : vector<8x512xf32>
    %c1 = arith.constant 1 : index
    %c0_14 = arith.constant 0 : index
    %c0_15 = arith.constant 0 : index
    %17 = vector.load %arg4[%c1, %c0_14, %c0_15] : memref<4x512x512xf32, #tpu.memory_space<vmem>>, vector<1x512x512xf32>
    %18 = vector.shape_cast %17 : vector<1x512x512xf32> to vector<512x512xf32>
    %cst_16 = arith.constant dense<0.000000e+00> : vector<8x512xf32>
    %19 = tpu.matmul %16, %18, %cst_16 {dimension_numbers = #tpu.dot_dimension_numbers<[1], [0], [0], [1], [0, 0, 1, 1], [], []>} : vector<8x512xf32>, vector<512x512xf32>, vector<8x512xf32> -> vector<8x512xf32>
    %c1_17 = arith.constant 1 : index
    %c0_18 = arith.constant 0 : index
    %c0_19 = arith.constant 0 : index
    %20 = vector.load %arg5[%c1_17, %c0_18, %c0_19] : memref<4x1x512xf32, #tpu.memory_space<vmem>>, vector<1x1x512xf32>
    %21 = vector.shape_cast %20 : vector<1x1x512xf32> to vector<1x512xf32>
    %22 = vector.broadcast %21 : vector<1x512xf32> to vector<8x512xf32>
    %23 = arith.addf %19, %22 : vector<8x512xf32>
    %cst_20 = arith.constant 0.000000e+00 : f32
    %24 = vector.broadcast %cst_20 : f32 to vector<8x512xf32>
    %25 = arith.maximumf %23, %24 : vector<8x512xf32>
    %26 = arith.addf %25, %7 : vector<8x512xf32>
    %c2 = arith.constant 2 : index
    %c0_21 = arith.constant 0 : index
    %c0_22 = arith.constant 0 : index
    %27 = vector.load %arg4[%c2, %c0_21, %c0_22] : memref<4x512x512xf32, #tpu.memory_space<vmem>>, vector<1x512x512xf32>
    %28 = vector.shape_cast %27 : vector<1x512x512xf32> to vector<512x512xf32>
    %cst_23 = arith.constant dense<0.000000e+00> : vector<8x512xf32>
    %29 = tpu.matmul %26, %28, %cst_23 {dimension_numbers = #tpu.dot_dimension_numbers<[1], [0], [0], [1], [0, 0, 1, 1], [], []>} : vector<8x512xf32>, vector<512x512xf32>, vector<8x512xf32> -> vector<8x512xf32>
    %c2_24 = arith.constant 2 : index
    %c0_25 = arith.constant 0 : index
    %c0_26 = arith.constant 0 : index
    %30 = vector.load %arg5[%c2_24, %c0_25, %c0_26] : memref<4x1x512xf32, #tpu.memory_space<vmem>>, vector<1x1x512xf32>
    %31 = vector.shape_cast %30 : vector<1x1x512xf32> to vector<1x512xf32>
    %32 = vector.broadcast %31 : vector<1x512xf32> to vector<8x512xf32>
    %33 = arith.addf %29, %32 : vector<8x512xf32>
    %cst_27 = arith.constant 0.000000e+00 : f32
    %34 = vector.broadcast %cst_27 : f32 to vector<8x512xf32>
    %35 = arith.maximumf %33, %34 : vector<8x512xf32>
    %c3 = arith.constant 3 : index
    %c0_28 = arith.constant 0 : index
    %c0_29 = arith.constant 0 : index
    %36 = vector.load %arg4[%c3, %c0_28, %c0_29] : memref<4x512x512xf32, #tpu.memory_space<vmem>>, vector<1x512x512xf32>
    %37 = vector.shape_cast %36 : vector<1x512x512xf32> to vector<512x512xf32>
    %cst_30 = arith.constant dense<0.000000e+00> : vector<8x512xf32>
    %38 = tpu.matmul %35, %37, %cst_30 {dimension_numbers = #tpu.dot_dimension_numbers<[1], [0], [0], [1], [0, 0, 1, 1], [], []>} : vector<8x512xf32>, vector<512x512xf32>, vector<8x512xf32> -> vector<8x512xf32>
    %c3_31 = arith.constant 3 : index
    %c0_32 = arith.constant 0 : index
    %c0_33 = arith.constant 0 : index
    %39 = vector.load %arg5[%c3_31, %c0_32, %c0_33] : memref<4x1x512xf32, #tpu.memory_space<vmem>>, vector<1x1x512xf32>
    %40 = vector.shape_cast %39 : vector<1x1x512xf32> to vector<1x512xf32>
    %41 = vector.broadcast %40 : vector<1x512xf32> to vector<8x512xf32>
    %42 = arith.addf %38, %41 : vector<8x512xf32>
    %cst_34 = arith.constant 0.000000e+00 : f32
    %43 = vector.broadcast %cst_34 : f32 to vector<8x512xf32>
    %44 = arith.maximumf %42, %43 : vector<8x512xf32>
    %45 = arith.addf %44, %7 : vector<8x512xf32>
    %c0_35 = arith.constant 0 : index
    %c0_36 = arith.constant 0 : index
    %46 = vector.load %arg6[%c0_35, %c0_36] : memref<512x32xf32, #tpu.memory_space<vmem>>, vector<512x32xf32>
    %cst_37 = arith.constant dense<0.000000e+00> : vector<8x32xf32>
    %47 = tpu.matmul %45, %46, %cst_37 {dimension_numbers = #tpu.dot_dimension_numbers<[1], [0], [0], [1], [0, 0, 1, 1], [], []>} : vector<8x512xf32>, vector<512x32xf32>, vector<8x32xf32> -> vector<8x32xf32>
    %c0_38 = arith.constant 0 : index
    %c0_39 = arith.constant 0 : index
    %48 = vector.load %arg7[%c0_38, %c0_39] : memref<1x32xf32, #tpu.memory_space<vmem>>, vector<1x32xf32>
    %49 = vector.broadcast %48 : vector<1x32xf32> to vector<8x32xf32>
    %50 = arith.addf %47, %49 : vector<8x32xf32>
    %cst_40 = arith.constant 0.000000e+00 : f32
    %51 = vector.broadcast %cst_40 : f32 to vector<8x32xf32>
    %52 = arith.maximumf %50, %51 : vector<8x32xf32>
    %c0_41 = arith.constant 0 : index
    %c0_42 = arith.constant 0 : index
    %53 = vector.load %arg8[%c0_41, %c0_42] : memref<32x32xf32, #tpu.memory_space<vmem>>, vector<32x32xf32>
    %cst_43 = arith.constant dense<0.000000e+00> : vector<8x32xf32>
    %54 = tpu.matmul %52, %53, %cst_43 {dimension_numbers = #tpu.dot_dimension_numbers<[1], [0], [0], [1], [0, 0, 1, 1], [], []>} : vector<8x32xf32>, vector<32x32xf32>, vector<8x32xf32> -> vector<8x32xf32>
    %c0_44 = arith.constant 0 : index
    %c0_45 = arith.constant 0 : index
    %55 = vector.load %arg9[%c0_44, %c0_45] : memref<1x32xf32, #tpu.memory_space<vmem>>, vector<1x32xf32>
    %56 = vector.broadcast %55 : vector<1x32xf32> to vector<8x32xf32>
    %57 = arith.addf %54, %56 : vector<8x32xf32>
    %cst_46 = arith.constant 0.000000e+00 : f32
    %58 = vector.broadcast %cst_46 : f32 to vector<8x32xf32>
    %59 = arith.maximumf %57, %58 : vector<8x32xf32>
    %c0_47 = arith.constant 0 : index
    %c0_48 = arith.constant 0 : index
    %60 = vector.load %arg10[%c0_47, %c0_48] : memref<32x128xf32, #tpu.memory_space<vmem>>, vector<32x128xf32>
    %cst_49 = arith.constant dense<0.000000e+00> : vector<8x128xf32>
    %61 = tpu.matmul %59, %60, %cst_49 {dimension_numbers = #tpu.dot_dimension_numbers<[1], [0], [0], [1], [0, 0, 1, 1], [], []>} : vector<8x32xf32>, vector<32x128xf32>, vector<8x128xf32> -> vector<8x128xf32>
    %c0_50 = arith.constant 0 : index
    %c0_51 = arith.constant 0 : index
    %62 = vector.load %arg11[%c0_50, %c0_51] : memref<1x128xf32, #tpu.memory_space<vmem>>, vector<1x128xf32>
    %63 = vector.broadcast %62 : vector<1x128xf32> to vector<8x128xf32>
    %64 = arith.addf %61, %63 : vector<8x128xf32>
    %cst_52 = arith.constant 0.000000e+00 : f32
    %65 = vector.broadcast %cst_52 : f32 to vector<8x128xf32>
    %66 = arith.subf %65, %64 : vector<8x128xf32>
    %67 = math.exp %66 : vector<8x128xf32>
    %cst_53 = arith.constant 1.000000e+00 : f32
    %68 = vector.broadcast %cst_53 : f32 to vector<8x128xf32>
    %69 = arith.addf %68, %67 : vector<8x128xf32>
    %70 = tpu.reciprocal %69 {approx = true} : vector<8x128xf32> -> vector<8x128xf32>
    %c0_54 = arith.constant 0 : index
    %c0_55 = arith.constant 0 : index
    %71 = vector.load %arg12[%c0_54, %c0_55] : memref<8x128xf32, #tpu.memory_space<vmem>>, vector<8x128xf32>
    tpu.vector_store %arg12[%c0_54, %c0_55], %70 {strides = array<i32>} : memref<8x128xf32, #tpu.memory_space<vmem>>, vector<8x128xf32>,
    return
  }
  func.func @transform_0(%arg0: i32) -> (i32, i32) {
    %c0_i32 = arith.constant 0 : i32
    %c0_i32_0 = arith.constant 0 : i32
    return %arg0, %c0_i32 : i32, i32
  }
  func.func @transform_1(%arg0: i32) -> (i32, i32) {
    %c0_i32 = arith.constant 0 : i32
    %c0_i32_0 = arith.constant 0 : i32
    %c0_i32_1 = arith.constant 0 : i32
    return %c0_i32, %c0_i32_0 : i32, i32
  }
  func.func @transform_2(%arg0: i32) -> (i32, i32) {
    %c0_i32 = arith.constant 0 : i32
    %c0_i32_0 = arith.constant 0 : i32
    %c0_i32_1 = arith.constant 0 : i32
    return %c0_i32, %c0_i32_0 : i32, i32
  }
  func.func @transform_3(%arg0: i32) -> (i32, i32, i32) {
    %c0_i32 = arith.constant 0 : i32
    %c0_i32_0 = arith.constant 0 : i32
    %c0_i32_1 = arith.constant 0 : i32
    %c0_i32_2 = arith.constant 0 : i32
    return %c0_i32, %c0_i32_0, %c0_i32_1 : i32, i32, i32
  }
  func.func @transform_4(%arg0: i32) -> (i32, i32, i32) {
    %c0_i32 = arith.constant 0 : i32
    %c0_i32_0 = arith.constant 0 : i32
    %c0_i32_1 = arith.constant 0 : i32
    %c0_i32_2 = arith.constant 0 : i32
    return %c0_i32, %c0_i32_0, %c0_i32_1 : i32, i32, i32
  }
  func.func @transform_5(%arg0: i32) -> (i32, i32) {
    %c0_i32 = arith.constant 0 : i32
    %c0_i32_0 = arith.constant 0 : i32
    %c0_i32_1 = arith.constant 0 : i32
    return %c0_i32, %c0_i32_0 : i32, i32
  }
  func.func @transform_6(%arg0: i32) -> (i32, i32) {
    %c0_i32 = arith.constant 0 : i32
    %c0_i32_0 = arith.constant 0 : i32
    %c0_i32_1 = arith.constant 0 : i32
    return %c0_i32, %c0_i32_0 : i32, i32
  }
  func.func @transform_7(%arg0: i32) -> (i32, i32) {
    %c0_i32 = arith.constant 0 : i32
    %c0_i32_0 = arith.constant 0 : i32
    %c0_i32_1 = arith.constant 0 : i32
    return %c0_i32, %c0_i32_0 : i32, i32
  }
  func.func @transform_8(%arg0: i32) -> (i32, i32) {
    %c0_i32 = arith.constant 0 : i32
    %c0_i32_0 = arith.constant 0 : i32
    %c0_i32_1 = arith.constant 0 : i32
    return %c0_i32, %c0_i32_0 : i32, i32
  }
  func.func @transform_9(%arg0: i32) -> (i32, i32) {
    %c0_i32 = arith.constant 0 : i32
    %c0_i32_0 = arith.constant 0 : i32
    %c0_i32_1 = arith.constant 0 : i32
    return %c0_i32, %c0_i32_0 : i32, i32
  }
  func.func @transform_10(%arg0: i32) -> (i32, i32) {
    %c0_i32 = arith.constant 0 : i32
    %c0_i32_0 = arith.constant 0 : i32
    %c0_i32_1 = arith.constant 0 : i32
    return %c0_i32, %c0_i32_0 : i32, i32
  }
  func.func @transform_11(%arg0: i32) -> (i32, i32) {
    %c0_i32 = arith.constant 0 : i32
    %c0_i32_0 = arith.constant 0 : i32
    return %arg0, %c0_i32 : i32, i32
  }
}

</mosaic_0001>

<llo_original>
// kernel: model_pallas.1
$region0: #{model_pallas.1}
  #allocation0 [shape = 'u32[]', space=smem, size = 0x4, offset = 0x4, fixed_abs, tag = 'smem constant byte address 0x4 - core index']
  #allocation1 [shape = 'u32[144,128]{1,0:T(1,128)}', space=vmem, size = 0x12000, scoped, tag = 'internal scratch']
  %s0 = inlined_call_operand.vmem [shape: f32[8,64], index: 0, kind: input, shape index: {}]
  %s1 = inlined_call_operand.hbm [shape: f32[64,512], index: 1, kind: input, shape index: {}]
  %s2 = inlined_call_operand.hbm [shape: f32[1,512], index: 2, kind: input, shape index: {}]
  %s3 = inlined_call_operand.hbm [shape: f32[4,512,512], index: 3, kind: input, shape index: {}]
  %s4 = inlined_call_operand.hbm [shape: f32[4,1,512], index: 4, kind: input, shape index: {}]
  %s5 = inlined_call_operand.vmem [shape: f32[512,32], index: 5, kind: input, shape index: {}]
  %s6 = inlined_call_operand.hbm [shape: f32[1,32], index: 6, kind: input, shape index: {}]
  %s7 = inlined_call_operand.hbm [shape: f32[32,32], index: 7, kind: input, shape index: {}]
  %s8 = inlined_call_operand.hbm [shape: f32[1,32], index: 8, kind: input, shape index: {}]
  %s9 = inlined_call_operand.hbm [shape: f32[32,128], index: 9, kind: input, shape index: {}]
  %s10 = inlined_call_operand.hbm [shape: f32[1,128], index: 10, kind: input, shape index: {}]
  %s11 = inlined_call_operand.vmem [shape: f32[8,128], index: 11, kind: output, shape index: {}]
  %s12 = sld [smem:[#allocation0]]
  $region90: #{model_pallas.1} parent=0
    _
  %s14 = ssub.s32 1, %s12
  %s15 = scalar_select 0, %s14, %s12
  $region1: #{model_pallas.1} parent=0
    #allocation2 [shape = 'u8[131072]{0}', space=vmem, size = 0x20000, scoped, tag = 'input window, operand 1, single buffered']
    #allocation3 [shape = 's32[1]{0}', space=sflag, size = 0x4, scoped, tag = 'scoped memory for model_pallas.1']
    #allocation4 [shape = 'u8[2048]{0}', space=vmem, size = 0x800, scoped, tag = 'input window, operand 2, single buffered']
    #allocation5 [shape = 's32[1]{0}', space=sflag, size = 0x4, scoped, tag = 'scoped memory for model_pallas.1']
    #allocation6 [shape = 'u8[4194304]{0}', space=vmem, size = 0x400000, scoped, tag = 'input window, operand 3, single buffered']
    #allocation7 [shape = 'u8[8192]{0}', space=vmem, size = 0x2000, scoped, tag = 'input window, operand 4, single buffered']
    #allocation8 [shape = 's32[1]{0}', space=sflag, size = 0x4, scoped, tag = 'scoped memory for model_pallas.1']
    #allocation9 [shape = 'u8[512]{0}', space=vmem, size = 0x400, scoped, tag = 'input window, operand 6, single buffered']
    #allocation10 [shape = 'u8[16384]{0}', space=vmem, size = 0x4000, scoped, tag = 'input window, operand 7, single buffered']
    #allocation11 [shape = 's32[1]{0}', space=sflag, size = 0x4, scoped, tag = 'scoped memory for model_pallas.1']
    #allocation12 [shape = 'u8[512]{0}', space=vmem, size = 0x400, scoped, tag = 'input window, operand 8, single buffered']
    #allocation13 [shape = 'u8[16384]{0}', space=vmem, size = 0x4000, scoped, tag = 'input window, operand 9, single buffered']
    #allocation14 [shape = 's32[1]{0}', space=sflag, size = 0x4, scoped, tag = 'scoped memory for model_pallas.1']
    #allocation15 [shape = 'u8[512]{0}', space=vmem, size = 0x400, scoped, tag = 'input window, operand 10, single buffered']
    %16 = vsyncpa [#allocation3], 0
    %17 = vsyncpa [#allocation5], 0
    %18 = vsyncpa [#allocation8], 0
    %19 = vsyncpa [#allocation11], 0
    %20 = vsyncpa [#allocation14], 0
    // Predicated region
    $region2: #{model_pallas.1} parent=1 // pred_check
      _
    $region3: #{model_pallas.1} parent=1 // pred_check_branch
      %22 = sbr.rel (0) target = $region5
    $region4: #{model_pallas.1} parent=1 // pred_region
      _
    $region5: #{model_pallas.1} parent=1 // pred_fallthru
      _
    // Predicated region
    $region6: #{model_pallas.1} parent=1 // pred_check
      _
    $region7: #{model_pallas.1} parent=1 // pred_check_branch
      %24 = sbr.rel (0) target = $region9
    $region8: #{model_pallas.1} parent=1 // pred_region
      %s26 = ssub.s32 4096, 4096
      %27 = vsyncadd [#allocation3], %s26
      %s28 = sshll.u32 [#allocation2], 4
      %s29 = int_to_ptr.vmem [resolvable:$true] %s28
      %34 = dma.hbm_to_vmem [thread:$0]  %s1, 4096, %s29, [#allocation3], 512, 512, 32
    $region9: #{model_pallas.1} parent=1 // pred_fallthru
      _
    // Predicated region
    $region10: #{model_pallas.1} parent=1 // pred_check
      _
    $region11: #{model_pallas.1} parent=1 // pred_check_branch
      %36 = sbr.rel (0) target = $region13
    $region12: #{model_pallas.1} parent=1 // pred_region
      %s38 = ssub.s32 64, 64
      %39 = vsyncadd [#allocation5], %s38
      %s41 = sshll.u32 [#allocation4], 4
      %s42 = int_to_ptr.vmem [resolvable:$true] %s41
      %44 = dma.hbm_to_vmem [thread:$0]  %s2, 64, %s42, [#allocation5]
    $region13: #{model_pallas.1} parent=1 // pred_fallthru
      _
    // Predicated region
    $region14: #{model_pallas.1} parent=1 // pred_check
      _
    $region15: #{model_pallas.1} parent=1 // pred_check_branch
      %46 = sbr.rel (0) target = $region17
    $region16: #{model_pallas.1} parent=1 // pred_region
      %s48 = ssub.s32 131072, 131072
      %49 = vsyncadd [#allocation5], %s48
      %s50 = sshll.u32 [#allocation6], 4
      %s51 = int_to_ptr.vmem [resolvable:$true] %s50
      %56 = dma.hbm_to_vmem [thread:$0]  %s3, 131072, %s51, [#allocation5], 512, 512, 32
    $region17: #{model_pallas.1} parent=1 // pred_fallthru
      _
    // Predicated region
    $region18: #{model_pallas.1} parent=1 // pred_check
      _
    $region19: #{model_pallas.1} parent=1 // pred_check_branch
      %58 = sbr.rel (0) target = $region21
    $region20: #{model_pallas.1} parent=1 // pred_region
      %s60 = ssub.s32 256, 256
      %61 = vsyncadd [#allocation8], %s60
      %s62 = sshll.u32 [#allocation7], 4
      %s63 = int_to_ptr.vmem [resolvable:$true] %s62
      %68 = dma.hbm_to_vmem [thread:$0]  %s4, 256, %s63, [#allocation8], 64, 64, 4
    $region21: #{model_pallas.1} parent=1 // pred_fallthru
      _
    // Predicated region
    $region22: #{model_pallas.1} parent=1 // pred_check
      _
    $region23: #{model_pallas.1} parent=1 // pred_check_branch
      %70 = sbr.rel (0) target = $region25
    $region24: #{model_pallas.1} parent=1 // pred_region
      _
    $region25: #{model_pallas.1} parent=1 // pred_fallthru
      _
    // Predicated region
    $region26: #{model_pallas.1} parent=1 // pred_check
      _
    $region27: #{model_pallas.1} parent=1 // pred_check_branch
      %72 = sbr.rel (0) target = $region29
    $region28: #{model_pallas.1} parent=1 // pred_region
      %s74 = ssub.s32 16, 16
      %75 = vsyncadd [#allocation8], %s74
      %s77 = sshll.u32 [#allocation9], 4
      %s78 = int_to_ptr.vmem [resolvable:$true] %s77
      %80 = dma.hbm_to_vmem [thread:$0]  %s6, 16, %s78, [#allocation8]
    $region29: #{model_pallas.1} parent=1 // pred_fallthru
      _
    // Predicated region
    $region30: #{model_pallas.1} parent=1 // pred_check
      _
    $region31: #{model_pallas.1} parent=1 // pred_check_branch
      %82 = sbr.rel (0) target = $region33
    $region32: #{model_pallas.1} parent=1 // pred_region
      %s84 = ssub.s32 512, 512
      %85 = vsyncadd [#allocation11], %s84
      %s86 = sshll.u32 [#allocation10], 4
      %s87 = int_to_ptr.vmem [resolvable:$true] %s86
      %92 = dma.hbm_to_vmem [thread:$0]  %s7, 512, %s87, [#allocation11], 128, 128, 8
    $region33: #{model_pallas.1} parent=1 // pred_fallthru
      _
    // Predicated region
    $region34: #{model_pallas.1} parent=1 // pred_check
      _
    $region35: #{model_pallas.1} parent=1 // pred_check_branch
      %94 = sbr.rel (0) target = $region37
    $region36: #{model_pallas.1} parent=1 // pred_region
      %s96 = ssub.s32 16, 16
      %97 = vsyncadd [#allocation11], %s96
      %s99 = sshll.u32 [#allocation12], 4
      %s100 = int_to_ptr.vmem [resolvable:$true] %s99
      %102 = dma.hbm_to_vmem [thread:$0]  %s8, 16, %s100, [#allocation11]
    $region37: #{model_pallas.1} parent=1 // pred_fallthru
      _
    // Predicated region
    $region38: #{model_pallas.1} parent=1 // pred_check
      _
    $region39: #{model_pallas.1} parent=1 // pred_check_branch
      %104 = sbr.rel (0) target = $region41
    $region40: #{model_pallas.1} parent=1 // pred_region
      %s106 = ssub.s32 512, 512
      %107 = vsyncadd [#allocation14], %s106
      %s108 = sshll.u32 [#allocation13], 4
      %s109 = int_to_ptr.vmem [resolvable:$true] %s108
      %114 = dma.hbm_to_vmem [thread:$0]  %s9, 512, %s109, [#allocation14], 128, 128, 8
    $region41: #{model_pallas.1} parent=1 // pred_fallthru
      _
    // Predicated region
    $region42: #{model_pallas.1} parent=1 // pred_check
      _
    $region43: #{model_pallas.1} parent=1 // pred_check_branch
      %116 = sbr.rel (0) target = $region45
    $region44: #{model_pallas.1} parent=1 // pred_region
      %s118 = ssub.s32 16, 16
      %119 = vsyncadd [#allocation14], %s118
      %s121 = sshll.u32 [#allocation15], 4
      %s122 = int_to_ptr.vmem [resolvable:$true] %s121
      %124 = dma.hbm_to_vmem [thread:$0]  %s10, 16, %s122, [#allocation14]
    $region45: #{model_pallas.1} parent=1 // pred_fallthru
      _
    // Predicated region
    $region46: #{model_pallas.1} parent=1 // pred_check
      _
    $region47: #{model_pallas.1} parent=1 // pred_check_branch
      %126 = sbr.rel (0) target = $region49
    $region48: #{model_pallas.1} parent=1 // pred_region
      %127 = dma.done [#allocation3], 4096
    $region49: #{model_pallas.1} parent=1 // pred_fallthru
      _
    // Predicated region
    $region50: #{model_pallas.1} parent=1 // pred_check
      _
    $region51: #{model_pallas.1} parent=1 // pred_check_branch
      %129 = sbr.rel (0) target = $region53
    $region52: #{model_pallas.1} parent=1 // pred_region
      %130 = dma.done [#allocation5], 64
    $region53: #{model_pallas.1} parent=1 // pred_fallthru
      _
    // Predicated region
    $region54: #{model_pallas.1} parent=1 // pred_check
      _
    $region55: #{model_pallas.1} parent=1 // pred_check_branch
      %132 = sbr.rel (0) target = $region57
    $region56: #{model_pallas.1} parent=1 // pred_region
      %133 = dma.done [#allocation5], 131072
    $region57: #{model_pallas.1} parent=1 // pred_fallthru
      _
    // Predicated region
    $region58: #{model_pallas.1} parent=1 // pred_check
      _
    $region59: #{model_pallas.1} parent=1 // pred_check_branch
      %135 = sbr.rel (0) target = $region61
    $region60: #{model_pallas.1} parent=1 // pred_region
      %136 = dma.done [#allocation8], 256
    $region61: #{model_pallas.1} parent=1 // pred_fallthru
      _
    // Predicated region
    $region62: #{model_pallas.1} parent=1 // pred_check
      _
    $region63: #{model_pallas.1} parent=1 // pred_check_branch
      %138 = sbr.rel (0) target = $region65
    $region64: #{model_pallas.1} parent=1 // pred_region
      %139 = dma.done [#allocation8], 16
    $region65: #{model_pallas.1} parent=1 // pred_fallthru
      _
    // Predicated region
    $region66: #{model_pallas.1} parent=1 // pred_check
      _
    $region67: #{model_pallas.1} parent=1 // pred_check_branch
      %141 = sbr.rel (0) target = $region69
    $region68: #{model_pallas.1} parent=1 // pred_region
      %142 = dma.done [#allocation11], 512
    $region69: #{model_pallas.1} parent=1 // pred_fallthru
      _
    // Predicated region
    $region70: #{model_pallas.1} parent=1 // pred_check
      _
    $region71: #{model_pallas.1} parent=1 // pred_check_branch
      %144 = sbr.rel (0) target = $region73
    $region72: #{model_pallas.1} parent=1 // pred_region
      %145 = dma.done [#allocation11], 16
    $region73: #{model_pallas.1} parent=1 // pred_fallthru
      _
    // Predicated region
    $region74: #{model_pallas.1} parent=1 // pred_check
      _
    $region75: #{model_pallas.1} parent=1 // pred_check_branch
      %147 = sbr.rel (0) target = $region77
    $region76: #{model_pallas.1} parent=1 // pred_region
      %148 = dma.done [#allocation14], 512
    $region77: #{model_pallas.1} parent=1 // pred_fallthru
      _
    // Predicated region
    $region78: #{model_pallas.1} parent=1 // pred_check
      _
    $region79: #{model_pallas.1} parent=1 // pred_check_branch
      %150 = sbr.rel (0) target = $region81
    $region80: #{model_pallas.1} parent=1 // pred_region
      %151 = dma.done [#allocation14], 16
    $region81: #{model_pallas.1} parent=1 // pred_fallthru
      _
    %v152 = vld [vmem:[%s0] sm:$0xff]
    %v153 = vld [vmem:[#allocation2] sm:$0xff]
    %v154 = vld [vmem:[#allocation2 + $0x8] sm:$0xff]
    %v155 = vld [vmem:[#allocation2 + $0x10] sm:$0xff]
    %v156 = vld [vmem:[#allocation2 + $0x18] sm:$0xff]
    %v157 = vld [vmem:[#allocation2 + $0x20] sm:$0xff]
    %v158 = vld [vmem:[#allocation2 + $0x28] sm:$0xff]
    %v159 = vld [vmem:[#allocation2 + $0x30] sm:$0xff]
    %v160 = vld [vmem:[#allocation2 + $0x38] sm:$0xff]
    %v161 = vld [vmem:[#allocation2 + $0x40] sm:$0xff]
    %v162 = vld [vmem:[#allocation2 + $0x48] sm:$0xff]
    %v163 = vld [vmem:[#allocation2 + $0x50] sm:$0xff]
    %v164 = vld [vmem:[#allocation2 + $0x58] sm:$0xff]
    %v165 = vld [vmem:[#allocation2 + $0x60] sm:$0xff]
    %v166 = vld [vmem:[#allocation2 + $0x68] sm:$0xff]
    %v167 = vld [vmem:[#allocation2 + $0x70] sm:$0xff]
    %v168 = vld [vmem:[#allocation2 + $0x78] sm:$0xff]
    %v169 = vld [vmem:[#allocation2 + $0x80] sm:$0xff]
    %v170 = vld [vmem:[#allocation2 + $0x88] sm:$0xff]
    %v171 = vld [vmem:[#allocation2 + $0x90] sm:$0xff]
    %v172 = vld [vmem:[#allocation2 + $0x98] sm:$0xff]
    %v173 = vld [vmem:[#allocation2 + $0xa0] sm:$0xff]
    %v174 = vld [vmem:[#allocation2 + $0xa8] sm:$0xff]
    %v175 = vld [vmem:[#allocation2 + $0xb0] sm:$0xff]
    %v176 = vld [vmem:[#allocation2 + $0xb8] sm:$0xff]
    %v177 = vld [vmem:[#allocation2 + $0xc0] sm:$0xff]
    %v178 = vld [vmem:[#allocation2 + $0xc8] sm:$0xff]
    %v179 = vld [vmem:[#allocation2 + $0xd0] sm:$0xff]
    %v180 = vld [vmem:[#allocation2 + $0xd8] sm:$0xff]
    %v181 = vld [vmem:[#allocation2 + $0xe0] sm:$0xff]
    %v182 = vld [vmem:[#allocation2 + $0xe8] sm:$0xff]
    %v183 = vld [vmem:[#allocation2 + $0xf0] sm:$0xff]
    %v184 = vld [vmem:[#allocation2 + $0xf8] sm:$0xff]
    %v185 = vld [vmem:[#allocation4] sm:$0xf]
    %v187 = vlaneseq
    %v188 = vshrl.u32 %v187, 7
    %v189 = vsub.s32 0, %v188
    %v190 = vrot.slane %v185, %v189
    %v191 = vlaneseq
    %v192 = vshrl.u32 %v191, 7
    %v193 = vsub.s32 1, %v192
    %v194 = vrot.slane %v185, %v193
    %v195 = vlaneseq
    %v196 = vshrl.u32 %v195, 7
    %v197 = vsub.s32 2, %v196
    %v198 = vrot.slane %v185, %v197
    %v199 = vlaneseq
    %v200 = vshrl.u32 %v199, 7
    %v201 = vsub.s32 3, %v200
    %v202 = vrot.slane %v185, %v201
    %vm207 = vcmask 523264
    %v209 = vsel %vm207, %v152, 0
    %211 = vmatprep.subr.mxu0 %v154
    %212 = vmatpush1.msra.mxu0 %v153
    %213 = vmatprep.subr.mxu0 %v158
    %214 = vmatpush1.msra.mxu0 %v157
    %215 = vmatprep.subr.mxu0 %v162
    %216 = vmatpush1.msra.mxu0 %v161
    %217 = vmatprep.subr.mxu0 %v166
    %218 = vmatpush1.msra.mxu0 %v165
    %219 = vmatprep.subr.mxu0 %v170
    %220 = vmatpush1.msra.mxu0 %v169
    %221 = vmatprep.subr.mxu0 %v174
    %222 = vmatpush1.msra.mxu0 %v173
    %223 = vmatprep.subr.mxu0 %v178
    %224 = vmatpush1.msra.mxu0 %v177
    %225 = vmatprep.subr.mxu0 %v182
    %226 = vmatpush1.msra.mxu0 %v181
    %227 = vmatprep.subr.mxu0 0.0
    %228 = vmatpush1.msra.mxu0 0.0
    %229 = vmatprep.subr.mxu0 0.0
    %230 = vmatpush1.msra.mxu0 0.0
    %231 = vmatprep.subr.mxu0 0.0
    %232 = vmatpush1.msra.mxu0 0.0
    %233 = vmatprep.subr.mxu0 0.0
    %234 = vmatpush1.msra.mxu0 0.0
    %235 = vmatprep.subr.mxu0 0.0
    %236 = vmatpush1.msra.mxu0 0.0
    %237 = vmatprep.subr.mxu0 0.0
    %238 = vmatpush1.msra.mxu0 0.0
    %239 = vmatprep.subr.mxu0 0.0
    %240 = vmatpush1.msra.mxu0 0.0
    %241 = vmatprep.subr.mxu0 0.0
    %242 = vmatpush1.msra.mxu0 0.0
    %243 = vmatprep.subr.mxu0 0.0
    %244 = vmatpush1.msra.mxu0 0.0
    %245 = vmatprep.subr.mxu0 0.0
    %246 = vmatpush1.msra.mxu0 0.0
    %247 = vmatprep.subr.mxu0 0.0
    %248 = vmatpush1.msra.mxu0 0.0
    %249 = vmatprep.subr.mxu0 0.0
    %250 = vmatpush1.msra.mxu0 0.0
    %251 = vmatprep.subr.mxu0 0.0
    %252 = vmatpush1.msra.mxu0 0.0
    %253 = vmatprep.subr.mxu0 0.0
    %254 = vmatpush1.msra.mxu0 0.0
    %255 = vmatprep.subr.mxu0 0.0
    %256 = vmatpush1.msra.mxu0 0.0
    %257 = vmatprep.subr.mxu0 0.0
    %258 = vmatpush1.msra.mxu0 0.0
    %259 = vmatprep.subr.mxu0 0.0
    %260 = vmatpush1.msra.mxu0 0.0
    %261 = vmatprep.subr.mxu0 0.0
    %262 = vmatpush1.msra.mxu0 0.0
    %263 = vmatprep.subr.mxu0 0.0
    %264 = vmatpush1.msra.mxu0 0.0
    %265 = vmatprep.subr.mxu0 0.0
    %266 = vmatpush1.msra.mxu0 0.0
    %267 = vmatprep.subr.mxu0 0.0
    %268 = vmatpush1.msra.mxu0 0.0
    %269 = vmatprep.subr.mxu0 0.0
    %270 = vmatpush1.msra.mxu0 0.0
    %271 = vmatprep.subr.mxu0 0.0
    %272 = vmatpush1.msra.mxu0 0.0
    %273 = vmatprep.subr.mxu0 0.0
    %274 = vmatpush1.msra.mxu0 0.0
    %275 = vmatprep.mubr.f32.mxu0 0.0
    %276 = vmatmul.mubr.f32.gmra.mrb[0].mxu0 %v209
    %v277 = vpop.f32.mrb[0].mxu0
    %v278 = vadd.f32 %v190, %v277
    %v279 = vpop.f32.mrb[0].mxu0
    %v280 = vadd.f32 %v194, %v279
    %281 = vdwg.mxu0
    %282 = vmatprep.subr.mxu0 %v156
    %283 = vmatpush1.msra.mxu0 %v155
    %284 = vmatprep.subr.mxu0 %v160
    %285 = vmatpush1.msra.mxu0 %v159
    %286 = vmatprep.subr.mxu0 %v164
    %287 = vmatpush1.msra.mxu0 %v163
    %288 = vmatprep.subr.mxu0 %v168
    %289 = vmatpush1.msra.mxu0 %v167
    %290 = vmatprep.subr.mxu0 %v172
    %291 = vmatpush1.msra.mxu0 %v171
    %292 = vmatprep.subr.mxu0 %v176
    %293 = vmatpush1.msra.mxu0 %v175
    %294 = vmatprep.subr.mxu0 %v180
    %295 = vmatpush1.msra.mxu0 %v179
    %296 = vmatprep.subr.mxu0 %v184
    %297 = vmatpush1.msra.mxu0 %v183
    %298 = vmatprep.subr.mxu0 0.0
    %299 = vmatpush1.msra.mxu0 0.0
    %300 = vmatprep.subr.mxu0 0.0
    %301 = vmatpush1.msra.mxu0 0.0
    %302 = vmatprep.subr.mxu0 0.0
    %303 = vmatpush1.msra.mxu0 0.0
    %304 = vmatprep.subr.mxu0 0.0
    %305 = vmatpush1.msra.mxu0 0.0
    %306 = vmatprep.subr.mxu0 0.0
    %307 = vmatpush1.msra.mxu0 0.0
    %308 = vmatprep.subr.mxu0 0.0
    %309 = vmatpush1.msra.mxu0 0.0
    %310 = vmatprep.subr.mxu0 0.0
    %311 = vmatpush1.msra.mxu0 0.0
    %312 = vmatprep.subr.mxu0 0.0
    %313 = vmatpush1.msra.mxu0 0.0
    %314 = vmatprep.subr.mxu0 0.0
    %315 = vmatpush1.msra.mxu0 0.0
    %316 = vmatprep.subr.mxu0 0.0
    %317 = vmatpush1.msra.mxu0 0.0
    %318 = vmatprep.subr.mxu0 0.0
    %319 = vmatpush1.msra.mxu0 0.0
    %320 = vmatprep.subr.mxu0 0.0
    %321 = vmatpush1.msra.mxu0 0.0
    %322 = vmatprep.subr.mxu0 0.0
    %323 = vmatpush1.msra.mxu0 0.0
    %324 = vmatprep.subr.mxu0 0.0
    %325 = vmatpush1.msra.mxu0 0.0
    %326 = vmatprep.subr.mxu0 0.0
    %327 = vmatpush1.msra.mxu0 0.0
    %328 = vmatprep.subr.mxu0 0.0
    %329 = vmatpush1.msra.mxu0 0.0
    %330 = vmatprep.subr.mxu0 0.0
    %331 = vmatpush1.msra.mxu0 0.0
    %332 = vmatprep.subr.mxu0 0.0
    %333 = vmatpush1.msra.mxu0 0.0
    %334 = vmatprep.subr.mxu0 0.0
    %335 = vmatpush1.msra.mxu0 0.0
    %336 = vmatprep.subr.mxu0 0.0
    %337 = vmatpush1.msra.mxu0 0.0
    %338 = vmatprep.subr.mxu0 0.0
    %339 = vmatpush1.msra.mxu0 0.0
    %340 = vmatprep.subr.mxu0 0.0
    %341 = vmatpush1.msra.mxu0 0.0
    %342 = vmatprep.subr.mxu0 0.0
    %343 = vmatpush1.msra.mxu0 0.0
    %344 = vmatprep.subr.mxu0 0.0
    %345 = vmatpush1.msra.mxu0 0.0
    %346 = vmatprep.mubr.f32.mxu0 0.0
    %347 = vmatmul.mubr.f32.gmra.mrb[0].mxu0 %v209
    %v348 = vpop.f32.mrb[0].mxu0
    %v349 = vadd.f32 %v198, %v348
    %v350 = vpop.f32.mrb[0].mxu0
    %v351 = vadd.f32 %v202, %v350
    %352 = vdwg.mxu0
    %v353 = vmax.f32 %v278, 0.0
    %v354 = vmax.f32 %v280, 0.0
    %v355 = vmax.f32 %v349, 0.0
    %v356 = vmax.f32 %v351, 0.0
    %v357 = vld [vmem:[#allocation6] sm:$0xff]
    %v358 = vld [vmem:[#allocation6 + $0x8] sm:$0xff]
    %v359 = vld [vmem:[#allocation6 + $0x10] sm:$0xff]
    %v360 = vld [vmem:[#allocation6 + $0x18] sm:$0xff]
    %v361 = vld [vmem:[#allocation6 + $0x20] sm:$0xff]
    %v362 = vld [vmem:[#allocation6 + $0x28] sm:$0xff]
    %v363 = vld [vmem:[#allocation6 + $0x30] sm:$0xff]
    %v364 = vld [vmem:[#allocation6 + $0x38] sm:$0xff]
    %v365 = vld [vmem:[#allocation6 + $0x40] sm:$0xff]
    %v366 = vld [vmem:[#allocation6 + $0x48] sm:$0xff]
    %v367 = vld [vmem:[#allocation6 + $0x50] sm:$0xff]
    %v368 = vld [vmem:[#allocation6 + $0x58] sm:$0xff]
    %v369 = vld [vmem:[#allocation6 + $0x60] sm:$0xff]
    %v370 = vld [vmem:[#allocation6 + $0x68] sm:$0xff]
    %v371 = vld [vmem:[#allocation6 + $0x70] sm:$0xff]
    %v372 = vld [vmem:[#allocation6 + $0x78] sm:$0xff]
    %v373 = vld [vmem:[#allocation6 + $0x80] sm:$0xff]
    %v374 = vld [vmem:[#allocation6 + $0x88] sm:$0xff]
    %v375 = vld [vmem:[#allocation6 + $0x90] sm:$0xff]
    %v376 = vld [vmem:[#allocation6 + $0x98] sm:$0xff]
    %v377 = vld [vmem:[#allocation6 + $0xa0] sm:$0xff]
    %v378 = vld [vmem:[#allocation6 + $0xa8] sm:$0xff]
    %v379 = vld [vmem:[#allocation6 + $0xb0] sm:$0xff]
    %v380 = vld [vmem:[#allocation6 + $0xb8] sm:$0xff]
    %v381 = vld [vmem:[#allocation6 + $0xc0] sm:$0xff]
    %v382 = vld [vmem:[#allocation6 + $0xc8] sm:$0xff]
    %v383 = vld [vmem:[#allocation6 + $0xd0] sm:$0xff]
    %v384 = vld [vmem:[#allocation6 + $0xd8] sm:$0xff]
    %v385 = vld [vmem:[#allocation6 + $0xe0] sm:$0xff]
    %v386 = vld [vmem:[#allocation6 + $0xe8] sm:$0xff]
    %v387 = vld [vmem:[#allocation6 + $0xf0] sm:$0xff]
    %v388 = vld [vmem:[#allocation6 + $0xf8] sm:$0xff]
    %v389 = vld [vmem:[#allocation6 + $0x100] sm:$0xff]
    %v390 = vld [vmem:[#allocation6 + $0x108] sm:$0xff]
    %v391 = vld [vmem:[#allocation6 + $0x110] sm:$0xff]
    %v392 = vld [vmem:[#allocation6 + $0x118] sm:$0xff]
    %v393 = vld [vmem:[#allocation6 + $0x120] sm:$0xff]
    %v394 = vld [vmem:[#allocation6 + $0x128] sm:$0xff]
    %v395 = vld [vmem:[#allocation6 + $0x130] sm:$0xff]
    %v396 = vld [vmem:[#allocation6 + $0x138] sm:$0xff]
    %v397 = vld [vmem:[#allocation6 + $0x140] sm:$0xff]
    %v398 = vld [vmem:[#allocation6 + $0x148] sm:$0xff]
    %v399 = vld [vmem:[#allocation6 + $0x150] sm:$0xff]
    %v400 = vld [vmem:[#allocation6 + $0x158] sm:$0xff]
    %v401 = vld [vmem:[#allocation6 + $0x160] sm:$0xff]
    %v402 = vld [vmem:[#allocation6 + $0x168] sm:$0xff]
    %v403 = vld [vmem:[#allocation6 + $0x170] sm:$0xff]
    %v404 = vld [vmem:[#allocation6 + $0x178] sm:$0xff]
    %v405 = vld [vmem:[#allocation6 + $0x180] sm:$0xff]
    %v406 = vld [vmem:[#allocation6 + $0x188] sm:$0xff]
    %v407 = vld [vmem:[#allocation6 + $0x190] sm:$0xff]
    %v408 = vld [vmem:[#allocation6 + $0x198] sm:$0xff]
    %v409 = vld [vmem:[#allocation6 + $0x1a0] sm:$0xff]
    %v410 = vld [vmem:[#allocation6 + $0x1a8] sm:$0xff]
    %v411 = vld [vmem:[#allocation6 + $0x1b0] sm:$0xff]
    %v412 = vld [vmem:[#allocation6 + $0x1b8] sm:$0xff]
    %v413 = vld [vmem:[#allocation6 + $0x1c0] sm:$0xff]
    %v414 = vld [vmem:[#allocation6 + $0x1c8] sm:$0xff]
    %v415 = vld [vmem:[#allocation6 + $0x1d0] sm:$0xff]
    %v416 = vld [vmem:[#allocation6 + $0x1d8] sm:$0xff]
    %v417 = vld [vmem:[#allocation6 + $0x1e0] sm:$0xff]
    %v418 = vld [vmem:[#allocation6 + $0x1e8] sm:$0xff]
    %v419 = vld [vmem:[#allocation6 + $0x1f0] sm:$0xff]
    %v420 = vld [vmem:[#allocation6 + $0x1f8] sm:$0xff]
    %v421 = vld [vmem:[#allocation6 + $0x200] sm:$0xff]
    %v422 = vld [vmem:[#allocation6 + $0x208] sm:$0xff]
    %v423 = vld [vmem:[#allocation6 + $0x210] sm:$0xff]
    %v424 = vld [vmem:[#allocation6 + $0x218] sm:$0xff]
    %v425 = vld [vmem:[#allocation6 + $0x220] sm:$0xff]
    %v426 = vld [vmem:[#allocation6 + $0x228] sm:$0xff]
    %v427 = vld [vmem:[#allocation6 + $0x230] sm:$0xff]
    %v428 = vld [vmem:[#allocation6 + $0x238] sm:$0xff]
    %v429 = vld [vmem:[#allocation6 + $0x240] sm:$0xff]
    %v430 = vld [vmem:[#allocation6 + $0x248] sm:$0xff]
    %v431 = vld [vmem:[#allocation6 + $0x250] sm:$0xff]
    %v432 = vld [vmem:[#allocation6 + $0x258] sm:$0xff]
    %v433 = vld [vmem:[#allocation6 + $0x260] sm:$0xff]
    %v434 = vld [vmem:[#allocation6 + $0x268] sm:$0xff]
    %v435 = vld [vmem:[#allocation6 + $0x270] sm:$0xff]
    %v436 = vld [vmem:[#allocation6 + $0x278] sm:$0xff]
    %v437 = vld [vmem:[#allocation6 + $0x280] sm:$0xff]
    %v438 = vld [vmem:[#allocation6 + $0x288] sm:$0xff]
    %v439 = vld [vmem:[#allocation6 + $0x290] sm:$0xff]
    %v440 = vld [vmem:[#allocation6 + $0x298] sm:$0xff]
    %v441 = vld [vmem:[#allocation6 + $0x2a0] sm:$0xff]
    %v442 = vld [vmem:[#allocation6 + $0x2a8] sm:$0xff]
    %v443 = vld [vmem:[#allocation6 + $0x2b0] sm:$0xff]
    %v444 = vld [vmem:[#allocation6 + $0x2b8] sm:$0xff]
    %v445 = vld [vmem:[#allocation6 + $0x2c0] sm:$0xff]
    %v446 = vld [vmem:[#allocation6 + $0x2c8] sm:$0xff]
    %v447 = vld [vmem:[#allocation6 + $0x2d0] sm:$0xff]
    %v448 = vld [vmem:[#allocation6 + $0x2d8] sm:$0xff]
    %v449 = vld [vmem:[#allocation6 + $0x2e0] sm:$0xff]
    %v450 = vld [vmem:[#allocation6 + $0x2e8] sm:$0xff]
    %v451 = vld [vmem:[#allocation6 + $0x2f0] sm:$0xff]
    %v452 = vld [vmem:[#allocation6 + $0x2f8] sm:$0xff]
    %v453 = vld [vmem:[#allocation6 + $0x300] sm:$0xff]
    %v454 = vld [vmem:[#allocation6 + $0x308] sm:$0xff]
    %v455 = vld [vmem:[#allocation6 + $0x310] sm:$0xff]
    %v456 = vld [vmem:[#allocation6 + $0x318] sm:$0xff]
    %v457 = vld [vmem:[#allocation6 + $0x320] sm:$0xff]
    %v458 = vld [vmem:[#allocation6 + $0x328] sm:$0xff]
    %v459 = vld [vmem:[#allocation6 + $0x330] sm:$0xff]
    %v460 = vld [vmem:[#allocation6 + $0x338] sm:$0xff]
    %v461 = vld [vmem:[#allocation6 + $0x340] sm:$0xff]
    %v462 = vld [vmem:[#allocation6 + $0x348] sm:$0xff]
    %v463 = vld [vmem:[#allocation6 + $0x350] sm:$0xff]
    %v464 = vld [vmem:[#allocation6 + $0x358] sm:$0xff]
    %v465 = vld [vmem:[#allocation6 + $0x360] sm:$0xff]
    %v466 = vld [vmem:[#allocation6 + $0x368] sm:$0xff]
    %v467 = vld [vmem:[#allocation6 + $0x370] sm:$0xff]
    %v468 = vld [vmem:[#allocation6 + $0x378] sm:$0xff]
    %v469 = vld [vmem:[#allocation6 + $0x380] sm:$0xff]
    %v470 = vld [vmem:[#allocation6 + $0x388] sm:$0xff]
    %v471 = vld [vmem:[#allocation6 + $0x390] sm:$0xff]
    %v472 = vld [vmem:[#allocation6 + $0x398] sm:$0xff]
    %v473 = vld [vmem:[#allocation6 + $0x3a0] sm:$0xff]
    %v474 = vld [vmem:[#allocation6 + $0x3a8] sm:$0xff]
    %v475 = vld [vmem:[#allocation6 + $0x3b0] sm:$0xff]
    %v476 = vld [vmem:[#allocation6 + $0x3b8] sm:$0xff]
    %v477 = vld [vmem:[#allocation6 + $0x3c0] sm:$0xff]
    %v478 = vld [vmem:[#allocation6 + $0x3c8] sm:$0xff]
    %v479 = vld [vmem:[#allocation6 + $0x3d0] sm:$0xff]
    %v480 = vld [vmem:[#allocation6 + $0x3d8] sm:$0xff]
    %v481 = vld [vmem:[#allocation6 + $0x3e0] sm:$0xff]
    %v482 = vld [vmem:[#allocation6 + $0x3e8] sm:$0xff]
    %v483 = vld [vmem:[#allocation6 + $0x3f0] sm:$0xff]
    %v484 = vld [vmem:[#allocation6 + $0x3f8] sm:$0xff]
    %v485 = vld [vmem:[#allocation6 + $0x400] sm:$0xff]
    %v486 = vld [vmem:[#allocation6 + $0x408] sm:$0xff]
    %v487 = vld [vmem:[#allocation6 + $0x410] sm:$0xff]
    %v488 = vld [vmem:[#allocation6 + $0x418] sm:$0xff]
    %v489 = vld [vmem:[#allocation6 + $0x420] sm:$0xff]
    %v490 = vld [vmem:[#allocation6 + $0x428] sm:$0xff]
    %v491 = vld [vmem:[#allocation6 + $0x430] sm:$0xff]
    %v492 = vld [vmem:[#allocation6 + $0x438] sm:$0xff]
    %v493 = vld [vmem:[#allocation6 + $0x440] sm:$0xff]
    %v494 = vld [vmem:[#allocation6 + $0x448] sm:$0xff]
    %v495 = vld [vmem:[#allocation6 + $0x450] sm:$0xff]
    %v496 = vld [vmem:[#allocation6 + $0x458] sm:$0xff]
    %v497 = vld [vmem:[#allocation6 + $0x460] sm:$0xff]
    %v498 = vld [vmem:[#allocation6 + $0x468] sm:$0xff]
    %v499 = vld [vmem:[#allocation6 + $0x470] sm:$0xff]
    %v500 = vld [vmem:[#allocation6 + $0x478] sm:$0xff]
    %v501 = vld [vmem:[#allocation6 + $0x480] sm:$0xff]
    %v502 = vld [vmem:[#allocation6 + $0x488] sm:$0xff]
    %v503 = vld [vmem:[#allocation6 + $0x490] sm:$0xff]
    %v504 = vld [vmem:[#allocation6 + $0x498] sm:$0xff]
    %v505 = vld [vmem:[#allocation6 + $0x4a0] sm:$0xff]
    %v506 = vld [vmem:[#allocation6 + $0x4a8] sm:$0xff]
    %v507 = vld [vmem:[#allocation6 + $0x4b0] sm:$0xff]
    %v508 = vld [vmem:[#allocation6 + $0x4b8] sm:$0xff]
    %v509 = vld [vmem:[#allocation6 + $0x4c0] sm:$0xff]
    %v510 = vld [vmem:[#allocation6 + $0x4c8] sm:$0xff]
    %v511 = vld [vmem:[#allocation6 + $0x4d0] sm:$0xff]
    %v512 = vld [vmem:[#allocation6 + $0x4d8] sm:$0xff]
    %v513 = vld [vmem:[#allocation6 + $0x4e0] sm:$0xff]
    %v514 = vld [vmem:[#allocation6 + $0x4e8] sm:$0xff]
    %v515 = vld [vmem:[#allocation6 + $0x4f0] sm:$0xff]
    %v516 = vld [vmem:[#allocation6 + $0x4f8] sm:$0xff]
    %v517 = vld [vmem:[#allocation6 + $0x500] sm:$0xff]
    %v518 = vld [vmem:[#allocation6 + $0x508] sm:$0xff]
    %v519 = vld [vmem:[#allocation6 + $0x510] sm:$0xff]
    %v520 = vld [vmem:[#allocation6 + $0x518] sm:$0xff]
    %v521 = vld [vmem:[#allocation6 + $0x520] sm:$0xff]
    %v522 = vld [vmem:[#allocation6 + $0x528] sm:$0xff]
    %v523 = vld [vmem:[#allocation6 + $0x530] sm:$0xff]
    %v524 = vld [vmem:[#allocation6 + $0x538] sm:$0xff]
    %v525 = vld [vmem:[#allocation6 + $0x540] sm:$0xff]
    %v526 = vld [vmem:[#allocation6 + $0x548] sm:$0xff]
    %v527 = vld [vmem:[#allocation6 + $0x550] sm:$0xff]
    %v528 = vld [vmem:[#allocation6 + $0x558] sm:$0xff]
    %v529 = vld [vmem:[#allocation6 + $0x560] sm:$0xff]
    %v530 = vld [vmem:[#allocation6 + $0x568] sm:$0xff]
    %v531 = vld [vmem:[#allocation6 + $0x570] sm:$0xff]
    %v532 = vld [vmem:[#allocation6 + $0x578] sm:$0xff]
    %v533 = vld [vmem:[#allocation6 + $0x580] sm:$0xff]
    %v534 = vld [vmem:[#allocation6 + $0x588] sm:$0xff]
    %v535 = vld [vmem:[#allocation6 + $0x590] sm:$0xff]
    %v536 = vld [vmem:[#allocation6 + $0x598] sm:$0xff]
    %v537 = vld [vmem:[#allocation6 + $0x5a0] sm:$0xff]
    %v538 = vld [vmem:[#allocation6 + $0x5a8] sm:$0xff]
    %v539 = vld [vmem:[#allocation6 + $0x5b0] sm:$0xff]
    %v540 = vld [vmem:[#allocation6 + $0x5b8] sm:$0xff]
    %v541 = vld [vmem:[#allocation6 + $0x5c0] sm:$0xff]
    %v542 = vld [vmem:[#allocation6 + $0x5c8] sm:$0xff]
    %v543 = vld [vmem:[#allocation6 + $0x5d0] sm:$0xff]
    %v544 = vld [vmem:[#allocation6 + $0x5d8] sm:$0xff]
    %v545 = vld [vmem:[#allocation6 + $0x5e0] sm:$0xff]
    %v546 = vld [vmem:[#allocation6 + $0x5e8] sm:$0xff]
    %v547 = vld [vmem:[#allocation6 + $0x5f0] sm:$0xff]
    %v548 = vld [vmem:[#allocation6 + $0x5f8] sm:$0xff]
    %v549 = vld [vmem:[#allocation6 + $0x600] sm:$0xff]
    %v550 = vld [vmem:[#allocation6 + $0x608] sm:$0xff]
    %v551 = vld [vmem:[#allocation6 + $0x610] sm:$0xff]
    %v552 = vld [vmem:[#allocation6 + $0x618] sm:$0xff]
    %v553 = vld [vmem:[#allocation6 + $0x620] sm:$0xff]
    %v554 = vld [vmem:[#allocation6 + $0x628] sm:$0xff]
    %v555 = vld [vmem:[#allocation6 + $0x630] sm:$0xff]
    %v556 = vld [vmem:[#allocation6 + $0x638] sm:$0xff]
    %v557 = vld [vmem:[#allocation6 + $0x640] sm:$0xff]
    %v558 = vld [vmem:[#allocation6 + $0x648] sm:$0xff]
    %v559 = vld [vmem:[#allocation6 + $0x650] sm:$0xff]
    %v560 = vld [vmem:[#allocation6 + $0x658] sm:$0xff]
    %v561 = vld [vmem:[#allocation6 + $0x660] sm:$0xff]
    %v562 = vld [vmem:[#allocation6 + $0x668] sm:$0xff]
    %v563 = vld [vmem:[#allocation6 + $0x670] sm:$0xff]
    %v564 = vld [vmem:[#allocation6 + $0x678] sm:$0xff]
    %v565 = vld [vmem:[#allocation6 + $0x680] sm:$0xff]
    %v566 = vld [vmem:[#allocation6 + $0x688] sm:$0xff]
    %v567 = vld [vmem:[#allocation6 + $0x690] sm:$0xff]
    %v568 = vld [vmem:[#allocation6 + $0x698] sm:$0xff]
    %v569 = vld [vmem:[#allocation6 + $0x6a0] sm:$0xff]
    %v570 = vld [vmem:[#allocation6 + $0x6a8] sm:$0xff]
    %v571 = vld [vmem:[#allocation6 + $0x6b0] sm:$0xff]
    %v572 = vld [vmem:[#allocation6 + $0x6b8] sm:$0xff]
    %v573 = vld [vmem:[#allocation6 + $0x6c0] sm:$0xff]
    %v574 = vld [vmem:[#allocation6 + $0x6c8] sm:$0xff]
    %v575 = vld [vmem:[#allocation6 + $0x6d0] sm:$0xff]
    %v576 = vld [vmem:[#allocation6 + $0x6d8] sm:$0xff]
    %v577 = vld [vmem:[#allocation6 + $0x6e0] sm:$0xff]
    %v578 = vld [vmem:[#allocation6 + $0x6e8] sm:$0xff]
    %v579 = vld [vmem:[#allocation6 + $0x6f0] sm:$0xff]
    %v580 = vld [vmem:[#allocation6 + $0x6f8] sm:$0xff]
    %v581 = vld [vmem:[#allocation6 + $0x700] sm:$0xff]
    %v582 = vld [vmem:[#allocation6 + $0x708] sm:$0xff]
    %v583 = vld [vmem:[#allocation6 + $0x710] sm:$0xff]
    %v584 = vld [vmem:[#allocation6 + $0x718] sm:$0xff]
    %v585 = vld [vmem:[#allocation6 + $0x720] sm:$0xff]
    %v586 = vld [vmem:[#allocation6 + $0x728] sm:$0xff]
    %v587 = vld [vmem:[#allocation6 + $0x730] sm:$0xff]
    %v588 = vld [vmem:[#allocation6 + $0x738] sm:$0xff]
    %v589 = vld [vmem:[#allocation6 + $0x740] sm:$0xff]
    %v590 = vld [vmem:[#allocation6 + $0x748] sm:$0xff]
    %v591 = vld [vmem:[#allocation6 + $0x750] sm:$0xff]
    %v592 = vld [vmem:[#allocation6 + $0x758] sm:$0xff]
    %v593 = vld [vmem:[#allocation6 + $0x760] sm:$0xff]
    %v594 = vld [vmem:[#allocation6 + $0x768] sm:$0xff]
    %v595 = vld [vmem:[#allocation6 + $0x770] sm:$0xff]
    %v596 = vld [vmem:[#allocation6 + $0x778] sm:$0xff]
    %v597 = vld [vmem:[#allocation6 + $0x780] sm:$0xff]
    %v598 = vld [vmem:[#allocation6 + $0x788] sm:$0xff]
    %v599 = vld [vmem:[#allocation6 + $0x790] sm:$0xff]
    %v600 = vld [vmem:[#allocation6 + $0x798] sm:$0xff]
    %v601 = vld [vmem:[#allocation6 + $0x7a0] sm:$0xff]
    %v602 = vld [vmem:[#allocation6 + $0x7a8] sm:$0xff]
    %v603 = vld [vmem:[#allocation6 + $0x7b0] sm:$0xff]
    %v604 = vld [vmem:[#allocation6 + $0x7b8] sm:$0xff]
    %v605 = vld [vmem:[#allocation6 + $0x7c0] sm:$0xff]
    %v606 = vld [vmem:[#allocation6 + $0x7c8] sm:$0xff]
    %v607 = vld [vmem:[#allocation6 + $0x7d0] sm:$0xff]
    %v608 = vld [vmem:[#allocation6 + $0x7d8] sm:$0xff]
    %v609 = vld [vmem:[#allocation6 + $0x7e0] sm:$0xff]
    %v610 = vld [vmem:[#allocation6 + $0x7e8] sm:$0xff]
    %v611 = vld [vmem:[#allocation6 + $0x7f0] sm:$0xff]
    %v612 = vld [vmem:[#allocation6 + $0x7f8] sm:$0xff]
    %v613 = vld [vmem:[#allocation7] sm:$0xf]
    %v615 = vlaneseq
    %v616 = vshrl.u32 %v615, 7
    %v617 = vsub.s32 0, %v616
    %v618 = vrot.slane %v613, %v617
    %v619 = vlaneseq
    %v620 = vshrl.u32 %v619, 7
    %v621 = vsub.s32 1, %v620
    %v622 = vrot.slane %v613, %v621
    %v623 = vlaneseq
    %v624 = vshrl.u32 %v623, 7
    %v625 = vsub.s32 2, %v624
    %v626 = vrot.slane %v613, %v625
    %v627 = vlaneseq
    %v628 = vshrl.u32 %v627, 7
    %v629 = vsub.s32 3, %v628
    %v630 = vrot.slane %v613, %v629
    %635 = vmatprep.subr.mxu0 %v358
    %636 = vmatpush1.msra.mxu0 %v357
    %637 = vmatprep.subr.mxu0 %v362
    %638 = vmatpush1.msra.mxu0 %v361
    %639 = vmatprep.subr.mxu0 %v366
    %640 = vmatpush1.msra.mxu0 %v365
    %641 = vmatprep.subr.mxu0 %v370
    %642 = vmatpush1.msra.mxu0 %v369
    %643 = vmatprep.subr.mxu0 %v374
    %644 = vmatpush1.msra.mxu0 %v373
    %645 = vmatprep.subr.mxu0 %v378
    %646 = vmatpush1.msra.mxu0 %v377
    %647 = vmatprep.subr.mxu0 %v382
    %648 = vmatpush1.msra.mxu0 %v381
    %649 = vmatprep.subr.mxu0 %v386
    %650 = vmatpush1.msra.mxu0 %v385
    %651 = vmatprep.subr.mxu0 %v390
    %652 = vmatpush1.msra.mxu0 %v389
    %653 = vmatprep.subr.mxu0 %v394
    %654 = vmatpush1.msra.mxu0 %v393
    %655 = vmatprep.subr.mxu0 %v398
    %656 = vmatpush1.msra.mxu0 %v397
    %657 = vmatprep.subr.mxu0 %v402
    %658 = vmatpush1.msra.mxu0 %v401
    %659 = vmatprep.subr.mxu0 %v406
    %660 = vmatpush1.msra.mxu0 %v405
    %661 = vmatprep.subr.mxu0 %v410
    %662 = vmatpush1.msra.mxu0 %v409
    %663 = vmatprep.subr.mxu0 %v414
    %664 = vmatpush1.msra.mxu0 %v413
    %665 = vmatprep.subr.mxu0 %v418
    %666 = vmatpush1.msra.mxu0 %v417
    %667 = vmatprep.subr.mxu0 %v422
    %668 = vmatpush1.msra.mxu0 %v421
    %669 = vmatprep.subr.mxu0 %v426
    %670 = vmatpush1.msra.mxu0 %v425
    %671 = vmatprep.subr.mxu0 %v430
    %672 = vmatpush1.msra.mxu0 %v429
    %673 = vmatprep.subr.mxu0 %v434
    %674 = vmatpush1.msra.mxu0 %v433
    %675 = vmatprep.subr.mxu0 %v438
    %676 = vmatpush1.msra.mxu0 %v437
    %677 = vmatprep.subr.mxu0 %v442
    %678 = vmatpush1.msra.mxu0 %v441
    %679 = vmatprep.subr.mxu0 %v446
    %680 = vmatpush1.msra.mxu0 %v445
    %681 = vmatprep.subr.mxu0 %v450
    %682 = vmatpush1.msra.mxu0 %v449
    %683 = vmatprep.subr.mxu0 %v454
    %684 = vmatpush1.msra.mxu0 %v453
    %685 = vmatprep.subr.mxu0 %v458
    %686 = vmatpush1.msra.mxu0 %v457
    %687 = vmatprep.subr.mxu0 %v462
    %688 = vmatpush1.msra.mxu0 %v461
    %689 = vmatprep.subr.mxu0 %v466
    %690 = vmatpush1.msra.mxu0 %v465
    %691 = vmatprep.subr.mxu0 %v470
    %692 = vmatpush1.msra.mxu0 %v469
    %693 = vmatprep.subr.mxu0 %v474
    %694 = vmatpush1.msra.mxu0 %v473
    %695 = vmatprep.subr.mxu0 %v478
    %696 = vmatpush1.msra.mxu0 %v477
    %697 = vmatprep.subr.mxu0 %v482
    %698 = vmatpush1.msra.mxu0 %v481
    %699 = vmatprep.mubr.f32.mxu0 %v354
    %700 = vmatmul.mubr.f32.gmra.mrb[0].mxu0 %v353
    %v701 = vpop.f32.mrb[0].mxu0
    %v702 = vadd.f32 %v618, %v701
    %v703 = vpop.f32.mrb[0].mxu0
    %v704 = vadd.f32 %v622, %v703
    %705 = vdwg.mxu0
    %706 = vmatprep.subr.mxu0 %v486
    %707 = vmatpush1.msra.mxu0 %v485
    %708 = vmatprep.subr.mxu0 %v490
    %709 = vmatpush1.msra.mxu0 %v489
    %710 = vmatprep.subr.mxu0 %v494
    %711 = vmatpush1.msra.mxu0 %v493
    %712 = vmatprep.subr.mxu0 %v498
    %713 = vmatpush1.msra.mxu0 %v497
    %714 = vmatprep.subr.mxu0 %v502
    %715 = vmatpush1.msra.mxu0 %v501
    %716 = vmatprep.subr.mxu0 %v506
    %717 = vmatpush1.msra.mxu0 %v505
    %718 = vmatprep.subr.mxu0 %v510
    %719 = vmatpush1.msra.mxu0 %v509
    %720 = vmatprep.subr.mxu0 %v514
    %721 = vmatpush1.msra.mxu0 %v513
    %722 = vmatprep.subr.mxu0 %v518
    %723 = vmatpush1.msra.mxu0 %v517
    %724 = vmatprep.subr.mxu0 %v522
    %725 = vmatpush1.msra.mxu0 %v521
    %726 = vmatprep.subr.mxu0 %v526
    %727 = vmatpush1.msra.mxu0 %v525
    %728 = vmatprep.subr.mxu0 %v530
    %729 = vmatpush1.msra.mxu0 %v529
    %730 = vmatprep.subr.mxu0 %v534
    %731 = vmatpush1.msra.mxu0 %v533
    %732 = vmatprep.subr.mxu0 %v538
    %733 = vmatpush1.msra.mxu0 %v537
    %734 = vmatprep.subr.mxu0 %v542
    %735 = vmatpush1.msra.mxu0 %v541
    %736 = vmatprep.subr.mxu0 %v546
    %737 = vmatpush1.msra.mxu0 %v545
    %738 = vmatprep.subr.mxu0 %v550
    %739 = vmatpush1.msra.mxu0 %v549
    %740 = vmatprep.subr.mxu0 %v554
    %741 = vmatpush1.msra.mxu0 %v553
    %742 = vmatprep.subr.mxu0 %v558
    %743 = vmatpush1.msra.mxu0 %v557
    %744 = vmatprep.subr.mxu0 %v562
    %745 = vmatpush1.msra.mxu0 %v561
    %746 = vmatprep.subr.mxu0 %v566
    %747 = vmatpush1.msra.mxu0 %v565
    %748 = vmatprep.subr.mxu0 %v570
    %749 = vmatpush1.msra.mxu0 %v569
    %750 = vmatprep.subr.mxu0 %v574
    %751 = vmatpush1.msra.mxu0 %v573
    %752 = vmatprep.subr.mxu0 %v578
    %753 = vmatpush1.msra.mxu0 %v577
    %754 = vmatprep.subr.mxu0 %v582
    %755 = vmatpush1.msra.mxu0 %v581
    %756 = vmatprep.subr.mxu0 %v586
    %757 = vmatpush1.msra.mxu0 %v585
    %758 = vmatprep.subr.mxu0 %v590
    %759 = vmatpush1.msra.mxu0 %v589
    %760 = vmatprep.subr.mxu0 %v594
    %761 = vmatpush1.msra.mxu0 %v593
    %762 = vmatprep.subr.mxu0 %v598
    %763 = vmatpush1.msra.mxu0 %v597
    %764 = vmatprep.subr.mxu0 %v602
    %765 = vmatpush1.msra.mxu0 %v601
    %766 = vmatprep.subr.mxu0 %v606
    %767 = vmatpush1.msra.mxu0 %v605
    %768 = vmatprep.subr.mxu0 %v610
    %769 = vmatpush1.msra.mxu0 %v609
    %770 = vmatprep.mubr.f32.mxu0 %v356
    %771 = vmatmul.mubr.f32.gmra.mrb[0].mxu0 %v355
    %v772 = vpop.f32.mrb[0].mxu0
    %v773 = vadd.f32 %v702, %v772
    %v774 = vpop.f32.mrb[0].mxu0
    %v775 = vadd.f32 %v704, %v774
    %776 = vdwg.mxu0
    %777 = vmatprep.subr.mxu0 %v360
    %778 = vmatpush1.msra.mxu0 %v359
    %779 = vmatprep.subr.mxu0 %v364
    %780 = vmatpush1.msra.mxu0 %v363
    %781 = vmatprep.subr.mxu0 %v368
    %782 = vmatpush1.msra.mxu0 %v367
    %783 = vmatprep.subr.mxu0 %v372
    %784 = vmatpush1.msra.mxu0 %v371
    %785 = vmatprep.subr.mxu0 %v376
    %786 = vmatpush1.msra.mxu0 %v375
    %787 = vmatprep.subr.mxu0 %v380
    %788 = vmatpush1.msra.mxu0 %v379
    %789 = vmatprep.subr.mxu0 %v384
    %790 = vmatpush1.msra.mxu0 %v383
    %791 = vmatprep.subr.mxu0 %v388
    %792 = vmatpush1.msra.mxu0 %v387
    %793 = vmatprep.subr.mxu0 %v392
    %794 = vmatpush1.msra.mxu0 %v391
    %795 = vmatprep.subr.mxu0 %v396
    %796 = vmatpush1.msra.mxu0 %v395
    %797 = vmatprep.subr.mxu0 %v400
    %798 = vmatpush1.msra.mxu0 %v399
    %799 = vmatprep.subr.mxu0 %v404
    %800 = vmatpush1.msra.mxu0 %v403
    %801 = vmatprep.subr.mxu0 %v408
    %802 = vmatpush1.msra.mxu0 %v407
    %803 = vmatprep.subr.mxu0 %v412
    %804 = vmatpush1.msra.mxu0 %v411
    %805 = vmatprep.subr.mxu0 %v416
    %806 = vmatpush1.msra.mxu0 %v415
    %807 = vmatprep.subr.mxu0 %v420
    %808 = vmatpush1.msra.mxu0 %v419
    %809 = vmatprep.subr.mxu0 %v424
    %810 = vmatpush1.msra.mxu0 %v423
    %811 = vmatprep.subr.mxu0 %v428
    %812 = vmatpush1.msra.mxu0 %v427
    %813 = vmatprep.subr.mxu0 %v432
    %814 = vmatpush1.msra.mxu0 %v431
    %815 = vmatprep.subr.mxu0 %v436
    %816 = vmatpush1.msra.mxu0 %v435
    %817 = vmatprep.subr.mxu0 %v440
    %818 = vmatpush1.msra.mxu0 %v439
    %819 = vmatprep.subr.mxu0 %v444
    %820 = vmatpush1.msra.mxu0 %v443
    %821 = vmatprep.subr.mxu0 %v448
    %822 = vmatpush1.msra.mxu0 %v447
    %823 = vmatprep.subr.mxu0 %v452
    %824 = vmatpush1.msra.mxu0 %v451
    %825 = vmatprep.subr.mxu0 %v456
    %826 = vmatpush1.msra.mxu0 %v455
    %827 = vmatprep.subr.mxu0 %v460
    %828 = vmatpush1.msra.mxu0 %v459
    %829 = vmatprep.subr.mxu0 %v464
    %830 = vmatpush1.msra.mxu0 %v463
    %831 = vmatprep.subr.mxu0 %v468
    %832 = vmatpush1.msra.mxu0 %v467
    %833 = vmatprep.subr.mxu0 %v472
    %834 = vmatpush1.msra.mxu0 %v471
    %835 = vmatprep.subr.mxu0 %v476
    %836 = vmatpush1.msra.mxu0 %v475
    %837 = vmatprep.subr.mxu0 %v480
    %838 = vmatpush1.msra.mxu0 %v479
    %839 = vmatprep.subr.mxu0 %v484
    %840 = vmatpush1.msra.mxu0 %v483
    %841 = vmatprep.mubr.f32.mxu0 %v354
    %842 = vmatmul.mubr.f32.gmra.mrb[0].mxu0 %v353
    %v843 = vpop.f32.mrb[0].mxu0
    %v844 = vadd.f32 %v626, %v843
    %v845 = vpop.f32.mrb[0].mxu0
    %v846 = vadd.f32 %v630, %v845
    %847 = vdwg.mxu0
    %848 = vmatprep.subr.mxu0 %v488
    %849 = vmatpush1.msra.mxu0 %v487
    %850 = vmatprep.subr.mxu0 %v492
    %851 = vmatpush1.msra.mxu0 %v491
    %852 = vmatprep.subr.mxu0 %v496
    %853 = vmatpush1.msra.mxu0 %v495
    %854 = vmatprep.subr.mxu0 %v500
    %855 = vmatpush1.msra.mxu0 %v499
    %856 = vmatprep.subr.mxu0 %v504
    %857 = vmatpush1.msra.mxu0 %v503
    %858 = vmatprep.subr.mxu0 %v508
    %859 = vmatpush1.msra.mxu0 %v507
    %860 = vmatprep.subr.mxu0 %v512
    %861 = vmatpush1.msra.mxu0 %v511
    %862 = vmatprep.subr.mxu0 %v516
    %863 = vmatpush1.msra.mxu0 %v515
    %864 = vmatprep.subr.mxu0 %v520
    %865 = vmatpush1.msra.mxu0 %v519
    %866 = vmatprep.subr.mxu0 %v524
    %867 = vmatpush1.msra.mxu0 %v523
    %868 = vmatprep.subr.mxu0 %v528
    %869 = vmatpush1.msra.mxu0 %v527
    %870 = vmatprep.subr.mxu0 %v532
    %871 = vmatpush1.msra.mxu0 %v531
    %872 = vmatprep.subr.mxu0 %v536
    %873 = vmatpush1.msra.mxu0 %v535
    %874 = vmatprep.subr.mxu0 %v540
    %875 = vmatpush1.msra.mxu0 %v539
    %876 = vmatprep.subr.mxu0 %v544
    %877 = vmatpush1.msra.mxu0 %v543
    %878 = vmatprep.subr.mxu0 %v548
    %879 = vmatpush1.msra.mxu0 %v547
    %880 = vmatprep.subr.mxu0 %v552
    %881 = vmatpush1.msra.mxu0 %v551
    %882 = vmatprep.subr.mxu0 %v556
    %883 = vmatpush1.msra.mxu0 %v555
    %884 = vmatprep.subr.mxu0 %v560
    %885 = vmatpush1.msra.mxu0 %v559
    %886 = vmatprep.subr.mxu0 %v564
    %887 = vmatpush1.msra.mxu0 %v563
    %888 = vmatprep.subr.mxu0 %v568
    %889 = vmatpush1.msra.mxu0 %v567
    %890 = vmatprep.subr.mxu0 %v572
    %891 = vmatpush1.msra.mxu0 %v571
    %892 = vmatprep.subr.mxu0 %v576
    %893 = vmatpush1.msra.mxu0 %v575
    %894 = vmatprep.subr.mxu0 %v580
    %895 = vmatpush1.msra.mxu0 %v579
    %896 = vmatprep.subr.mxu0 %v584
    %897 = vmatpush1.msra.mxu0 %v583
    %898 = vmatprep.subr.mxu0 %v588
    %899 = vmatpush1.msra.mxu0 %v587
    %900 = vmatprep.subr.mxu0 %v592
    %901 = vmatpush1.msra.mxu0 %v591
    %902 = vmatprep.subr.mxu0 %v596
    %903 = vmatpush1.msra.mxu0 %v595
    %904 = vmatprep.subr.mxu0 %v600
    %905 = vmatpush1.msra.mxu0 %v599
    %906 = vmatprep.subr.mxu0 %v604
    %907 = vmatpush1.msra.mxu0 %v603
    %908 = vmatprep.subr.mxu0 %v608
    %909 = vmatpush1.msra.mxu0 %v607
    %910 = vmatprep.subr.mxu0 %v612
    %911 = vmatpush1.msra.mxu0 %v611
    %912 = vmatprep.mubr.f32.mxu0 %v356
    %913 = vmatmul.mubr.f32.gmra.mrb[0].mxu0 %v355
    %v914 = vpop.f32.mrb[0].mxu0
    %v915 = vadd.f32 %v844, %v914
    %v916 = vpop.f32.mrb[0].mxu0
    %v917 = vadd.f32 %v846, %v916
    %918 = vdwg.mxu0
    %v919 = vmax.f32 %v773, 0.0
    %v920 = vmax.f32 %v775, 0.0
    %v921 = vmax.f32 %v915, 0.0
    %v922 = vmax.f32 %v917, 0.0
    %s923 = scalar_lea.vmem [#allocation6], 2048
    %v924 = vld [vmem:[%s923] sm:$0xff]
    %v925 = vld [vmem:[%s923 + $0x8] sm:$0xff]
    %v926 = vld [vmem:[%s923 + $0x10] sm:$0xff]
    %v927 = vld [vmem:[%s923 + $0x18] sm:$0xff]
    %v928 = vld [vmem:[%s923 + $0x20] sm:$0xff]
    %v929 = vld [vmem:[%s923 + $0x28] sm:$0xff]
    %v930 = vld [vmem:[%s923 + $0x30] sm:$0xff]
    %v931 = vld [vmem:[%s923 + $0x38] sm:$0xff]
    %v932 = vld [vmem:[%s923 + $0x40] sm:$0xff]
    %v933 = vld [vmem:[%s923 + $0x48] sm:$0xff]
    %v934 = vld [vmem:[%s923 + $0x50] sm:$0xff]
    %v935 = vld [vmem:[%s923 + $0x58] sm:$0xff]
    %v936 = vld [vmem:[%s923 + $0x60] sm:$0xff]
    %v937 = vld [vmem:[%s923 + $0x68] sm:$0xff]
    %v938 = vld [vmem:[%s923 + $0x70] sm:$0xff]
    %v939 = vld [vmem:[%s923 + $0x78] sm:$0xff]
    %v940 = vld [vmem:[%s923 + $0x80] sm:$0xff]
    %v941 = vld [vmem:[%s923 + $0x88] sm:$0xff]
    %v942 = vld [vmem:[%s923 + $0x90] sm:$0xff]
    %v943 = vld [vmem:[%s923 + $0x98] sm:$0xff]
    %v944 = vld [vmem:[%s923 + $0xa0] sm:$0xff]
    %v945 = vld [vmem:[%s923 + $0xa8] sm:$0xff]
    %v946 = vld [vmem:[%s923 + $0xb0] sm:$0xff]
    %v947 = vld [vmem:[%s923 + $0xb8] sm:$0xff]
    %v948 = vld [vmem:[%s923 + $0xc0] sm:$0xff]
    %v949 = vld [vmem:[%s923 + $0xc8] sm:$0xff]
    %v950 = vld [vmem:[%s923 + $0xd0] sm:$0xff]
    %v951 = vld [vmem:[%s923 + $0xd8] sm:$0xff]
    %v952 = vld [vmem:[%s923 + $0xe0] sm:$0xff]
    %v953 = vld [vmem:[%s923 + $0xe8] sm:$0xff]
    %v954 = vld [vmem:[%s923 + $0xf0] sm:$0xff]
    %v955 = vld [vmem:[%s923 + $0xf8] sm:$0xff]
    %v956 = vld [vmem:[%s923 + $0x100] sm:$0xff]
    %v957 = vld [vmem:[%s923 + $0x108] sm:$0xff]
    %v958 = vld [vmem:[%s923 + $0x110] sm:$0xff]
    %v959 = vld [vmem:[%s923 + $0x118] sm:$0xff]
    %v960 = vld [vmem:[%s923 + $0x120] sm:$0xff]
    %v961 = vld [vmem:[%s923 + $0x128] sm:$0xff]
    %v962 = vld [vmem:[%s923 + $0x130] sm:$0xff]
    %v963 = vld [vmem:[%s923 + $0x138] sm:$0xff]
    %v964 = vld [vmem:[%s923 + $0x140] sm:$0xff]
    %v965 = vld [vmem:[%s923 + $0x148] sm:$0xff]
    %v966 = vld [vmem:[%s923 + $0x150] sm:$0xff]
    %v967 = vld [vmem:[%s923 + $0x158] sm:$0xff]
    %v968 = vld [vmem:[%s923 + $0x160] sm:$0xff]
    %v969 = vld [vmem:[%s923 + $0x168] sm:$0xff]
    %v970 = vld [vmem:[%s923 + $0x170] sm:$0xff]
    %v971 = vld [vmem:[%s923 + $0x178] sm:$0xff]
    %v972 = vld [vmem:[%s923 + $0x180] sm:$0xff]
    %v973 = vld [vmem:[%s923 + $0x188] sm:$0xff]
    %v974 = vld [vmem:[%s923 + $0x190] sm:$0xff]
    %v975 = vld [vmem:[%s923 + $0x198] sm:$0xff]
    %v976 = vld [vmem:[%s923 + $0x1a0] sm:$0xff]
    %v977 = vld [vmem:[%s923 + $0x1a8] sm:$0xff]
    %v978 = vld [vmem:[%s923 + $0x1b0] sm:$0xff]
    %v979 = vld [vmem:[%s923 + $0x1b8] sm:$0xff]
    %v980 = vld [vmem:[%s923 + $0x1c0] sm:$0xff]
    %v981 = vld [vmem:[%s923 + $0x1c8] sm:$0xff]
    %v982 = vld [vmem:[%s923 + $0x1d0] sm:$0xff]
    %v983 = vld [vmem:[%s923 + $0x1d8] sm:$0xff]
    %v984 = vld [vmem:[%s923 + $0x1e0] sm:$0xff]
    %v985 = vld [vmem:[%s923 + $0x1e8] sm:$0xff]
    %v986 = vld [vmem:[%s923 + $0x1f0] sm:$0xff]
    %v987 = vld [vmem:[%s923 + $0x1f8] sm:$0xff]
    %v988 = vld [vmem:[%s923 + $0x200] sm:$0xff]
    %v989 = vld [vmem:[%s923 + $0x208] sm:$0xff]
    %v990 = vld [vmem:[%s923 + $0x210] sm:$0xff]
    %v991 = vld [vmem:[%s923 + $0x218] sm:$0xff]
    %v992 = vld [vmem:[%s923 + $0x220] sm:$0xff]
    %v993 = vld [vmem:[%s923 + $0x228] sm:$0xff]
    %v994 = vld [vmem:[%s923 + $0x230] sm:$0xff]
    %v995 = vld [vmem:[%s923 + $0x238] sm:$0xff]
    %v996 = vld [vmem:[%s923 + $0x240] sm:$0xff]
    %v997 = vld [vmem:[%s923 + $0x248] sm:$0xff]
    %v998 = vld [vmem:[%s923 + $0x250] sm:$0xff]
    %v999 = vld [vmem:[%s923 + $0x258] sm:$0xff]
    %v1000 = vld [vmem:[%s923 + $0x260] sm:$0xff]
    %v1001 = vld [vmem:[%s923 + $0x268] sm:$0xff]
    %v1002 = vld [vmem:[%s923 + $0x270] sm:$0xff]
    %v1003 = vld [vmem:[%s923 + $0x278] sm:$0xff]
    %v1004 = vld [vmem:[%s923 + $0x280] sm:$0xff]
    %v1005 = vld [vmem:[%s923 + $0x288] sm:$0xff]
    %v1006 = vld [vmem:[%s923 + $0x290] sm:$0xff]
    %v1007 = vld [vmem:[%s923 + $0x298] sm:$0xff]
    %v1008 = vld [vmem:[%s923 + $0x2a0] sm:$0xff]
    %v1009 = vld [vmem:[%s923 + $0x2a8] sm:$0xff]
    %v1010 = vld [vmem:[%s923 + $0x2b0] sm:$0xff]
    %v1011 = vld [vmem:[%s923 + $0x2b8] sm:$0xff]
    %v1012 = vld [vmem:[%s923 + $0x2c0] sm:$0xff]
    %v1013 = vld [vmem:[%s923 + $0x2c8] sm:$0xff]
    %v1014 = vld [vmem:[%s923 + $0x2d0] sm:$0xff]
    %v1015 = vld [vmem:[%s923 + $0x2d8] sm:$0xff]
    %v1016 = vld [vmem:[%s923 + $0x2e0] sm:$0xff]
    %v1017 = vld [vmem:[%s923 + $0x2e8] sm:$0xff]
    %v1018 = vld [vmem:[%s923 + $0x2f0] sm:$0xff]
    %v1019 = vld [vmem:[%s923 + $0x2f8] sm:$0xff]
    %v1020 = vld [vmem:[%s923 + $0x300] sm:$0xff]
    %v1021 = vld [vmem:[%s923 + $0x308] sm:$0xff]
    %v1022 = vld [vmem:[%s923 + $0x310] sm:$0xff]
    %v1023 = vld [vmem:[%s923 + $0x318] sm:$0xff]
    %v1024 = vld [vmem:[%s923 + $0x320] sm:$0xff]
    %v1025 = vld [vmem:[%s923 + $0x328] sm:$0xff]
    %v1026 = vld [vmem:[%s923 + $0x330] sm:$0xff]
    %v1027 = vld [vmem:[%s923 + $0x338] sm:$0xff]
    %v1028 = vld [vmem:[%s923 + $0x340] sm:$0xff]
    %v1029 = vld [vmem:[%s923 + $0x348] sm:$0xff]
    %v1030 = vld [vmem:[%s923 + $0x350] sm:$0xff]
    %v1031 = vld [vmem:[%s923 + $0x358] sm:$0xff]
    %v1032 = vld [vmem:[%s923 + $0x360] sm:$0xff]
    %v1033 = vld [vmem:[%s923 + $0x368] sm:$0xff]
    %v1034 = vld [vmem:[%s923 + $0x370] sm:$0xff]
    %v1035 = vld [vmem:[%s923 + $0x378] sm:$0xff]
    %v1036 = vld [vmem:[%s923 + $0x380] sm:$0xff]
    %v1037 = vld [vmem:[%s923 + $0x388] sm:$0xff]
    %v1038 = vld [vmem:[%s923 + $0x390] sm:$0xff]
    %v1039 = vld [vmem:[%s923 + $0x398] sm:$0xff]
    %v1040 = vld [vmem:[%s923 + $0x3a0] sm:$0xff]
    %v1041 = vld [vmem:[%s923 + $0x3a8] sm:$0xff]
    %v1042 = vld [vmem:[%s923 + $0x3b0] sm:$0xff]
    %v1043 = vld [vmem:[%s923 + $0x3b8] sm:$0xff]
    %v1044 = vld [vmem:[%s923 + $0x3c0] sm:$0xff]
    %v1045 = vld [vmem:[%s923 + $0x3c8] sm:$0xff]
    %v1046 = vld [vmem:[%s923 + $0x3d0] sm:$0xff]
    %v1047 = vld [vmem:[%s923 + $0x3d8] sm:$0xff]
    %v1048 = vld [vmem:[%s923 + $0x3e0] sm:$0xff]
    %v1049 = vld [vmem:[%s923 + $0x3e8] sm:$0xff]
    %v1050 = vld [vmem:[%s923 + $0x3f0] sm:$0xff]
    %v1051 = vld [vmem:[%s923 + $0x3f8] sm:$0xff]
    %v1052 = vld [vmem:[%s923 + $0x400] sm:$0xff]
    %v1053 = vld [vmem:[%s923 + $0x408] sm:$0xff]
    %v1054 = vld [vmem:[%s923 + $0x410] sm:$0xff]
    %v1055 = vld [vmem:[%s923 + $0x418] sm:$0xff]
    %v1056 = vld [vmem:[%s923 + $0x420] sm:$0xff]
    %v1057 = vld [vmem:[%s923 + $0x428] sm:$0xff]
    %v1058 = vld [vmem:[%s923 + $0x430] sm:$0xff]
    %v1059 = vld [vmem:[%s923 + $0x438] sm:$0xff]
    %v1060 = vld [vmem:[%s923 + $0x440] sm:$0xff]
    %v1061 = vld [vmem:[%s923 + $0x448] sm:$0xff]
    %v1062 = vld [vmem:[%s923 + $0x450] sm:$0xff]
    %v1063 = vld [vmem:[%s923 + $0x458] sm:$0xff]
    %v1064 = vld [vmem:[%s923 + $0x460] sm:$0xff]
    %v1065 = vld [vmem:[%s923 + $0x468] sm:$0xff]
    %v1066 = vld [vmem:[%s923 + $0x470] sm:$0xff]
    %v1067 = vld [vmem:[%s923 + $0x478] sm:$0xff]
    %v1068 = vld [vmem:[%s923 + $0x480] sm:$0xff]
    %v1069 = vld [vmem:[%s923 + $0x488] sm:$0xff]
    %v1070 = vld [vmem:[%s923 + $0x490] sm:$0xff]
    %v1071 = vld [vmem:[%s923 + $0x498] sm:$0xff]
    %v1072 = vld [vmem:[%s923 + $0x4a0] sm:$0xff]
    %v1073 = vld [vmem:[%s923 + $0x4a8] sm:$0xff]
    %v1074 = vld [vmem:[%s923 + $0x4b0] sm:$0xff]
    %v1075 = vld [vmem:[%s923 + $0x4b8] sm:$0xff]
    %v1076 = vld [vmem:[%s923 + $0x4c0] sm:$0xff]
    %v1077 = vld [vmem:[%s923 + $0x4c8] sm:$0xff]
    %v1078 = vld [vmem:[%s923 + $0x4d0] sm:$0xff]
    %v1079 = vld [vmem:[%s923 + $0x4d8] sm:$0xff]
    %v1080 = vld [vmem:[%s923 + $0x4e0] sm:$0xff]
    %v1081 = vld [vmem:[%s923 + $0x4e8] sm:$0xff]
    %v1082 = vld [vmem:[%s923 + $0x4f0] sm:$0xff]
    %v1083 = vld [vmem:[%s923 + $0x4f8] sm:$0xff]
    %v1084 = vld [vmem:[%s923 + $0x500] sm:$0xff]
    %v1085 = vld [vmem:[%s923 + $0x508] sm:$0xff]
    %v1086 = vld [vmem:[%s923 + $0x510] sm:$0xff]
    %v1087 = vld [vmem:[%s923 + $0x518] sm:$0xff]
    %v1088 = vld [vmem:[%s923 + $0x520] sm:$0xff]
    %v1089 = vld [vmem:[%s923 + $0x528] sm:$0xff]
    %v1090 = vld [vmem:[%s923 + $0x530] sm:$0xff]
    %v1091 = vld [vmem:[%s923 + $0x538] sm:$0xff]
    %v1092 = vld [vmem:[%s923 + $0x540] sm:$0xff]
    %v1093 = vld [vmem:[%s923 + $0x548] sm:$0xff]
    %v1094 = vld [vmem:[%s923 + $0x550] sm:$0xff]
    %v1095 = vld [vmem:[%s923 + $0x558] sm:$0xff]
    %v1096 = vld [vmem:[%s923 + $0x560] sm:$0xff]
    %v1097 = vld [vmem:[%s923 + $0x568] sm:$0xff]
    %v1098 = vld [vmem:[%s923 + $0x570] sm:$0xff]
    %v1099 = vld [vmem:[%s923 + $0x578] sm:$0xff]
    %v1100 = vld [vmem:[%s923 + $0x580] sm:$0xff]
    %v1101 = vld [vmem:[%s923 + $0x588] sm:$0xff]
    %v1102 = vld [vmem:[%s923 + $0x590] sm:$0xff]
    %v1103 = vld [vmem:[%s923 + $0x598] sm:$0xff]
    %v1104 = vld [vmem:[%s923 + $0x5a0] sm:$0xff]
    %v1105 = vld [vmem:[%s923 + $0x5a8] sm:$0xff]
    %v1106 = vld [vmem:[%s923 + $0x5b0] sm:$0xff]
    %v1107 = vld [vmem:[%s923 + $0x5b8] sm:$0xff]
    %v1108 = vld [vmem:[%s923 + $0x5c0] sm:$0xff]
    %v1109 = vld [vmem:[%s923 + $0x5c8] sm:$0xff]
    %v1110 = vld [vmem:[%s923 + $0x5d0] sm:$0xff]
    %v1111 = vld [vmem:[%s923 + $0x5d8] sm:$0xff]
    %v1112 = vld [vmem:[%s923 + $0x5e0] sm:$0xff]
    %v1113 = vld [vmem:[%s923 + $0x5e8] sm:$0xff]
    %v1114 = vld [vmem:[%s923 + $0x5f0] sm:$0xff]
    %v1115 = vld [vmem:[%s923 + $0x5f8] sm:$0xff]
    %v1116 = vld [vmem:[%s923 + $0x600] sm:$0xff]
    %v1117 = vld [vmem:[%s923 + $0x608] sm:$0xff]
    %v1118 = vld [vmem:[%s923 + $0x610] sm:$0xff]
    %v1119 = vld [vmem:[%s923 + $0x618] sm:$0xff]
    %v1120 = vld [vmem:[%s923 + $0x620] sm:$0xff]
    %v1121 = vld [vmem:[%s923 + $0x628] sm:$0xff]
    %v1122 = vld [vmem:[%s923 + $0x630] sm:$0xff]
    %v1123 = vld [vmem:[%s923 + $0x638] sm:$0xff]
    %v1124 = vld [vmem:[%s923 + $0x640] sm:$0xff]
    %v1125 = vld [vmem:[%s923 + $0x648] sm:$0xff]
    %v1126 = vld [vmem:[%s923 + $0x650] sm:$0xff]
    %v1127 = vld [vmem:[%s923 + $0x658] sm:$0xff]
    %v1128 = vld [vmem:[%s923 + $0x660] sm:$0xff]
    %v1129 = vld [vmem:[%s923 + $0x668] sm:$0xff]
    %v1130 = vld [vmem:[%s923 + $0x670] sm:$0xff]
    %v1131 = vld [vmem:[%s923 + $0x678] sm:$0xff]
    %v1132 = vld [vmem:[%s923 + $0x680] sm:$0xff]
    %v1133 = vld [vmem:[%s923 + $0x688] sm:$0xff]
    %v1134 = vld [vmem:[%s923 + $0x690] sm:$0xff]
    %v1135 = vld [vmem:[%s923 + $0x698] sm:$0xff]
    %v1136 = vld [vmem:[%s923 + $0x6a0] sm:$0xff]
    %v1137 = vld [vmem:[%s923 + $0x6a8] sm:$0xff]
    %v1138 = vld [vmem:[%s923 + $0x6b0] sm:$0xff]
    %v1139 = vld [vmem:[%s923 + $0x6b8] sm:$0xff]
    %v1140 = vld [vmem:[%s923 + $0x6c0] sm:$0xff]
    %v1141 = vld [vmem:[%s923 + $0x6c8] sm:$0xff]
    %v1142 = vld [vmem:[%s923 + $0x6d0] sm:$0xff]
    %v1143 = vld [vmem:[%s923 + $0x6d8] sm:$0xff]
    %v1144 = vld [vmem:[%s923 + $0x6e0] sm:$0xff]
    %v1145 = vld [vmem:[%s923 + $0x6e8] sm:$0xff]
    %v1146 = vld [vmem:[%s923 + $0x6f0] sm:$0xff]
    %v1147 = vld [vmem:[%s923 + $0x6f8] sm:$0xff]
    %v1148 = vld [vmem:[%s923 + $0x700] sm:$0xff]
    %v1149 = vld [vmem:[%s923 + $0x708] sm:$0xff]
    %v1150 = vld [vmem:[%s923 + $0x710] sm:$0xff]
    %v1151 = vld [vmem:[%s923 + $0x718] sm:$0xff]
    %v1152 = vld [vmem:[%s923 + $0x720] sm:$0xff]
    %v1153 = vld [vmem:[%s923 + $0x728] sm:$0xff]
    %v1154 = vld [vmem:[%s923 + $0x730] sm:$0xff]
    %v1155 = vld [vmem:[%s923 + $0x738] sm:$0xff]
    %v1156 = vld [vmem:[%s923 + $0x740] sm:$0xff]
    %v1157 = vld [vmem:[%s923 + $0x748] sm:$0xff]
    %v1158 = vld [vmem:[%s923 + $0x750] sm:$0xff]
    %v1159 = vld [vmem:[%s923 + $0x758] sm:$0xff]
    %v1160 = vld [vmem:[%s923 + $0x760] sm:$0xff]
    %v1161 = vld [vmem:[%s923 + $0x768] sm:$0xff]
    %v1162 = vld [vmem:[%s923 + $0x770] sm:$0xff]
    %v1163 = vld [vmem:[%s923 + $0x778] sm:$0xff]
    %v1164 = vld [vmem:[%s923 + $0x780] sm:$0xff]
    %v1165 = vld [vmem:[%s923 + $0x788] sm:$0xff]
    %v1166 = vld [vmem:[%s923 + $0x790] sm:$0xff]
    %v1167 = vld [vmem:[%s923 + $0x798] sm:$0xff]
    %v1168 = vld [vmem:[%s923 + $0x7a0] sm:$0xff]
    %v1169 = vld [vmem:[%s923 + $0x7a8] sm:$0xff]
    %v1170 = vld [vmem:[%s923 + $0x7b0] sm:$0xff]
    %v1171 = vld [vmem:[%s923 + $0x7b8] sm:$0xff]
    %v1172 = vld [vmem:[%s923 + $0x7c0] sm:$0xff]
    %v1173 = vld [vmem:[%s923 + $0x7c8] sm:$0xff]
    %v1174 = vld [vmem:[%s923 + $0x7d0] sm:$0xff]
    %v1175 = vld [vmem:[%s923 + $0x7d8] sm:$0xff]
    %v1176 = vld [vmem:[%s923 + $0x7e0] sm:$0xff]
    %v1177 = vld [vmem:[%s923 + $0x7e8] sm:$0xff]
    %v1178 = vld [vmem:[%s923 + $0x7f0] sm:$0xff]
    %v1179 = vld [vmem:[%s923 + $0x7f8] sm:$0xff]
    %s1180 = scalar_lea.vmem [#allocation7], 4
    %v1181 = vld [vmem:[%s1180] sm:$0xf]
    %v1183 = vlaneseq
    %v1184 = vshrl.u32 %v1183, 7
    %v1185 = vsub.s32 0, %v1184
    %v1186 = vrot.slane %v1181, %v1185
    %v1187 = vlaneseq
    %v1188 = vshrl.u32 %v1187, 7
    %v1189 = vsub.s32 1, %v1188
    %v1190 = vrot.slane %v1181, %v1189
    %v1191 = vlaneseq
    %v1192 = vshrl.u32 %v1191, 7
    %v1193 = vsub.s32 2, %v1192
    %v1194 = vrot.slane %v1181, %v1193
    %v1195 = vlaneseq
    %v1196 = vshrl.u32 %v1195, 7
    %v1197 = vsub.s32 3, %v1196
    %v1198 = vrot.slane %v1181, %v1197
    %1203 = vmatprep.subr.mxu0 %v925
    %1204 = vmatpush1.msra.mxu0 %v924
    %1205 = vmatprep.subr.mxu0 %v929
    %1206 = vmatpush1.msra.mxu0 %v928
    %1207 = vmatprep.subr.mxu0 %v933
    %1208 = vmatpush1.msra.mxu0 %v932
    %1209 = vmatprep.subr.mxu0 %v937
    %1210 = vmatpush1.msra.mxu0 %v936
    %1211 = vmatprep.subr.mxu0 %v941
    %1212 = vmatpush1.msra.mxu0 %v940
    %1213 = vmatprep.subr.mxu0 %v945
    %1214 = vmatpush1.msra.mxu0 %v944
    %1215 = vmatprep.subr.mxu0 %v949
    %1216 = vmatpush1.msra.mxu0 %v948
    %1217 = vmatprep.subr.mxu0 %v953
    %1218 = vmatpush1.msra.mxu0 %v952
    %1219 = vmatprep.subr.mxu0 %v957
    %1220 = vmatpush1.msra.mxu0 %v956
    %1221 = vmatprep.subr.mxu0 %v961
    %1222 = vmatpush1.msra.mxu0 %v960
    %1223 = vmatprep.subr.mxu0 %v965
    %1224 = vmatpush1.msra.mxu0 %v964
    %1225 = vmatprep.subr.mxu0 %v969
    %1226 = vmatpush1.msra.mxu0 %v968
    %1227 = vmatprep.subr.mxu0 %v973
    %1228 = vmatpush1.msra.mxu0 %v972
    %1229 = vmatprep.subr.mxu0 %v977
    %1230 = vmatpush1.msra.mxu0 %v976
    %1231 = vmatprep.subr.mxu0 %v981
    %1232 = vmatpush1.msra.mxu0 %v980
    %1233 = vmatprep.subr.mxu0 %v985
    %1234 = vmatpush1.msra.mxu0 %v984
    %1235 = vmatprep.subr.mxu0 %v989
    %1236 = vmatpush1.msra.mxu0 %v988
    %1237 = vmatprep.subr.mxu0 %v993
    %1238 = vmatpush1.msra.mxu0 %v992
    %1239 = vmatprep.subr.mxu0 %v997
    %1240 = vmatpush1.msra.mxu0 %v996
    %1241 = vmatprep.subr.mxu0 %v1001
    %1242 = vmatpush1.msra.mxu0 %v1000
    %1243 = vmatprep.subr.mxu0 %v1005
    %1244 = vmatpush1.msra.mxu0 %v1004
    %1245 = vmatprep.subr.mxu0 %v1009
    %1246 = vmatpush1.msra.mxu0 %v1008
    %1247 = vmatprep.subr.mxu0 %v1013
    %1248 = vmatpush1.msra.mxu0 %v1012
    %1249 = vmatprep.subr.mxu0 %v1017
    %1250 = vmatpush1.msra.mxu0 %v1016
    %1251 = vmatprep.subr.mxu0 %v1021
    %1252 = vmatpush1.msra.mxu0 %v1020
    %1253 = vmatprep.subr.mxu0 %v1025
    %1254 = vmatpush1.msra.mxu0 %v1024
    %1255 = vmatprep.subr.mxu0 %v1029
    %1256 = vmatpush1.msra.mxu0 %v1028
    %1257 = vmatprep.subr.mxu0 %v1033
    %1258 = vmatpush1.msra.mxu0 %v1032
    %1259 = vmatprep.subr.mxu0 %v1037
    %1260 = vmatpush1.msra.mxu0 %v1036
    %1261 = vmatprep.subr.mxu0 %v1041
    %1262 = vmatpush1.msra.mxu0 %v1040
    %1263 = vmatprep.subr.mxu0 %v1045
    %1264 = vmatpush1.msra.mxu0 %v1044
    %1265 = vmatprep.subr.mxu0 %v1049
    %1266 = vmatpush1.msra.mxu0 %v1048
    %1267 = vmatprep.mubr.f32.mxu0 %v920
    %1268 = vmatmul.mubr.f32.gmra.mrb[0].mxu0 %v919
    %v1269 = vpop.f32.mrb[0].mxu0
    %v1270 = vadd.f32 %v1186, %v1269
    %v1271 = vpop.f32.mrb[0].mxu0
    %v1272 = vadd.f32 %v1190, %v1271
    %1273 = vdwg.mxu0
    %1274 = vmatprep.subr.mxu0 %v1053
    %1275 = vmatpush1.msra.mxu0 %v1052
    %1276 = vmatprep.subr.mxu0 %v1057
    %1277 = vmatpush1.msra.mxu0 %v1056
    %1278 = vmatprep.subr.mxu0 %v1061
    %1279 = vmatpush1.msra.mxu0 %v1060
    %1280 = vmatprep.subr.mxu0 %v1065
    %1281 = vmatpush1.msra.mxu0 %v1064
    %1282 = vmatprep.subr.mxu0 %v1069
    %1283 = vmatpush1.msra.mxu0 %v1068
    %1284 = vmatprep.subr.mxu0 %v1073
    %1285 = vmatpush1.msra.mxu0 %v1072
    %1286 = vmatprep.subr.mxu0 %v1077
    %1287 = vmatpush1.msra.mxu0 %v1076
    %1288 = vmatprep.subr.mxu0 %v1081
    %1289 = vmatpush1.msra.mxu0 %v1080
    %1290 = vmatprep.subr.mxu0 %v1085
    %1291 = vmatpush1.msra.mxu0 %v1084
    %1292 = vmatprep.subr.mxu0 %v1089
    %1293 = vmatpush1.msra.mxu0 %v1088
    %1294 = vmatprep.subr.mxu0 %v1093
    %1295 = vmatpush1.msra.mxu0 %v1092
    %1296 = vmatprep.subr.mxu0 %v1097
    %1297 = vmatpush1.msra.mxu0 %v1096
    %1298 = vmatprep.subr.mxu0 %v1101
    %1299 = vmatpush1.msra.mxu0 %v1100
    %1300 = vmatprep.subr.mxu0 %v1105
    %1301 = vmatpush1.msra.mxu0 %v1104
    %1302 = vmatprep.subr.mxu0 %v1109
    %1303 = vmatpush1.msra.mxu0 %v1108
    %1304 = vmatprep.subr.mxu0 %v1113
    %1305 = vmatpush1.msra.mxu0 %v1112
    %1306 = vmatprep.subr.mxu0 %v1117
    %1307 = vmatpush1.msra.mxu0 %v1116
    %1308 = vmatprep.subr.mxu0 %v1121
    %1309 = vmatpush1.msra.mxu0 %v1120
    %1310 = vmatprep.subr.mxu0 %v1125
    %1311 = vmatpush1.msra.mxu0 %v1124
    %1312 = vmatprep.subr.mxu0 %v1129
    %1313 = vmatpush1.msra.mxu0 %v1128
    %1314 = vmatprep.subr.mxu0 %v1133
    %1315 = vmatpush1.msra.mxu0 %v1132
    %1316 = vmatprep.subr.mxu0 %v1137
    %1317 = vmatpush1.msra.mxu0 %v1136
    %1318 = vmatprep.subr.mxu0 %v1141
    %1319 = vmatpush1.msra.mxu0 %v1140
    %1320 = vmatprep.subr.mxu0 %v1145
    %1321 = vmatpush1.msra.mxu0 %v1144
    %1322 = vmatprep.subr.mxu0 %v1149
    %1323 = vmatpush1.msra.mxu0 %v1148
    %1324 = vmatprep.subr.mxu0 %v1153
    %1325 = vmatpush1.msra.mxu0 %v1152
    %1326 = vmatprep.subr.mxu0 %v1157
    %1327 = vmatpush1.msra.mxu0 %v1156
    %1328 = vmatprep.subr.mxu0 %v1161
    %1329 = vmatpush1.msra.mxu0 %v1160
    %1330 = vmatprep.subr.mxu0 %v1165
    %1331 = vmatpush1.msra.mxu0 %v1164
    %1332 = vmatprep.subr.mxu0 %v1169
    %1333 = vmatpush1.msra.mxu0 %v1168
    %1334 = vmatprep.subr.mxu0 %v1173
    %1335 = vmatpush1.msra.mxu0 %v1172
    %1336 = vmatprep.subr.mxu0 %v1177
    %1337 = vmatpush1.msra.mxu0 %v1176
    %1338 = vmatprep.mubr.f32.mxu0 %v922
    %1339 = vmatmul.mubr.f32.gmra.mrb[0].mxu0 %v921
    %v1340 = vpop.f32.mrb[0].mxu0
    %v1341 = vadd.f32 %v1270, %v1340
    %v1342 = vpop.f32.mrb[0].mxu0
    %v1343 = vadd.f32 %v1272, %v1342
    %1344 = vdwg.mxu0
    %1345 = vmatprep.subr.mxu0 %v927
    %1346 = vmatpush1.msra.mxu0 %v926
    %1347 = vmatprep.subr.mxu0 %v931
    %1348 = vmatpush1.msra.mxu0 %v930
    %1349 = vmatprep.subr.mxu0 %v935
    %1350 = vmatpush1.msra.mxu0 %v934
    %1351 = vmatprep.subr.mxu0 %v939
    %1352 = vmatpush1.msra.mxu0 %v938
    %1353 = vmatprep.subr.mxu0 %v943
    %1354 = vmatpush1.msra.mxu0 %v942
    %1355 = vmatprep.subr.mxu0 %v947
    %1356 = vmatpush1.msra.mxu0 %v946
    %1357 = vmatprep.subr.mxu0 %v951
    %1358 = vmatpush1.msra.mxu0 %v950
    %1359 = vmatprep.subr.mxu0 %v955
    %1360 = vmatpush1.msra.mxu0 %v954
    %1361 = vmatprep.subr.mxu0 %v959
    %1362 = vmatpush1.msra.mxu0 %v958
    %1363 = vmatprep.subr.mxu0 %v963
    %1364 = vmatpush1.msra.mxu0 %v962
    %1365 = vmatprep.subr.mxu0 %v967
    %1366 = vmatpush1.msra.mxu0 %v966
    %1367 = vmatprep.subr.mxu0 %v971
    %1368 = vmatpush1.msra.mxu0 %v970
    %1369 = vmatprep.subr.mxu0 %v975
    %1370 = vmatpush1.msra.mxu0 %v974
    %1371 = vmatprep.subr.mxu0 %v979
    %1372 = vmatpush1.msra.mxu0 %v978
    %1373 = vmatprep.subr.mxu0 %v983
    %1374 = vmatpush1.msra.mxu0 %v982
    %1375 = vmatprep.subr.mxu0 %v987
    %1376 = vmatpush1.msra.mxu0 %v986
    %1377 = vmatprep.subr.mxu0 %v991
    %1378 = vmatpush1.msra.mxu0 %v990
    %1379 = vmatprep.subr.mxu0 %v995
    %1380 = vmatpush1.msra.mxu0 %v994
    %1381 = vmatprep.subr.mxu0 %v999
    %1382 = vmatpush1.msra.mxu0 %v998
    %1383 = vmatprep.subr.mxu0 %v1003
    %1384 = vmatpush1.msra.mxu0 %v1002
    %1385 = vmatprep.subr.mxu0 %v1007
    %1386 = vmatpush1.msra.mxu0 %v1006
    %1387 = vmatprep.subr.mxu0 %v1011
    %1388 = vmatpush1.msra.mxu0 %v1010
    %1389 = vmatprep.subr.mxu0 %v1015
    %1390 = vmatpush1.msra.mxu0 %v1014
    %1391 = vmatprep.subr.mxu0 %v1019
    %1392 = vmatpush1.msra.mxu0 %v1018
    %1393 = vmatprep.subr.mxu0 %v1023
    %1394 = vmatpush1.msra.mxu0 %v1022
    %1395 = vmatprep.subr.mxu0 %v1027
    %1396 = vmatpush1.msra.mxu0 %v1026
    %1397 = vmatprep.subr.mxu0 %v1031
    %1398 = vmatpush1.msra.mxu0 %v1030
    %1399 = vmatprep.subr.mxu0 %v1035
    %1400 = vmatpush1.msra.mxu0 %v1034
    %1401 = vmatprep.subr.mxu0 %v1039
    %1402 = vmatpush1.msra.mxu0 %v1038
    %1403 = vmatprep.subr.mxu0 %v1043
    %1404 = vmatpush1.msra.mxu0 %v1042
    %1405 = vmatprep.subr.mxu0 %v1047
    %1406 = vmatpush1.msra.mxu0 %v1046
    %1407 = vmatprep.subr.mxu0 %v1051
    %1408 = vmatpush1.msra.mxu0 %v1050
    %1409 = vmatprep.mubr.f32.mxu0 %v920
    %1410 = vmatmul.mubr.f32.gmra.mrb[0].mxu0 %v919
    %v1411 = vpop.f32.mrb[0].mxu0
    %v1412 = vadd.f32 %v1194, %v1411
    %v1413 = vpop.f32.mrb[0].mxu0
    %v1414 = vadd.f32 %v1198, %v1413
    %1415 = vdwg.mxu0
    %1416 = vmatprep.subr.mxu0 %v1055
    %1417 = vmatpush1.msra.mxu0 %v1054
    %1418 = vmatprep.subr.mxu0 %v1059
    %1419 = vmatpush1.msra.mxu0 %v1058
    %1420 = vmatprep.subr.mxu0 %v1063
    %1421 = vmatpush1.msra.mxu0 %v1062
    %1422 = vmatprep.subr.mxu0 %v1067
    %1423 = vmatpush1.msra.mxu0 %v1066
    %1424 = vmatprep.subr.mxu0 %v1071
    %1425 = vmatpush1.msra.mxu0 %v1070
    %1426 = vmatprep.subr.mxu0 %v1075
    %1427 = vmatpush1.msra.mxu0 %v1074
    %1428 = vmatprep.subr.mxu0 %v1079
    %1429 = vmatpush1.msra.mxu0 %v1078
    %1430 = vmatprep.subr.mxu0 %v1083
    %1431 = vmatpush1.msra.mxu0 %v1082
    %1432 = vmatprep.subr.mxu0 %v1087
    %1433 = vmatpush1.msra.mxu0 %v1086
    %1434 = vmatprep.subr.mxu0 %v1091
    %1435 = vmatpush1.msra.mxu0 %v1090
    %1436 = vmatprep.subr.mxu0 %v1095
    %1437 = vmatpush1.msra.mxu0 %v1094
    %1438 = vmatprep.subr.mxu0 %v1099
    %1439 = vmatpush1.msra.mxu0 %v1098
    %1440 = vmatprep.subr.mxu0 %v1103
    %1441 = vmatpush1.msra.mxu0 %v1102
    %1442 = vmatprep.subr.mxu0 %v1107
    %1443 = vmatpush1.msra.mxu0 %v1106
    %1444 = vmatprep.subr.mxu0 %v1111
    %1445 = vmatpush1.msra.mxu0 %v1110
    %1446 = vmatprep.subr.mxu0 %v1115
    %1447 = vmatpush1.msra.mxu0 %v1114
    %1448 = vmatprep.subr.mxu0 %v1119
    %1449 = vmatpush1.msra.mxu0 %v1118
    %1450 = vmatprep.subr.mxu0 %v1123
    %1451 = vmatpush1.msra.mxu0 %v1122
    %1452 = vmatprep.subr.mxu0 %v1127
    %1453 = vmatpush1.msra.mxu0 %v1126
    %1454 = vmatprep.subr.mxu0 %v1131
    %1455 = vmatpush1.msra.mxu0 %v1130
    %1456 = vmatprep.subr.mxu0 %v1135
    %1457 = vmatpush1.msra.mxu0 %v1134
    %1458 = vmatprep.subr.mxu0 %v1139
    %1459 = vmatpush1.msra.mxu0 %v1138
    %1460 = vmatprep.subr.mxu0 %v1143
    %1461 = vmatpush1.msra.mxu0 %v1142
    %1462 = vmatprep.subr.mxu0 %v1147
    %1463 = vmatpush1.msra.mxu0 %v1146
    %1464 = vmatprep.subr.mxu0 %v1151
    %1465 = vmatpush1.msra.mxu0 %v1150
    %1466 = vmatprep.subr.mxu0 %v1155
    %1467 = vmatpush1.msra.mxu0 %v1154
    %1468 = vmatprep.subr.mxu0 %v1159
    %1469 = vmatpush1.msra.mxu0 %v1158
    %1470 = vmatprep.subr.mxu0 %v1163
    %1471 = vmatpush1.msra.mxu0 %v1162
    %1472 = vmatprep.subr.mxu0 %v1167
    %1473 = vmatpush1.msra.mxu0 %v1166
    %1474 = vmatprep.subr.mxu0 %v1171
    %1475 = vmatpush1.msra.mxu0 %v1170
    %1476 = vmatprep.subr.mxu0 %v1175
    %1477 = vmatpush1.msra.mxu0 %v1174
    %1478 = vmatprep.subr.mxu0 %v1179
    %1479 = vmatpush1.msra.mxu0 %v1178
    %1480 = vmatprep.mubr.f32.mxu0 %v922
    %1481 = vmatmul.mubr.f32.gmra.mrb[0].mxu0 %v921
    %v1482 = vpop.f32.mrb[0].mxu0
    %v1483 = vadd.f32 %v1412, %v1482
    %v1484 = vpop.f32.mrb[0].mxu0
    %v1485 = vadd.f32 %v1414, %v1484
    %1486 = vdwg.mxu0
    %v1487 = vmax.f32 %v1341, 0.0
    %v1488 = vmax.f32 %v1343, 0.0
    %v1489 = vmax.f32 %v1483, 0.0
    %v1490 = vmax.f32 %v1485, 0.0
    %v1491 = vadd.f32 %v1487, %v353
    %v1492 = vadd.f32 %v1488, %v354
    %v1493 = vadd.f32 %v1489, %v355
    %v1494 = vadd.f32 %v1490, %v356
    %s1495 = scalar_lea.vmem [#allocation6], 4096
    %v1496 = vld [vmem:[%s1495] sm:$0xff]
    %v1497 = vld [vmem:[%s1495 + $0x8] sm:$0xff]
    %v1498 = vld [vmem:[%s1495 + $0x10] sm:$0xff]
    %v1499 = vld [vmem:[%s1495 + $0x18] sm:$0xff]
    %v1500 = vld [vmem:[%s1495 + $0x20] sm:$0xff]
    %v1501 = vld [vmem:[%s1495 + $0x28] sm:$0xff]
    %v1502 = vld [vmem:[%s1495 + $0x30] sm:$0xff]
    %v1503 = vld [vmem:[%s1495 + $0x38] sm:$0xff]
    %v1504 = vld [vmem:[%s1495 + $0x40] sm:$0xff]
    %v1505 = vld [vmem:[%s1495 + $0x48] sm:$0xff]
    %v1506 = vld [vmem:[%s1495 + $0x50] sm:$0xff]
    %v1507 = vld [vmem:[%s1495 + $0x58] sm:$0xff]
    %v1508 = vld [vmem:[%s1495 + $0x60] sm:$0xff]
    %v1509 = vld [vmem:[%s1495 + $0x68] sm:$0xff]
    %v1510 = vld [vmem:[%s1495 + $0x70] sm:$0xff]
    %v1511 = vld [vmem:[%s1495 + $0x78] sm:$0xff]
    %v1512 = vld [vmem:[%s1495 + $0x80] sm:$0xff]
    %v1513 = vld [vmem:[%s1495 + $0x88] sm:$0xff]
    %v1514 = vld [vmem:[%s1495 + $0x90] sm:$0xff]
    %v1515 = vld [vmem:[%s1495 + $0x98] sm:$0xff]
    %v1516 = vld [vmem:[%s1495 + $0xa0] sm:$0xff]
    %v1517 = vld [vmem:[%s1495 + $0xa8] sm:$0xff]
    %v1518 = vld [vmem:[%s1495 + $0xb0] sm:$0xff]
    %v1519 = vld [vmem:[%s1495 + $0xb8] sm:$0xff]
    %v1520 = vld [vmem:[%s1495 + $0xc0] sm:$0xff]
    %v1521 = vld [vmem:[%s1495 + $0xc8] sm:$0xff]
    %v1522 = vld [vmem:[%s1495 + $0xd0] sm:$0xff]
    %v1523 = vld [vmem:[%s1495 + $0xd8] sm:$0xff]
    %v1524 = vld [vmem:[%s1495 + $0xe0] sm:$0xff]
    %v1525 = vld [vmem:[%s1495 + $0xe8] sm:$0xff]
    %v1526 = vld [vmem:[%s1495 + $0xf0] sm:$0xff]
    %v1527 = vld [vmem:[%s1495 + $0xf8] sm:$0xff]
    %v1528 = vld [vmem:[%s1495 + $0x100] sm:$0xff]
    %v1529 = vld [vmem:[%s1495 + $0x108] sm:$0xff]
    %v1530 = vld [vmem:[%s1495 + $0x110] sm:$0xff]
    %v1531 = vld [vmem:[%s1495 + $0x118] sm:$0xff]
    %v1532 = vld [vmem:[%s1495 + $0x120] sm:$0xff]
    %v1533 = vld [vmem:[%s1495 + $0x128] sm:$0xff]
    %v1534 = vld [vmem:[%s1495 + $0x130] sm:$0xff]
    %v1535 = vld [vmem:[%s1495 + $0x138] sm:$0xff]
    %v1536 = vld [vmem:[%s1495 + $0x140] sm:$0xff]
    %v1537 = vld [vmem:[%s1495 + $0x148] sm:$0xff]
    %v1538 = vld [vmem:[%s1495 + $0x150] sm:$0xff]
    %v1539 = vld [vmem:[%s1495 + $0x158] sm:$0xff]
    %v1540 = vld [vmem:[%s1495 + $0x160] sm:$0xff]
    %v1541 = vld [vmem:[%s1495 + $0x168] sm:$0xff]
    %v1542 = vld [vmem:[%s1495 + $0x170] sm:$0xff]
    %v1543 = vld [vmem:[%s1495 + $0x178] sm:$0xff]
    %v1544 = vld [vmem:[%s1495 + $0x180] sm:$0xff]
    %v1545 = vld [vmem:[%s1495 + $0x188] sm:$0xff]
    %v1546 = vld [vmem:[%s1495 + $0x190] sm:$0xff]
    %v1547 = vld [vmem:[%s1495 + $0x198] sm:$0xff]
    %v1548 = vld [vmem:[%s1495 + $0x1a0] sm:$0xff]
    %v1549 = vld [vmem:[%s1495 + $0x1a8] sm:$0xff]
    %v1550 = vld [vmem:[%s1495 + $0x1b0] sm:$0xff]
    %v1551 = vld [vmem:[%s1495 + $0x1b8] sm:$0xff]
    %v1552 = vld [vmem:[%s1495 + $0x1c0] sm:$0xff]
    %v1553 = vld [vmem:[%s1495 + $0x1c8] sm:$0xff]
    %v1554 = vld [vmem:[%s1495 + $0x1d0] sm:$0xff]
    %v1555 = vld [vmem:[%s1495 + $0x1d8] sm:$0xff]
    %v1556 = vld [vmem:[%s1495 + $0x1e0] sm:$0xff]
    %v1557 = vld [vmem:[%s1495 + $0x1e8] sm:$0xff]
    %v1558 = vld [vmem:[%s1495 + $0x1f0] sm:$0xff]
    %v1559 = vld [vmem:[%s1495 + $0x1f8] sm:$0xff]
    %v1560 = vld [vmem:[%s1495 + $0x200] sm:$0xff]
    %v1561 = vld [vmem:[%s1495 + $0x208] sm:$0xff]
    %v1562 = vld [vmem:[%s1495 + $0x210] sm:$0xff]
    %v1563 = vld [vmem:[%s1495 + $0x218] sm:$0xff]
    %v1564 = vld [vmem:[%s1495 + $0x220] sm:$0xff]
    %v1565 = vld [vmem:[%s1495 + $0x228] sm:$0xff]
    %v1566 = vld [vmem:[%s1495 + $0x230] sm:$0xff]
    %v1567 = vld [vmem:[%s1495 + $0x238] sm:$0xff]
    %v1568 = vld [vmem:[%s1495 + $0x240] sm:$0xff]
    %v1569 = vld [vmem:[%s1495 + $0x248] sm:$0xff]
    %v1570 = vld [vmem:[%s1495 + $0x250] sm:$0xff]
    %v1571 = vld [vmem:[%s1495 + $0x258] sm:$0xff]
    %v1572 = vld [vmem:[%s1495 + $0x260] sm:$0xff]
    %v1573 = vld [vmem:[%s1495 + $0x268] sm:$0xff]
    %v1574 = vld [vmem:[%s1495 + $0x270] sm:$0xff]
    %v1575 = vld [vmem:[%s1495 + $0x278] sm:$0xff]
    %v1576 = vld [vmem:[%s1495 + $0x280] sm:$0xff]
    %v1577 = vld [vmem:[%s1495 + $0x288] sm:$0xff]
    %v1578 = vld [vmem:[%s1495 + $0x290] sm:$0xff]
    %v1579 = vld [vmem:[%s1495 + $0x298] sm:$0xff]
    %v1580 = vld [vmem:[%s1495 + $0x2a0] sm:$0xff]
    %v1581 = vld [vmem:[%s1495 + $0x2a8] sm:$0xff]
    %v1582 = vld [vmem:[%s1495 + $0x2b0] sm:$0xff]
    %v1583 = vld [vmem:[%s1495 + $0x2b8] sm:$0xff]
    %v1584 = vld [vmem:[%s1495 + $0x2c0] sm:$0xff]
    %v1585 = vld [vmem:[%s1495 + $0x2c8] sm:$0xff]
    %v1586 = vld [vmem:[%s1495 + $0x2d0] sm:$0xff]
    %v1587 = vld [vmem:[%s1495 + $0x2d8] sm:$0xff]
    %v1588 = vld [vmem:[%s1495 + $0x2e0] sm:$0xff]
    %v1589 = vld [vmem:[%s1495 + $0x2e8] sm:$0xff]
    %v1590 = vld [vmem:[%s1495 + $0x2f0] sm:$0xff]
    %v1591 = vld [vmem:[%s1495 + $0x2f8] sm:$0xff]
    %v1592 = vld [vmem:[%s1495 + $0x300] sm:$0xff]
    %v1593 = vld [vmem:[%s1495 + $0x308] sm:$0xff]
    %v1594 = vld [vmem:[%s1495 + $0x310] sm:$0xff]
    %v1595 = vld [vmem:[%s1495 + $0x318] sm:$0xff]
    %v1596 = vld [vmem:[%s1495 + $0x320] sm:$0xff]
    %v1597 = vld [vmem:[%s1495 + $0x328] sm:$0xff]
    %v1598 = vld [vmem:[%s1495 + $0x330] sm:$0xff]
    %v1599 = vld [vmem:[%s1495 + $0x338] sm:$0xff]
    %v1600 = vld [vmem:[%s1495 + $0x340] sm:$0xff]
    %v1601 = vld [vmem:[%s1495 + $0x348] sm:$0xff]
    %v1602 = vld [vmem:[%s1495 + $0x350] sm:$0xff]
    %v1603 = vld [vmem:[%s1495 + $0x358] sm:$0xff]
    %v1604 = vld [vmem:[%s1495 + $0x360] sm:$0xff]
    %v1605 = vld [vmem:[%s1495 + $0x368] sm:$0xff]
    %v1606 = vld [vmem:[%s1495 + $0x370] sm:$0xff]
    %v1607 = vld [vmem:[%s1495 + $0x378] sm:$0xff]
    %v1608 = vld [vmem:[%s1495 + $0x380] sm:$0xff]
    %v1609 = vld [vmem:[%s1495 + $0x388] sm:$0xff]
    %v1610 = vld [vmem:[%s1495 + $0x390] sm:$0xff]
    %v1611 = vld [vmem:[%s1495 + $0x398] sm:$0xff]
    %v1612 = vld [vmem:[%s1495 + $0x3a0] sm:$0xff]
    %v1613 = vld [vmem:[%s1495 + $0x3a8] sm:$0xff]
    %v1614 = vld [vmem:[%s1495 + $0x3b0] sm:$0xff]
    %v1615 = vld [vmem:[%s1495 + $0x3b8] sm:$0xff]
    %v1616 = vld [vmem:[%s1495 + $0x3c0] sm:$0xff]
    %v1617 = vld [vmem:[%s1495 + $0x3c8] sm:$0xff]
    %v1618 = vld [vmem:[%s1495 + $0x3d0] sm:$0xff]
    %v1619 = vld [vmem:[%s1495 + $0x3d8] sm:$0xff]
    %v1620 = vld [vmem:[%s1495 + $0x3e0] sm:$0xff]
    %v1621 = vld [vmem:[%s1495 + $0x3e8] sm:$0xff]
    %v1622 = vld [vmem:[%s1495 + $0x3f0] sm:$0xff]
    %v1623 = vld [vmem:[%s1495 + $0x3f8] sm:$0xff]
    %v1624 = vld [vmem:[%s1495 + $0x400] sm:$0xff]
    %v1625 = vld [vmem:[%s1495 + $0x408] sm:$0xff]
    %v1626 = vld [vmem:[%s1495 + $0x410] sm:$0xff]
    %v1627 = vld [vmem:[%s1495 + $0x418] sm:$0xff]
    %v1628 = vld [vmem:[%s1495 + $0x420] sm:$0xff]
    %v1629 = vld [vmem:[%s1495 + $0x428] sm:$0xff]
    %v1630 = vld [vmem:[%s1495 + $0x430] sm:$0xff]
    %v1631 = vld [vmem:[%s1495 + $0x438] sm:$0xff]
    %v1632 = vld [vmem:[%s1495 + $0x440] sm:$0xff]
    %v1633 = vld [vmem:[%s1495 + $0x448] sm:$0xff]
    %v1634 = vld [vmem:[%s1495 + $0x450] sm:$0xff]
    %v1635 = vld [vmem:[%s1495 + $0x458] sm:$0xff]
    %v1636 = vld [vmem:[%s1495 + $0x460] sm:$0xff]
    %v1637 = vld [vmem:[%s1495 + $0x468] sm:$0xff]
    %v1638 = vld [vmem:[%s1495 + $0x470] sm:$0xff]
    %v1639 = vld [vmem:[%s1495 + $0x478] sm:$0xff]
    %v1640 = vld [vmem:[%s1495 + $0x480] sm:$0xff]
    %v1641 = vld [vmem:[%s1495 + $0x488] sm:$0xff]
    %v1642 = vld [vmem:[%s1495 + $0x490] sm:$0xff]
    %v1643 = vld [vmem:[%s1495 + $0x498] sm:$0xff]
    %v1644 = vld [vmem:[%s1495 + $0x4a0] sm:$0xff]
    %v1645 = vld [vmem:[%s1495 + $0x4a8] sm:$0xff]
    %v1646 = vld [vmem:[%s1495 + $0x4b0] sm:$0xff]
    %v1647 = vld [vmem:[%s1495 + $0x4b8] sm:$0xff]
    %v1648 = vld [vmem:[%s1495 + $0x4c0] sm:$0xff]
    %v1649 = vld [vmem:[%s1495 + $0x4c8] sm:$0xff]
    %v1650 = vld [vmem:[%s1495 + $0x4d0] sm:$0xff]
    %v1651 = vld [vmem:[%s1495 + $0x4d8] sm:$0xff]
    %v1652 = vld [vmem:[%s1495 + $0x4e0] sm:$0xff]
    %v1653 = vld [vmem:[%s1495 + $0x4e8] sm:$0xff]
    %v1654 = vld [vmem:[%s1495 + $0x4f0] sm:$0xff]
    %v1655 = vld [vmem:[%s1495 + $0x4f8] sm:$0xff]
    %v1656 = vld [vmem:[%s1495 + $0x500] sm:$0xff]
    %v1657 = vld [vmem:[%s1495 + $0x508] sm:$0xff]
    %v1658 = vld [vmem:[%s1495 + $0x510] sm:$0xff]
    %v1659 = vld [vmem:[%s1495 + $0x518] sm:$0xff]
    %v1660 = vld [vmem:[%s1495 + $0x520] sm:$0xff]
    %v1661 = vld [vmem:[%s1495 + $0x528] sm:$0xff]
    %v1662 = vld [vmem:[%s1495 + $0x530] sm:$0xff]
    %v1663 = vld [vmem:[%s1495 + $0x538] sm:$0xff]
    %v1664 = vld [vmem:[%s1495 + $0x540] sm:$0xff]
    %v1665 = vld [vmem:[%s1495 + $0x548] sm:$0xff]
    %v1666 = vld [vmem:[%s1495 + $0x550] sm:$0xff]
    %v1667 = vld [vmem:[%s1495 + $0x558] sm:$0xff]
    %v1668 = vld [vmem:[%s1495 + $0x560] sm:$0xff]
    %v1669 = vld [vmem:[%s1495 + $0x568] sm:$0xff]
    %v1670 = vld [vmem:[%s1495 + $0x570] sm:$0xff]
    %v1671 = vld [vmem:[%s1495 + $0x578] sm:$0xff]
    %v1672 = vld [vmem:[%s1495 + $0x580] sm:$0xff]
    %v1673 = vld [vmem:[%s1495 + $0x588] sm:$0xff]
    %v1674 = vld [vmem:[%s1495 + $0x590] sm:$0xff]
    %v1675 = vld [vmem:[%s1495 + $0x598] sm:$0xff]
    %v1676 = vld [vmem:[%s1495 + $0x5a0] sm:$0xff]
    %v1677 = vld [vmem:[%s1495 + $0x5a8] sm:$0xff]
    %v1678 = vld [vmem:[%s1495 + $0x5b0] sm:$0xff]
    %v1679 = vld [vmem:[%s1495 + $0x5b8] sm:$0xff]
    %v1680 = vld [vmem:[%s1495 + $0x5c0] sm:$0xff]
    %v1681 = vld [vmem:[%s1495 + $0x5c8] sm:$0xff]
    %v1682 = vld [vmem:[%s1495 + $0x5d0] sm:$0xff]
    %v1683 = vld [vmem:[%s1495 + $0x5d8] sm:$0xff]
    %v1684 = vld [vmem:[%s1495 + $0x5e0] sm:$0xff]
    %v1685 = vld [vmem:[%s1495 + $0x5e8] sm:$0xff]
    %v1686 = vld [vmem:[%s1495 + $0x5f0] sm:$0xff]
    %v1687 = vld [vmem:[%s1495 + $0x5f8] sm:$0xff]
    %v1688 = vld [vmem:[%s1495 + $0x600] sm:$0xff]
    %v1689 = vld [vmem:[%s1495 + $0x608] sm:$0xff]
    %v1690 = vld [vmem:[%s1495 + $0x610] sm:$0xff]
    %v1691 = vld [vmem:[%s1495 + $0x618] sm:$0xff]
    %v1692 = vld [vmem:[%s1495 + $0x620] sm:$0xff]
    %v1693 = vld [vmem:[%s1495 + $0x628] sm:$0xff]
    %v1694 = vld [vmem:[%s1495 + $0x630] sm:$0xff]
    %v1695 = vld [vmem:[%s1495 + $0x638] sm:$0xff]
    %v1696 = vld [vmem:[%s1495 + $0x640] sm:$0xff]
    %v1697 = vld [vmem:[%s1495 + $0x648] sm:$0xff]
    %v1698 = vld [vmem:[%s1495 + $0x650] sm:$0xff]
    %v1699 = vld [vmem:[%s1495 + $0x658] sm:$0xff]
    %v1700 = vld [vmem:[%s1495 + $0x660] sm:$0xff]
    %v1701 = vld [vmem:[%s1495 + $0x668] sm:$0xff]
    %v1702 = vld [vmem:[%s1495 + $0x670] sm:$0xff]
    %v1703 = vld [vmem:[%s1495 + $0x678] sm:$0xff]
    %v1704 = vld [vmem:[%s1495 + $0x680] sm:$0xff]
    %v1705 = vld [vmem:[%s1495 + $0x688] sm:$0xff]
    %v1706 = vld [vmem:[%s1495 + $0x690] sm:$0xff]
    %v1707 = vld [vmem:[%s1495 + $0x698] sm:$0xff]
    %v1708 = vld [vmem:[%s1495 + $0x6a0] sm:$0xff]
    %v1709 = vld [vmem:[%s1495 + $0x6a8] sm:$0xff]
    %v1710 = vld [vmem:[%s1495 + $0x6b0] sm:$0xff]
    %v1711 = vld [vmem:[%s1495 + $0x6b8] sm:$0xff]
    %v1712 = vld [vmem:[%s1495 + $0x6c0] sm:$0xff]
    %v1713 = vld [vmem:[%s1495 + $0x6c8] sm:$0xff]
    %v1714 = vld [vmem:[%s1495 + $0x6d0] sm:$0xff]
    %v1715 = vld [vmem:[%s1495 + $0x6d8] sm:$0xff]
    %v1716 = vld [vmem:[%s1495 + $0x6e0] sm:$0xff]
    %v1717 = vld [vmem:[%s1495 + $0x6e8] sm:$0xff]
    %v1718 = vld [vmem:[%s1495 + $0x6f0] sm:$0xff]
    %v1719 = vld [vmem:[%s1495 + $0x6f8] sm:$0xff]
    %v1720 = vld [vmem:[%s1495 + $0x700] sm:$0xff]
    %v1721 = vld [vmem:[%s1495 + $0x708] sm:$0xff]
    %v1722 = vld [vmem:[%s1495 + $0x710] sm:$0xff]
    %v1723 = vld [vmem:[%s1495 + $0x718] sm:$0xff]
    %v1724 = vld [vmem:[%s1495 + $0x720] sm:$0xff]
    %v1725 = vld [vmem:[%s1495 + $0x728] sm:$0xff]
    %v1726 = vld [vmem:[%s1495 + $0x730] sm:$0xff]
    %v1727 = vld [vmem:[%s1495 + $0x738] sm:$0xff]
    %v1728 = vld [vmem:[%s1495 + $0x740] sm:$0xff]
    %v1729 = vld [vmem:[%s1495 + $0x748] sm:$0xff]
    %v1730 = vld [vmem:[%s1495 + $0x750] sm:$0xff]
    %v1731 = vld [vmem:[%s1495 + $0x758] sm:$0xff]
    %v1732 = vld [vmem:[%s1495 + $0x760] sm:$0xff]
    %v1733 = vld [vmem:[%s1495 + $0x768] sm:$0xff]
    %v1734 = vld [vmem:[%s1495 + $0x770] sm:$0xff]
    %v1735 = vld [vmem:[%s1495 + $0x778] sm:$0xff]
    %v1736 = vld [vmem:[%s1495 + $0x780] sm:$0xff]
    %v1737 = vld [vmem:[%s1495 + $0x788] sm:$0xff]
    %v1738 = vld [vmem:[%s1495 + $0x790] sm:$0xff]
    %v1739 = vld [vmem:[%s1495 + $0x798] sm:$0xff]
    %v1740 = vld [vmem:[%s1495 + $0x7a0] sm:$0xff]
    %v1741 = vld [vmem:[%s1495 + $0x7a8] sm:$0xff]
    %v1742 = vld [vmem:[%s1495 + $0x7b0] sm:$0xff]
    %v1743 = vld [vmem:[%s1495 + $0x7b8] sm:$0xff]
    %v1744 = vld [vmem:[%s1495 + $0x7c0] sm:$0xff]
    %v1745 = vld [vmem:[%s1495 + $0x7c8] sm:$0xff]
    %v1746 = vld [vmem:[%s1495 + $0x7d0] sm:$0xff]
    %v1747 = vld [vmem:[%s1495 + $0x7d8] sm:$0xff]
    %v1748 = vld [vmem:[%s1495 + $0x7e0] sm:$0xff]
    %v1749 = vld [vmem:[%s1495 + $0x7e8] sm:$0xff]
    %v1750 = vld [vmem:[%s1495 + $0x7f0] sm:$0xff]
    %v1751 = vld [vmem:[%s1495 + $0x7f8] sm:$0xff]
    %s1752 = scalar_lea.vmem [#allocation7], 8
    %v1753 = vld [vmem:[%s1752] sm:$0xf]
    %v1755 = vlaneseq
    %v1756 = vshrl.u32 %v1755, 7
    %v1757 = vsub.s32 0, %v1756
    %v1758 = vrot.slane %v1753, %v1757
    %v1759 = vlaneseq
    %v1760 = vshrl.u32 %v1759, 7
    %v1761 = vsub.s32 1, %v1760
    %v1762 = vrot.slane %v1753, %v1761
    %v1763 = vlaneseq
    %v1764 = vshrl.u32 %v1763, 7
    %v1765 = vsub.s32 2, %v1764
    %v1766 = vrot.slane %v1753, %v1765
    %v1767 = vlaneseq
    %v1768 = vshrl.u32 %v1767, 7
    %v1769 = vsub.s32 3, %v1768
    %v1770 = vrot.slane %v1753, %v1769
    %1775 = vmatprep.subr.mxu0 %v1497
    %1776 = vmatpush1.msra.mxu0 %v1496
    %1777 = vmatprep.subr.mxu0 %v1501
    %1778 = vmatpush1.msra.mxu0 %v1500
    %1779 = vmatprep.subr.mxu0 %v1505
    %1780 = vmatpush1.msra.mxu0 %v1504
    %1781 = vmatprep.subr.mxu0 %v1509
    %1782 = vmatpush1.msra.mxu0 %v1508
    %1783 = vmatprep.subr.mxu0 %v1513
    %1784 = vmatpush1.msra.mxu0 %v1512
    %1785 = vmatprep.subr.mxu0 %v1517
    %1786 = vmatpush1.msra.mxu0 %v1516
    %1787 = vmatprep.subr.mxu0 %v1521
    %1788 = vmatpush1.msra.mxu0 %v1520
    %1789 = vmatprep.subr.mxu0 %v1525
    %1790 = vmatpush1.msra.mxu0 %v1524
    %1791 = vmatprep.subr.mxu0 %v1529
    %1792 = vmatpush1.msra.mxu0 %v1528
    %1793 = vmatprep.subr.mxu0 %v1533
    %1794 = vmatpush1.msra.mxu0 %v1532
    %1795 = vmatprep.subr.mxu0 %v1537
    %1796 = vmatpush1.msra.mxu0 %v1536
    %1797 = vmatprep.subr.mxu0 %v1541
    %1798 = vmatpush1.msra.mxu0 %v1540
    %1799 = vmatprep.subr.mxu0 %v1545
    %1800 = vmatpush1.msra.mxu0 %v1544
    %1801 = vmatprep.subr.mxu0 %v1549
    %1802 = vmatpush1.msra.mxu0 %v1548
    %1803 = vmatprep.subr.mxu0 %v1553
    %1804 = vmatpush1.msra.mxu0 %v1552
    %1805 = vmatprep.subr.mxu0 %v1557
    %1806 = vmatpush1.msra.mxu0 %v1556
    %1807 = vmatprep.subr.mxu0 %v1561
    %1808 = vmatpush1.msra.mxu0 %v1560
    %1809 = vmatprep.subr.mxu0 %v1565
    %1810 = vmatpush1.msra.mxu0 %v1564
    %1811 = vmatprep.subr.mxu0 %v1569
    %1812 = vmatpush1.msra.mxu0 %v1568
    %1813 = vmatprep.subr.mxu0 %v1573
    %1814 = vmatpush1.msra.mxu0 %v1572
    %1815 = vmatprep.subr.mxu0 %v1577
    %1816 = vmatpush1.msra.mxu0 %v1576
    %1817 = vmatprep.subr.mxu0 %v1581
    %1818 = vmatpush1.msra.mxu0 %v1580
    %1819 = vmatprep.subr.mxu0 %v1585
    %1820 = vmatpush1.msra.mxu0 %v1584
    %1821 = vmatprep.subr.mxu0 %v1589
    %1822 = vmatpush1.msra.mxu0 %v1588
    %1823 = vmatprep.subr.mxu0 %v1593
    %1824 = vmatpush1.msra.mxu0 %v1592
    %1825 = vmatprep.subr.mxu0 %v1597
    %1826 = vmatpush1.msra.mxu0 %v1596
    %1827 = vmatprep.subr.mxu0 %v1601
    %1828 = vmatpush1.msra.mxu0 %v1600
    %1829 = vmatprep.subr.mxu0 %v1605
    %1830 = vmatpush1.msra.mxu0 %v1604
    %1831 = vmatprep.subr.mxu0 %v1609
    %1832 = vmatpush1.msra.mxu0 %v1608
    %1833 = vmatprep.subr.mxu0 %v1613
    %1834 = vmatpush1.msra.mxu0 %v1612
    %1835 = vmatprep.subr.mxu0 %v1617
    %1836 = vmatpush1.msra.mxu0 %v1616
    %1837 = vmatprep.subr.mxu0 %v1621
    %1838 = vmatpush1.msra.mxu0 %v1620
    %1839 = vmatprep.mubr.f32.mxu0 %v1492
    %1840 = vmatmul.mubr.f32.gmra.mrb[0].mxu0 %v1491
    %v1841 = vpop.f32.mrb[0].mxu0
    %v1842 = vadd.f32 %v1758, %v1841
    %v1843 = vpop.f32.mrb[0].mxu0
    %v1844 = vadd.f32 %v1762, %v1843
    %1845 = vdwg.mxu0
    %1846 = vmatprep.subr.mxu0 %v1625
    %1847 = vmatpush1.msra.mxu0 %v1624
    %1848 = vmatprep.subr.mxu0 %v1629
    %1849 = vmatpush1.msra.mxu0 %v1628
    %1850 = vmatprep.subr.mxu0 %v1633
    %1851 = vmatpush1.msra.mxu0 %v1632
    %1852 = vmatprep.subr.mxu0 %v1637
    %1853 = vmatpush1.msra.mxu0 %v1636
    %1854 = vmatprep.subr.mxu0 %v1641
    %1855 = vmatpush1.msra.mxu0 %v1640
    %1856 = vmatprep.subr.mxu0 %v1645
    %1857 = vmatpush1.msra.mxu0 %v1644
    %1858 = vmatprep.subr.mxu0 %v1649
    %1859 = vmatpush1.msra.mxu0 %v1648
    %1860 = vmatprep.subr.mxu0 %v1653
    %1861 = vmatpush1.msra.mxu0 %v1652
    %1862 = vmatprep.subr.mxu0 %v1657
    %1863 = vmatpush1.msra.mxu0 %v1656
    %1864 = vmatprep.subr.mxu0 %v1661
    %1865 = vmatpush1.msra.mxu0 %v1660
    %1866 = vmatprep.subr.mxu0 %v1665
    %1867 = vmatpush1.msra.mxu0 %v1664
    %1868 = vmatprep.subr.mxu0 %v1669
    %1869 = vmatpush1.msra.mxu0 %v1668
    %1870 = vmatprep.subr.mxu0 %v1673
    %1871 = vmatpush1.msra.mxu0 %v1672
    %1872 = vmatprep.subr.mxu0 %v1677
    %1873 = vmatpush1.msra.mxu0 %v1676
    %1874 = vmatprep.subr.mxu0 %v1681
    %1875 = vmatpush1.msra.mxu0 %v1680
    %1876 = vmatprep.subr.mxu0 %v1685
    %1877 = vmatpush1.msra.mxu0 %v1684
    %1878 = vmatprep.subr.mxu0 %v1689
    %1879 = vmatpush1.msra.mxu0 %v1688
    %1880 = vmatprep.subr.mxu0 %v1693
    %1881 = vmatpush1.msra.mxu0 %v1692
    %1882 = vmatprep.subr.mxu0 %v1697
    %1883 = vmatpush1.msra.mxu0 %v1696
    %1884 = vmatprep.subr.mxu0 %v1701
    %1885 = vmatpush1.msra.mxu0 %v1700
    %1886 = vmatprep.subr.mxu0 %v1705
    %1887 = vmatpush1.msra.mxu0 %v1704
    %1888 = vmatprep.subr.mxu0 %v1709
    %1889 = vmatpush1.msra.mxu0 %v1708
    %1890 = vmatprep.subr.mxu0 %v1713
    %1891 = vmatpush1.msra.mxu0 %v1712
    %1892 = vmatprep.subr.mxu0 %v1717
    %1893 = vmatpush1.msra.mxu0 %v1716
    %1894 = vmatprep.subr.mxu0 %v1721
    %1895 = vmatpush1.msra.mxu0 %v1720
    %1896 = vmatprep.subr.mxu0 %v1725
    %1897 = vmatpush1.msra.mxu0 %v1724
    %1898 = vmatprep.subr.mxu0 %v1729
    %1899 = vmatpush1.msra.mxu0 %v1728
    %1900 = vmatprep.subr.mxu0 %v1733
    %1901 = vmatpush1.msra.mxu0 %v1732
    %1902 = vmatprep.subr.mxu0 %v1737
    %1903 = vmatpush1.msra.mxu0 %v1736
    %1904 = vmatprep.subr.mxu0 %v1741
    %1905 = vmatpush1.msra.mxu0 %v1740
    %1906 = vmatprep.subr.mxu0 %v1745
    %1907 = vmatpush1.msra.mxu0 %v1744
    %1908 = vmatprep.subr.mxu0 %v1749
    %1909 = vmatpush1.msra.mxu0 %v1748
    %1910 = vmatprep.mubr.f32.mxu0 %v1494
    %1911 = vmatmul.mubr.f32.gmra.mrb[0].mxu0 %v1493
    %v1912 = vpop.f32.mrb[0].mxu0
    %v1913 = vadd.f32 %v1842, %v1912
    %v1914 = vpop.f32.mrb[0].mxu0
    %v1915 = vadd.f32 %v1844, %v1914
    %1916 = vdwg.mxu0
    %1917 = vmatprep.subr.mxu0 %v1499
    %1918 = vmatpush1.msra.mxu0 %v1498
    %1919 = vmatprep.subr.mxu0 %v1503
    %1920 = vmatpush1.msra.mxu0 %v1502
    %1921 = vmatprep.subr.mxu0 %v1507
    %1922 = vmatpush1.msra.mxu0 %v1506
    %1923 = vmatprep.subr.mxu0 %v1511
    %1924 = vmatpush1.msra.mxu0 %v1510
    %1925 = vmatprep.subr.mxu0 %v1515
    %1926 = vmatpush1.msra.mxu0 %v1514
    %1927 = vmatprep.subr.mxu0 %v1519
    %1928 = vmatpush1.msra.mxu0 %v1518
    %1929 = vmatprep.subr.mxu0 %v1523
    %1930 = vmatpush1.msra.mxu0 %v1522
    %1931 = vmatprep.subr.mxu0 %v1527
    %1932 = vmatpush1.msra.mxu0 %v1526
    %1933 = vmatprep.subr.mxu0 %v1531
    %1934 = vmatpush1.msra.mxu0 %v1530
    %1935 = vmatprep.subr.mxu0 %v1535
    %1936 = vmatpush1.msra.mxu0 %v1534
    %1937 = vmatprep.subr.mxu0 %v1539
    %1938 = vmatpush1.msra.mxu0 %v1538
    %1939 = vmatprep.subr.mxu0 %v1543
    %1940 = vmatpush1.msra.mxu0 %v1542
    %1941 = vmatprep.subr.mxu0 %v1547
    %1942 = vmatpush1.msra.mxu0 %v1546
    %1943 = vmatprep.subr.mxu0 %v1551
    %1944 = vmatpush1.msra.mxu0 %v1550
    %1945 = vmatprep.subr.mxu0 %v1555
    %1946 = vmatpush1.msra.mxu0 %v1554
    %1947 = vmatprep.subr.mxu0 %v1559
    %1948 = vmatpush1.msra.mxu0 %v1558
    %1949 = vmatprep.subr.mxu0 %v1563
    %1950 = vmatpush1.msra.mxu0 %v1562
    %1951 = vmatprep.subr.mxu0 %v1567
    %1952 = vmatpush1.msra.mxu0 %v1566
    %1953 = vmatprep.subr.mxu0 %v1571
    %1954 = vmatpush1.msra.mxu0 %v1570
    %1955 = vmatprep.subr.mxu0 %v1575
    %1956 = vmatpush1.msra.mxu0 %v1574
    %1957 = vmatprep.subr.mxu0 %v1579
    %1958 = vmatpush1.msra.mxu0 %v1578
    %1959 = vmatprep.subr.mxu0 %v1583
    %1960 = vmatpush1.msra.mxu0 %v1582
    %1961 = vmatprep.subr.mxu0 %v1587
    %1962 = vmatpush1.msra.mxu0 %v1586
    %1963 = vmatprep.subr.mxu0 %v1591
    %1964 = vmatpush1.msra.mxu0 %v1590
    %1965 = vmatprep.subr.mxu0 %v1595
    %1966 = vmatpush1.msra.mxu0 %v1594
    %1967 = vmatprep.subr.mxu0 %v1599
    %1968 = vmatpush1.msra.mxu0 %v1598
    %1969 = vmatprep.subr.mxu0 %v1603
    %1970 = vmatpush1.msra.mxu0 %v1602
    %1971 = vmatprep.subr.mxu0 %v1607
    %1972 = vmatpush1.msra.mxu0 %v1606
    %1973 = vmatprep.subr.mxu0 %v1611
    %1974 = vmatpush1.msra.mxu0 %v1610
    %1975 = vmatprep.subr.mxu0 %v1615
    %1976 = vmatpush1.msra.mxu0 %v1614
    %1977 = vmatprep.subr.mxu0 %v1619
    %1978 = vmatpush1.msra.mxu0 %v1618
    %1979 = vmatprep.subr.mxu0 %v1623
    %1980 = vmatpush1.msra.mxu0 %v1622
    %1981 = vmatprep.mubr.f32.mxu0 %v1492
    %1982 = vmatmul.mubr.f32.gmra.mrb[0].mxu0 %v1491
    %v1983 = vpop.f32.mrb[0].mxu0
    %v1984 = vadd.f32 %v1766, %v1983
    %v1985 = vpop.f32.mrb[0].mxu0
    %v1986 = vadd.f32 %v1770, %v1985
    %1987 = vdwg.mxu0
    %1988 = vmatprep.subr.mxu0 %v1627
    %1989 = vmatpush1.msra.mxu0 %v1626
    %1990 = vmatprep.subr.mxu0 %v1631
    %1991 = vmatpush1.msra.mxu0 %v1630
    %1992 = vmatprep.subr.mxu0 %v1635
    %1993 = vmatpush1.msra.mxu0 %v1634
    %1994 = vmatprep.subr.mxu0 %v1639
    %1995 = vmatpush1.msra.mxu0 %v1638
    %1996 = vmatprep.subr.mxu0 %v1643
    %1997 = vmatpush1.msra.mxu0 %v1642
    %1998 = vmatprep.subr.mxu0 %v1647
    %1999 = vmatpush1.msra.mxu0 %v1646
    %2000 = vmatprep.subr.mxu0 %v1651
    %2001 = vmatpush1.msra.mxu0 %v1650
    %2002 = vmatprep.subr.mxu0 %v1655
    %2003 = vmatpush1.msra.mxu0 %v1654
    %2004 = vmatprep.subr.mxu0 %v1659
    %2005 = vmatpush1.msra.mxu0 %v1658
    %2006 = vmatprep.subr.mxu0 %v1663
    %2007 = vmatpush1.msra.mxu0 %v1662
    %2008 = vmatprep.subr.mxu0 %v1667
    %2009 = vmatpush1.msra.mxu0 %v1666
    %2010 = vmatprep.subr.mxu0 %v1671
    %2011 = vmatpush1.msra.mxu0 %v1670
    %2012 = vmatprep.subr.mxu0 %v1675
    %2013 = vmatpush1.msra.mxu0 %v1674
    %2014 = vmatprep.subr.mxu0 %v1679
    %2015 = vmatpush1.msra.mxu0 %v1678
    %2016 = vmatprep.subr.mxu0 %v1683
    %2017 = vmatpush1.msra.mxu0 %v1682
    %2018 = vmatprep.subr.mxu0 %v1687
    %2019 = vmatpush1.msra.mxu0 %v1686
    %2020 = vmatprep.subr.mxu0 %v1691
    %2021 = vmatpush1.msra.mxu0 %v1690
    %2022 = vmatprep.subr.mxu0 %v1695
    %2023 = vmatpush1.msra.mxu0 %v1694
    %2024 = vmatprep.subr.mxu0 %v1699
    %2025 = vmatpush1.msra.mxu0 %v1698
    %2026 = vmatprep.subr.mxu0 %v1703
    %2027 = vmatpush1.msra.mxu0 %v1702
    %2028 = vmatprep.subr.mxu0 %v1707
    %2029 = vmatpush1.msra.mxu0 %v1706
    %2030 = vmatprep.subr.mxu0 %v1711
    %2031 = vmatpush1.msra.mxu0 %v1710
    %2032 = vmatprep.subr.mxu0 %v1715
    %2033 = vmatpush1.msra.mxu0 %v1714
    %2034 = vmatprep.subr.mxu0 %v1719
    %2035 = vmatpush1.msra.mxu0 %v1718
    %2036 = vmatprep.subr.mxu0 %v1723
    %2037 = vmatpush1.msra.mxu0 %v1722
    %2038 = vmatprep.subr.mxu0 %v1727
    %2039 = vmatpush1.msra.mxu0 %v1726
    %2040 = vmatprep.subr.mxu0 %v1731
    %2041 = vmatpush1.msra.mxu0 %v1730
    %2042 = vmatprep.subr.mxu0 %v1735
    %2043 = vmatpush1.msra.mxu0 %v1734
    %2044 = vmatprep.subr.mxu0 %v1739
    %2045 = vmatpush1.msra.mxu0 %v1738
    %2046 = vmatprep.subr.mxu0 %v1743
    %2047 = vmatpush1.msra.mxu0 %v1742
    %2048 = vmatprep.subr.mxu0 %v1747
    %2049 = vmatpush1.msra.mxu0 %v1746
    %2050 = vmatprep.subr.mxu0 %v1751
    %2051 = vmatpush1.msra.mxu0 %v1750
    %2052 = vmatprep.mubr.f32.mxu0 %v1494
    %2053 = vmatmul.mubr.f32.gmra.mrb[0].mxu0 %v1493
    %v2054 = vpop.f32.mrb[0].mxu0
    %v2055 = vadd.f32 %v1984, %v2054
    %v2056 = vpop.f32.mrb[0].mxu0
    %v2057 = vadd.f32 %v1986, %v2056
    %2058 = vdwg.mxu0
    %v2059 = vmax.f32 %v1913, 0.0
    %v2060 = vmax.f32 %v1915, 0.0
    %v2061 = vmax.f32 %v2055, 0.0
    %v2062 = vmax.f32 %v2057, 0.0
    %s2063 = scalar_lea.vmem [#allocation6], 6144
    %v2064 = vld [vmem:[%s2063] sm:$0xff]
    %v2065 = vld [vmem:[%s2063 + $0x8] sm:$0xff]
    %v2066 = vld [vmem:[%s2063 + $0x10] sm:$0xff]
    %v2067 = vld [vmem:[%s2063 + $0x18] sm:$0xff]
    %v2068 = vld [vmem:[%s2063 + $0x20] sm:$0xff]
    %v2069 = vld [vmem:[%s2063 + $0x28] sm:$0xff]
    %v2070 = vld [vmem:[%s2063 + $0x30] sm:$0xff]
    %v2071 = vld [vmem:[%s2063 + $0x38] sm:$0xff]
    %v2072 = vld [vmem:[%s2063 + $0x40] sm:$0xff]
    %v2073 = vld [vmem:[%s2063 + $0x48] sm:$0xff]
    %v2074 = vld [vmem:[%s2063 + $0x50] sm:$0xff]
    %v2075 = vld [vmem:[%s2063 + $0x58] sm:$0xff]
    %v2076 = vld [vmem:[%s2063 + $0x60] sm:$0xff]
    %v2077 = vld [vmem:[%s2063 + $0x68] sm:$0xff]
    %v2078 = vld [vmem:[%s2063 + $0x70] sm:$0xff]
    %v2079 = vld [vmem:[%s2063 + $0x78] sm:$0xff]
    %v2080 = vld [vmem:[%s2063 + $0x80] sm:$0xff]
    %v2081 = vld [vmem:[%s2063 + $0x88] sm:$0xff]
    %v2082 = vld [vmem:[%s2063 + $0x90] sm:$0xff]
    %v2083 = vld [vmem:[%s2063 + $0x98] sm:$0xff]
    %v2084 = vld [vmem:[%s2063 + $0xa0] sm:$0xff]
    %v2085 = vld [vmem:[%s2063 + $0xa8] sm:$0xff]
    %v2086 = vld [vmem:[%s2063 + $0xb0] sm:$0xff]
    %v2087 = vld [vmem:[%s2063 + $0xb8] sm:$0xff]
    %v2088 = vld [vmem:[%s2063 + $0xc0] sm:$0xff]
    %v2089 = vld [vmem:[%s2063 + $0xc8] sm:$0xff]
    %v2090 = vld [vmem:[%s2063 + $0xd0] sm:$0xff]
    %v2091 = vld [vmem:[%s2063 + $0xd8] sm:$0xff]
    %v2092 = vld [vmem:[%s2063 + $0xe0] sm:$0xff]
    %v2093 = vld [vmem:[%s2063 + $0xe8] sm:$0xff]
    %v2094 = vld [vmem:[%s2063 + $0xf0] sm:$0xff]
    %v2095 = vld [vmem:[%s2063 + $0xf8] sm:$0xff]
    %v2096 = vld [vmem:[%s2063 + $0x100] sm:$0xff]
    %v2097 = vld [vmem:[%s2063 + $0x108] sm:$0xff]
    %v2098 = vld [vmem:[%s2063 + $0x110] sm:$0xff]
    %v2099 = vld [vmem:[%s2063 + $0x118] sm:$0xff]
    %v2100 = vld [vmem:[%s2063 + $0x120] sm:$0xff]
    %v2101 = vld [vmem:[%s2063 + $0x128] sm:$0xff]
    %v2102 = vld [vmem:[%s2063 + $0x130] sm:$0xff]
    %v2103 = vld [vmem:[%s2063 + $0x138] sm:$0xff]
    %v2104 = vld [vmem:[%s2063 + $0x140] sm:$0xff]
    %v2105 = vld [vmem:[%s2063 + $0x148] sm:$0xff]
    %v2106 = vld [vmem:[%s2063 + $0x150] sm:$0xff]
    %v2107 = vld [vmem:[%s2063 + $0x158] sm:$0xff]
    %v2108 = vld [vmem:[%s2063 + $0x160] sm:$0xff]
    %v2109 = vld [vmem:[%s2063 + $0x168] sm:$0xff]
    %v2110 = vld [vmem:[%s2063 + $0x170] sm:$0xff]
    %v2111 = vld [vmem:[%s2063 + $0x178] sm:$0xff]
    %v2112 = vld [vmem:[%s2063 + $0x180] sm:$0xff]
    %v2113 = vld [vmem:[%s2063 + $0x188] sm:$0xff]
    %v2114 = vld [vmem:[%s2063 + $0x190] sm:$0xff]
    %v2115 = vld [vmem:[%s2063 + $0x198] sm:$0xff]
    %v2116 = vld [vmem:[%s2063 + $0x1a0] sm:$0xff]
    %v2117 = vld [vmem:[%s2063 + $0x1a8] sm:$0xff]
    %v2118 = vld [vmem:[%s2063 + $0x1b0] sm:$0xff]
    %v2119 = vld [vmem:[%s2063 + $0x1b8] sm:$0xff]
    %v2120 = vld [vmem:[%s2063 + $0x1c0] sm:$0xff]
    %v2121 = vld [vmem:[%s2063 + $0x1c8] sm:$0xff]
    %v2122 = vld [vmem:[%s2063 + $0x1d0] sm:$0xff]
    %v2123 = vld [vmem:[%s2063 + $0x1d8] sm:$0xff]
    %v2124 = vld [vmem:[%s2063 + $0x1e0] sm:$0xff]
    %v2125 = vld [vmem:[%s2063 + $0x1e8] sm:$0xff]
    %v2126 = vld [vmem:[%s2063 + $0x1f0] sm:$0xff]
    %v2127 = vld [vmem:[%s2063 + $0x1f8] sm:$0xff]
    %v2128 = vld [vmem:[%s2063 + $0x200] sm:$0xff]
    %v2129 = vld [vmem:[%s2063 + $0x208] sm:$0xff]
    %v2130 = vld [vmem:[%s2063 + $0x210] sm:$0xff]
    %v2131 = vld [vmem:[%s2063 + $0x218] sm:$0xff]
    %v2132 = vld [vmem:[%s2063 + $0x220] sm:$0xff]
    %v2133 = vld [vmem:[%s2063 + $0x228] sm:$0xff]
    %v2134 = vld [vmem:[%s2063 + $0x230] sm:$0xff]
    %v2135 = vld [vmem:[%s2063 + $0x238] sm:$0xff]
    %v2136 = vld [vmem:[%s2063 + $0x240] sm:$0xff]
    %v2137 = vld [vmem:[%s2063 + $0x248] sm:$0xff]
    %v2138 = vld [vmem:[%s2063 + $0x250] sm:$0xff]
    %v2139 = vld [vmem:[%s2063 + $0x258] sm:$0xff]
    %v2140 = vld [vmem:[%s2063 + $0x260] sm:$0xff]
    %v2141 = vld [vmem:[%s2063 + $0x268] sm:$0xff]
    %v2142 = vld [vmem:[%s2063 + $0x270] sm:$0xff]
    %v2143 = vld [vmem:[%s2063 + $0x278] sm:$0xff]
    %v2144 = vld [vmem:[%s2063 + $0x280] sm:$0xff]
    %v2145 = vld [vmem:[%s2063 + $0x288] sm:$0xff]
    %v2146 = vld [vmem:[%s2063 + $0x290] sm:$0xff]
    %v2147 = vld [vmem:[%s2063 + $0x298] sm:$0xff]
    %v2148 = vld [vmem:[%s2063 + $0x2a0] sm:$0xff]
    %v2149 = vld [vmem:[%s2063 + $0x2a8] sm:$0xff]
    %v2150 = vld [vmem:[%s2063 + $0x2b0] sm:$0xff]
    %v2151 = vld [vmem:[%s2063 + $0x2b8] sm:$0xff]
    %v2152 = vld [vmem:[%s2063 + $0x2c0] sm:$0xff]
    %v2153 = vld [vmem:[%s2063 + $0x2c8] sm:$0xff]
    %v2154 = vld [vmem:[%s2063 + $0x2d0] sm:$0xff]
    %v2155 = vld [vmem:[%s2063 + $0x2d8] sm:$0xff]
    %v2156 = vld [vmem:[%s2063 + $0x2e0] sm:$0xff]
    %v2157 = vld [vmem:[%s2063 + $0x2e8] sm:$0xff]
    %v2158 = vld [vmem:[%s2063 + $0x2f0] sm:$0xff]
    %v2159 = vld [vmem:[%s2063 + $0x2f8] sm:$0xff]
    %v2160 = vld [vmem:[%s2063 + $0x300] sm:$0xff]
    %v2161 = vld [vmem:[%s2063 + $0x308] sm:$0xff]
    %v2162 = vld [vmem:[%s2063 + $0x310] sm:$0xff]
    %v2163 = vld [vmem:[%s2063 + $0x318] sm:$0xff]
    %v2164 = vld [vmem:[%s2063 + $0x320] sm:$0xff]
    %v2165 = vld [vmem:[%s2063 + $0x328] sm:$0xff]
    %v2166 = vld [vmem:[%s2063 + $0x330] sm:$0xff]
    %v2167 = vld [vmem:[%s2063 + $0x338] sm:$0xff]
    %v2168 = vld [vmem:[%s2063 + $0x340] sm:$0xff]
    %v2169 = vld [vmem:[%s2063 + $0x348] sm:$0xff]
    %v2170 = vld [vmem:[%s2063 + $0x350] sm:$0xff]
    %v2171 = vld [vmem:[%s2063 + $0x358] sm:$0xff]
    %v2172 = vld [vmem:[%s2063 + $0x360] sm:$0xff]
    %v2173 = vld [vmem:[%s2063 + $0x368] sm:$0xff]
    %v2174 = vld [vmem:[%s2063 + $0x370] sm:$0xff]
    %v2175 = vld [vmem:[%s2063 + $0x378] sm:$0xff]
    %v2176 = vld [vmem:[%s2063 + $0x380] sm:$0xff]
    %v2177 = vld [vmem:[%s2063 + $0x388] sm:$0xff]
    %v2178 = vld [vmem:[%s2063 + $0x390] sm:$0xff]
    %v2179 = vld [vmem:[%s2063 + $0x398] sm:$0xff]
    %v2180 = vld [vmem:[%s2063 + $0x3a0] sm:$0xff]
    %v2181 = vld [vmem:[%s2063 + $0x3a8] sm:$0xff]
    %v2182 = vld [vmem:[%s2063 + $0x3b0] sm:$0xff]
    %v2183 = vld [vmem:[%s2063 + $0x3b8] sm:$0xff]
    %v2184 = vld [vmem:[%s2063 + $0x3c0] sm:$0xff]
    %v2185 = vld [vmem:[%s2063 + $0x3c8] sm:$0xff]
    %v2186 = vld [vmem:[%s2063 + $0x3d0] sm:$0xff]
    %v2187 = vld [vmem:[%s2063 + $0x3d8] sm:$0xff]
    %v2188 = vld [vmem:[%s2063 + $0x3e0] sm:$0xff]
    %v2189 = vld [vmem:[%s2063 + $0x3e8] sm:$0xff]
    %v2190 = vld [vmem:[%s2063 + $0x3f0] sm:$0xff]
    %v2191 = vld [vmem:[%s2063 + $0x3f8] sm:$0xff]
    %v2192 = vld [vmem:[%s2063 + $0x400] sm:$0xff]
    %v2193 = vld [vmem:[%s2063 + $0x408] sm:$0xff]
    %v2194 = vld [vmem:[%s2063 + $0x410] sm:$0xff]
    %v2195 = vld [vmem:[%s2063 + $0x418] sm:$0xff]
    %v2196 = vld [vmem:[%s2063 + $0x420] sm:$0xff]
    %v2197 = vld [vmem:[%s2063 + $0x428] sm:$0xff]
    %v2198 = vld [vmem:[%s2063 + $0x430] sm:$0xff]
    %v2199 = vld [vmem:[%s2063 + $0x438] sm:$0xff]
    %v2200 = vld [vmem:[%s2063 + $0x440] sm:$0xff]
    %v2201 = vld [vmem:[%s2063 + $0x448] sm:$0xff]
    %v2202 = vld [vmem:[%s2063 + $0x450] sm:$0xff]
    %v2203 = vld [vmem:[%s2063 + $0x458] sm:$0xff]
    %v2204 = vld [vmem:[%s2063 + $0x460] sm:$0xff]
    %v2205 = vld [vmem:[%s2063 + $0x468] sm:$0xff]
    %v2206 = vld [vmem:[%s2063 + $0x470] sm:$0xff]
    %v2207 = vld [vmem:[%s2063 + $0x478] sm:$0xff]
    %v2208 = vld [vmem:[%s2063 + $0x480] sm:$0xff]
    %v2209 = vld [vmem:[%s2063 + $0x488] sm:$0xff]
    %v2210 = vld [vmem:[%s2063 + $0x490] sm:$0xff]
    %v2211 = vld [vmem:[%s2063 + $0x498] sm:$0xff]
    %v2212 = vld [vmem:[%s2063 + $0x4a0] sm:$0xff]
    %v2213 = vld [vmem:[%s2063 + $0x4a8] sm:$0xff]
    %v2214 = vld [vmem:[%s2063 + $0x4b0] sm:$0xff]
    %v2215 = vld [vmem:[%s2063 + $0x4b8] sm:$0xff]
    %v2216 = vld [vmem:[%s2063 + $0x4c0] sm:$0xff]
    %v2217 = vld [vmem:[%s2063 + $0x4c8] sm:$0xff]
    %v2218 = vld [vmem:[%s2063 + $0x4d0] sm:$0xff]
    %v2219 = vld [vmem:[%s2063 + $0x4d8] sm:$0xff]
    %v2220 = vld [vmem:[%s2063 + $0x4e0] sm:$0xff]
    %v2221 = vld [vmem:[%s2063 + $0x4e8] sm:$0xff]
    %v2222 = vld [vmem:[%s2063 + $0x4f0] sm:$0xff]
    %v2223 = vld [vmem:[%s2063 + $0x4f8] sm:$0xff]
    %v2224 = vld [vmem:[%s2063 + $0x500] sm:$0xff]
    %v2225 = vld [vmem:[%s2063 + $0x508] sm:$0xff]
    %v2226 = vld [vmem:[%s2063 + $0x510] sm:$0xff]
    %v2227 = vld [vmem:[%s2063 + $0x518] sm:$0xff]
    %v2228 = vld [vmem:[%s2063 + $0x520] sm:$0xff]
    %v2229 = vld [vmem:[%s2063 + $0x528] sm:$0xff]
    %v2230 = vld [vmem:[%s2063 + $0x530] sm:$0xff]
    %v2231 = vld [vmem:[%s2063 + $0x538] sm:$0xff]
    %v2232 = vld [vmem:[%s2063 + $0x540] sm:$0xff]
    %v2233 = vld [vmem:[%s2063 + $0x548] sm:$0xff]
    %v2234 = vld [vmem:[%s2063 + $0x550] sm:$0xff]
    %v2235 = vld [vmem:[%s2063 + $0x558] sm:$0xff]
    %v2236 = vld [vmem:[%s2063 + $0x560] sm:$0xff]
    %v2237 = vld [vmem:[%s2063 + $0x568] sm:$0xff]
    %v2238 = vld [vmem:[%s2063 + $0x570] sm:$0xff]
    %v2239 = vld [vmem:[%s2063 + $0x578] sm:$0xff]
    %v2240 = vld [vmem:[%s2063 + $0x580] sm:$0xff]
    %v2241 = vld [vmem:[%s2063 + $0x588] sm:$0xff]
    %v2242 = vld [vmem:[%s2063 + $0x590] sm:$0xff]
    %v2243 = vld [vmem:[%s2063 + $0x598] sm:$0xff]
    %v2244 = vld [vmem:[%s2063 + $0x5a0] sm:$0xff]
    %v2245 = vld [vmem:[%s2063 + $0x5a8] sm:$0xff]
    %v2246 = vld [vmem:[%s2063 + $0x5b0] sm:$0xff]
    %v2247 = vld [vmem:[%s2063 + $0x5b8] sm:$0xff]
    %v2248 = vld [vmem:[%s2063 + $0x5c0] sm:$0xff]
    %v2249 = vld [vmem:[%s2063 + $0x5c8] sm:$0xff]
    %v2250 = vld [vmem:[%s2063 + $0x5d0] sm:$0xff]
    %v2251 = vld [vmem:[%s2063 + $0x5d8] sm:$0xff]
    %v2252 = vld [vmem:[%s2063 + $0x5e0] sm:$0xff]
    %v2253 = vld [vmem:[%s2063 + $0x5e8] sm:$0xff]
    %v2254 = vld [vmem:[%s2063 + $0x5f0] sm:$0xff]
    %v2255 = vld [vmem:[%s2063 + $0x5f8] sm:$0xff]
    %v2256 = vld [vmem:[%s2063 + $0x600] sm:$0xff]
    %v2257 = vld [vmem:[%s2063 + $0x608] sm:$0xff]
    %v2258 = vld [vmem:[%s2063 + $0x610] sm:$0xff]
    %v2259 = vld [vmem:[%s2063 + $0x618] sm:$0xff]
    %v2260 = vld [vmem:[%s2063 + $0x620] sm:$0xff]
    %v2261 = vld [vmem:[%s2063 + $0x628] sm:$0xff]
    %v2262 = vld [vmem:[%s2063 + $0x630] sm:$0xff]
    %v2263 = vld [vmem:[%s2063 + $0x638] sm:$0xff]
    %v2264 = vld [vmem:[%s2063 + $0x640] sm:$0xff]
    %v2265 = vld [vmem:[%s2063 + $0x648] sm:$0xff]
    %v2266 = vld [vmem:[%s2063 + $0x650] sm:$0xff]
    %v2267 = vld [vmem:[%s2063 + $0x658] sm:$0xff]
    %v2268 = vld [vmem:[%s2063 + $0x660] sm:$0xff]
    %v2269 = vld [vmem:[%s2063 + $0x668] sm:$0xff]
    %v2270 = vld [vmem:[%s2063 + $0x670] sm:$0xff]
    %v2271 = vld [vmem:[%s2063 + $0x678] sm:$0xff]
    %v2272 = vld [vmem:[%s2063 + $0x680] sm:$0xff]
    %v2273 = vld [vmem:[%s2063 + $0x688] sm:$0xff]
    %v2274 = vld [vmem:[%s2063 + $0x690] sm:$0xff]
    %v2275 = vld [vmem:[%s2063 + $0x698] sm:$0xff]
    %v2276 = vld [vmem:[%s2063 + $0x6a0] sm:$0xff]
    %v2277 = vld [vmem:[%s2063 + $0x6a8] sm:$0xff]
    %v2278 = vld [vmem:[%s2063 + $0x6b0] sm:$0xff]
    %v2279 = vld [vmem:[%s2063 + $0x6b8] sm:$0xff]
    %v2280 = vld [vmem:[%s2063 + $0x6c0] sm:$0xff]
    %v2281 = vld [vmem:[%s2063 + $0x6c8] sm:$0xff]
    %v2282 = vld [vmem:[%s2063 + $0x6d0] sm:$0xff]
    %v2283 = vld [vmem:[%s2063 + $0x6d8] sm:$0xff]
    %v2284 = vld [vmem:[%s2063 + $0x6e0] sm:$0xff]
    %v2285 = vld [vmem:[%s2063 + $0x6e8] sm:$0xff]
    %v2286 = vld [vmem:[%s2063 + $0x6f0] sm:$0xff]
    %v2287 = vld [vmem:[%s2063 + $0x6f8] sm:$0xff]
    %v2288 = vld [vmem:[%s2063 + $0x700] sm:$0xff]
    %v2289 = vld [vmem:[%s2063 + $0x708] sm:$0xff]
    %v2290 = vld [vmem:[%s2063 + $0x710] sm:$0xff]
    %v2291 = vld [vmem:[%s2063 + $0x718] sm:$0xff]
    %v2292 = vld [vmem:[%s2063 + $0x720] sm:$0xff]
    %v2293 = vld [vmem:[%s2063 + $0x728] sm:$0xff]
    %v2294 = vld [vmem:[%s2063 + $0x730] sm:$0xff]
    %v2295 = vld [vmem:[%s2063 + $0x738] sm:$0xff]
    %v2296 = vld [vmem:[%s2063 + $0x740] sm:$0xff]
    %v2297 = vld [vmem:[%s2063 + $0x748] sm:$0xff]
    %v2298 = vld [vmem:[%s2063 + $0x750] sm:$0xff]
    %v2299 = vld [vmem:[%s2063 + $0x758] sm:$0xff]
    %v2300 = vld [vmem:[%s2063 + $0x760] sm:$0xff]
    %v2301 = vld [vmem:[%s2063 + $0x768] sm:$0xff]
    %v2302 = vld [vmem:[%s2063 + $0x770] sm:$0xff]
    %v2303 = vld [vmem:[%s2063 + $0x778] sm:$0xff]
    %v2304 = vld [vmem:[%s2063 + $0x780] sm:$0xff]
    %v2305 = vld [vmem:[%s2063 + $0x788] sm:$0xff]
    %v2306 = vld [vmem:[%s2063 + $0x790] sm:$0xff]
    %v2307 = vld [vmem:[%s2063 + $0x798] sm:$0xff]
    %v2308 = vld [vmem:[%s2063 + $0x7a0] sm:$0xff]
    %v2309 = vld [vmem:[%s2063 + $0x7a8] sm:$0xff]
    %v2310 = vld [vmem:[%s2063 + $0x7b0] sm:$0xff]
    %v2311 = vld [vmem:[%s2063 + $0x7b8] sm:$0xff]
    %v2312 = vld [vmem:[%s2063 + $0x7c0] sm:$0xff]
    %v2313 = vld [vmem:[%s2063 + $0x7c8] sm:$0xff]
    %v2314 = vld [vmem:[%s2063 + $0x7d0] sm:$0xff]
    %v2315 = vld [vmem:[%s2063 + $0x7d8] sm:$0xff]
    %v2316 = vld [vmem:[%s2063 + $0x7e0] sm:$0xff]
    %v2317 = vld [vmem:[%s2063 + $0x7e8] sm:$0xff]
    %v2318 = vld [vmem:[%s2063 + $0x7f0] sm:$0xff]
    %v2319 = vld [vmem:[%s2063 + $0x7f8] sm:$0xff]
    %s2320 = scalar_lea.vmem [#allocation7], 12
    %v2321 = vld [vmem:[%s2320] sm:$0xf]
    %v2323 = vlaneseq
    %v2324 = vshrl.u32 %v2323, 7
    %v2325 = vsub.s32 0, %v2324
    %v2326 = vrot.slane %v2321, %v2325
    %v2327 = vlaneseq
    %v2328 = vshrl.u32 %v2327, 7
    %v2329 = vsub.s32 1, %v2328
    %v2330 = vrot.slane %v2321, %v2329
    %v2331 = vlaneseq
    %v2332 = vshrl.u32 %v2331, 7
    %v2333 = vsub.s32 2, %v2332
    %v2334 = vrot.slane %v2321, %v2333
    %v2335 = vlaneseq
    %v2336 = vshrl.u32 %v2335, 7
    %v2337 = vsub.s32 3, %v2336
    %v2338 = vrot.slane %v2321, %v2337
    %2343 = vmatprep.subr.mxu0 %v2065
    %2344 = vmatpush1.msra.mxu0 %v2064
    %2345 = vmatprep.subr.mxu0 %v2069
    %2346 = vmatpush1.msra.mxu0 %v2068
    %2347 = vmatprep.subr.mxu0 %v2073
    %2348 = vmatpush1.msra.mxu0 %v2072
    %2349 = vmatprep.subr.mxu0 %v2077
    %2350 = vmatpush1.msra.mxu0 %v2076
    %2351 = vmatprep.subr.mxu0 %v2081
    %2352 = vmatpush1.msra.mxu0 %v2080
    %2353 = vmatprep.subr.mxu0 %v2085
    %2354 = vmatpush1.msra.mxu0 %v2084
    %2355 = vmatprep.subr.mxu0 %v2089
    %2356 = vmatpush1.msra.mxu0 %v2088
    %2357 = vmatprep.subr.mxu0 %v2093
    %2358 = vmatpush1.msra.mxu0 %v2092
    %2359 = vmatprep.subr.mxu0 %v2097
    %2360 = vmatpush1.msra.mxu0 %v2096
    %2361 = vmatprep.subr.mxu0 %v2101
    %2362 = vmatpush1.msra.mxu0 %v2100
    %2363 = vmatprep.subr.mxu0 %v2105
    %2364 = vmatpush1.msra.mxu0 %v2104
    %2365 = vmatprep.subr.mxu0 %v2109
    %2366 = vmatpush1.msra.mxu0 %v2108
    %2367 = vmatprep.subr.mxu0 %v2113
    %2368 = vmatpush1.msra.mxu0 %v2112
    %2369 = vmatprep.subr.mxu0 %v2117
    %2370 = vmatpush1.msra.mxu0 %v2116
    %2371 = vmatprep.subr.mxu0 %v2121
    %2372 = vmatpush1.msra.mxu0 %v2120
    %2373 = vmatprep.subr.mxu0 %v2125
    %2374 = vmatpush1.msra.mxu0 %v2124
    %2375 = vmatprep.subr.mxu0 %v2129
    %2376 = vmatpush1.msra.mxu0 %v2128
    %2377 = vmatprep.subr.mxu0 %v2133
    %2378 = vmatpush1.msra.mxu0 %v2132
    %2379 = vmatprep.subr.mxu0 %v2137
    %2380 = vmatpush1.msra.mxu0 %v2136
    %2381 = vmatprep.subr.mxu0 %v2141
    %2382 = vmatpush1.msra.mxu0 %v2140
    %2383 = vmatprep.subr.mxu0 %v2145
    %2384 = vmatpush1.msra.mxu0 %v2144
    %2385 = vmatprep.subr.mxu0 %v2149
    %2386 = vmatpush1.msra.mxu0 %v2148
    %2387 = vmatprep.subr.mxu0 %v2153
    %2388 = vmatpush1.msra.mxu0 %v2152
    %2389 = vmatprep.subr.mxu0 %v2157
    %2390 = vmatpush1.msra.mxu0 %v2156
    %2391 = vmatprep.subr.mxu0 %v2161
    %2392 = vmatpush1.msra.mxu0 %v2160
    %2393 = vmatprep.subr.mxu0 %v2165
    %2394 = vmatpush1.msra.mxu0 %v2164
    %2395 = vmatprep.subr.mxu0 %v2169
    %2396 = vmatpush1.msra.mxu0 %v2168
    %2397 = vmatprep.subr.mxu0 %v2173
    %2398 = vmatpush1.msra.mxu0 %v2172
    %2399 = vmatprep.subr.mxu0 %v2177
    %2400 = vmatpush1.msra.mxu0 %v2176
    %2401 = vmatprep.subr.mxu0 %v2181
    %2402 = vmatpush1.msra.mxu0 %v2180
    %2403 = vmatprep.subr.mxu0 %v2185
    %2404 = vmatpush1.msra.mxu0 %v2184
    %2405 = vmatprep.subr.mxu0 %v2189
    %2406 = vmatpush1.msra.mxu0 %v2188
    %2407 = vmatprep.mubr.f32.mxu0 %v2060
    %2408 = vmatmul.mubr.f32.gmra.mrb[0].mxu0 %v2059
    %v2409 = vpop.f32.mrb[0].mxu0
    %v2410 = vadd.f32 %v2326, %v2409
    %v2411 = vpop.f32.mrb[0].mxu0
    %v2412 = vadd.f32 %v2330, %v2411
    %2413 = vdwg.mxu0
    %2414 = vmatprep.subr.mxu0 %v2193
    %2415 = vmatpush1.msra.mxu0 %v2192
    %2416 = vmatprep.subr.mxu0 %v2197
    %2417 = vmatpush1.msra.mxu0 %v2196
    %2418 = vmatprep.subr.mxu0 %v2201
    %2419 = vmatpush1.msra.mxu0 %v2200
    %2420 = vmatprep.subr.mxu0 %v2205
    %2421 = vmatpush1.msra.mxu0 %v2204
    %2422 = vmatprep.subr.mxu0 %v2209
    %2423 = vmatpush1.msra.mxu0 %v2208
    %2424 = vmatprep.subr.mxu0 %v2213
    %2425 = vmatpush1.msra.mxu0 %v2212
    %2426 = vmatprep.subr.mxu0 %v2217
    %2427 = vmatpush1.msra.mxu0 %v2216
    %2428 = vmatprep.subr.mxu0 %v2221
    %2429 = vmatpush1.msra.mxu0 %v2220
    %2430 = vmatprep.subr.mxu0 %v2225
    %2431 = vmatpush1.msra.mxu0 %v2224
    %2432 = vmatprep.subr.mxu0 %v2229
    %2433 = vmatpush1.msra.mxu0 %v2228
    %2434 = vmatprep.subr.mxu0 %v2233
    %2435 = vmatpush1.msra.mxu0 %v2232
    %2436 = vmatprep.subr.mxu0 %v2237
    %2437 = vmatpush1.msra.mxu0 %v2236
    %2438 = vmatprep.subr.mxu0 %v2241
    %2439 = vmatpush1.msra.mxu0 %v2240
    %2440 = vmatprep.subr.mxu0 %v2245
    %2441 = vmatpush1.msra.mxu0 %v2244
    %2442 = vmatprep.subr.mxu0 %v2249
    %2443 = vmatpush1.msra.mxu0 %v2248
    %2444 = vmatprep.subr.mxu0 %v2253
    %2445 = vmatpush1.msra.mxu0 %v2252
    %2446 = vmatprep.subr.mxu0 %v2257
    %2447 = vmatpush1.msra.mxu0 %v2256
    %2448 = vmatprep.subr.mxu0 %v2261
    %2449 = vmatpush1.msra.mxu0 %v2260
    %2450 = vmatprep.subr.mxu0 %v2265
    %2451 = vmatpush1.msra.mxu0 %v2264
    %2452 = vmatprep.subr.mxu0 %v2269
    %2453 = vmatpush1.msra.mxu0 %v2268
    %2454 = vmatprep.subr.mxu0 %v2273
    %2455 = vmatpush1.msra.mxu0 %v2272
    %2456 = vmatprep.subr.mxu0 %v2277
    %2457 = vmatpush1.msra.mxu0 %v2276
    %2458 = vmatprep.subr.mxu0 %v2281
    %2459 = vmatpush1.msra.mxu0 %v2280
    %2460 = vmatprep.subr.mxu0 %v2285
    %2461 = vmatpush1.msra.mxu0 %v2284
    %2462 = vmatprep.subr.mxu0 %v2289
    %2463 = vmatpush1.msra.mxu0 %v2288
    %2464 = vmatprep.subr.mxu0 %v2293
    %2465 = vmatpush1.msra.mxu0 %v2292
    %2466 = vmatprep.subr.mxu0 %v2297
    %2467 = vmatpush1.msra.mxu0 %v2296
    %2468 = vmatprep.subr.mxu0 %v2301
    %2469 = vmatpush1.msra.mxu0 %v2300
    %2470 = vmatprep.subr.mxu0 %v2305
    %2471 = vmatpush1.msra.mxu0 %v2304
    %2472 = vmatprep.subr.mxu0 %v2309
    %2473 = vmatpush1.msra.mxu0 %v2308
    %2474 = vmatprep.subr.mxu0 %v2313
    %2475 = vmatpush1.msra.mxu0 %v2312
    %2476 = vmatprep.subr.mxu0 %v2317
    %2477 = vmatpush1.msra.mxu0 %v2316
    %2478 = vmatprep.mubr.f32.mxu0 %v2062
    %2479 = vmatmul.mubr.f32.gmra.mrb[0].mxu0 %v2061
    %v2480 = vpop.f32.mrb[0].mxu0
    %v2481 = vadd.f32 %v2410, %v2480
    %v2482 = vpop.f32.mrb[0].mxu0
    %v2483 = vadd.f32 %v2412, %v2482
    %2484 = vdwg.mxu0
    %2485 = vmatprep.subr.mxu0 %v2067
    %2486 = vmatpush1.msra.mxu0 %v2066
    %2487 = vmatprep.subr.mxu0 %v2071
    %2488 = vmatpush1.msra.mxu0 %v2070
    %2489 = vmatprep.subr.mxu0 %v2075
    %2490 = vmatpush1.msra.mxu0 %v2074
    %2491 = vmatprep.subr.mxu0 %v2079
    %2492 = vmatpush1.msra.mxu0 %v2078
    %2493 = vmatprep.subr.mxu0 %v2083
    %2494 = vmatpush1.msra.mxu0 %v2082
    %2495 = vmatprep.subr.mxu0 %v2087
    %2496 = vmatpush1.msra.mxu0 %v2086
    %2497 = vmatprep.subr.mxu0 %v2091
    %2498 = vmatpush1.msra.mxu0 %v2090
    %2499 = vmatprep.subr.mxu0 %v2095
    %2500 = vmatpush1.msra.mxu0 %v2094
    %2501 = vmatprep.subr.mxu0 %v2099
    %2502 = vmatpush1.msra.mxu0 %v2098
    %2503 = vmatprep.subr.mxu0 %v2103
    %2504 = vmatpush1.msra.mxu0 %v2102
    %2505 = vmatprep.subr.mxu0 %v2107
    %2506 = vmatpush1.msra.mxu0 %v2106
    %2507 = vmatprep.subr.mxu0 %v2111
    %2508 = vmatpush1.msra.mxu0 %v2110
    %2509 = vmatprep.subr.mxu0 %v2115
    %2510 = vmatpush1.msra.mxu0 %v2114
    %2511 = vmatprep.subr.mxu0 %v2119
    %2512 = vmatpush1.msra.mxu0 %v2118
    %2513 = vmatprep.subr.mxu0 %v2123
    %2514 = vmatpush1.msra.mxu0 %v2122
    %2515 = vmatprep.subr.mxu0 %v2127
    %2516 = vmatpush1.msra.mxu0 %v2126
    %2517 = vmatprep.subr.mxu0 %v2131
    %2518 = vmatpush1.msra.mxu0 %v2130
    %2519 = vmatprep.subr.mxu0 %v2135
    %2520 = vmatpush1.msra.mxu0 %v2134
    %2521 = vmatprep.subr.mxu0 %v2139
    %2522 = vmatpush1.msra.mxu0 %v2138
    %2523 = vmatprep.subr.mxu0 %v2143
    %2524 = vmatpush1.msra.mxu0 %v2142
    %2525 = vmatprep.subr.mxu0 %v2147
    %2526 = vmatpush1.msra.mxu0 %v2146
    %2527 = vmatprep.subr.mxu0 %v2151
    %2528 = vmatpush1.msra.mxu0 %v2150
    %2529 = vmatprep.subr.mxu0 %v2155
    %2530 = vmatpush1.msra.mxu0 %v2154
    %2531 = vmatprep.subr.mxu0 %v2159
    %2532 = vmatpush1.msra.mxu0 %v2158
    %2533 = vmatprep.subr.mxu0 %v2163
    %2534 = vmatpush1.msra.mxu0 %v2162
    %2535 = vmatprep.subr.mxu0 %v2167
    %2536 = vmatpush1.msra.mxu0 %v2166
    %2537 = vmatprep.subr.mxu0 %v2171
    %2538 = vmatpush1.msra.mxu0 %v2170
    %2539 = vmatprep.subr.mxu0 %v2175
    %2540 = vmatpush1.msra.mxu0 %v2174
    %2541 = vmatprep.subr.mxu0 %v2179
    %2542 = vmatpush1.msra.mxu0 %v2178
    %2543 = vmatprep.subr.mxu0 %v2183
    %2544 = vmatpush1.msra.mxu0 %v2182
    %2545 = vmatprep.subr.mxu0 %v2187
    %2546 = vmatpush1.msra.mxu0 %v2186
    %2547 = vmatprep.subr.mxu0 %v2191
    %2548 = vmatpush1.msra.mxu0 %v2190
    %2549 = vmatprep.mubr.f32.mxu0 %v2060
    %2550 = vmatmul.mubr.f32.gmra.mrb[0].mxu0 %v2059
    %v2551 = vpop.f32.mrb[0].mxu0
    %v2552 = vadd.f32 %v2334, %v2551
    %v2553 = vpop.f32.mrb[0].mxu0
    %v2554 = vadd.f32 %v2338, %v2553
    %2555 = vdwg.mxu0
    %2556 = vmatprep.subr.mxu0 %v2195
    %2557 = vmatpush1.msra.mxu0 %v2194
    %2558 = vmatprep.subr.mxu0 %v2199
    %2559 = vmatpush1.msra.mxu0 %v2198
    %2560 = vmatprep.subr.mxu0 %v2203
    %2561 = vmatpush1.msra.mxu0 %v2202
    %2562 = vmatprep.subr.mxu0 %v2207
    %2563 = vmatpush1.msra.mxu0 %v2206
    %2564 = vmatprep.subr.mxu0 %v2211
    %2565 = vmatpush1.msra.mxu0 %v2210
    %2566 = vmatprep.subr.mxu0 %v2215
    %2567 = vmatpush1.msra.mxu0 %v2214
    %2568 = vmatprep.subr.mxu0 %v2219
    %2569 = vmatpush1.msra.mxu0 %v2218
    %2570 = vmatprep.subr.mxu0 %v2223
    %2571 = vmatpush1.msra.mxu0 %v2222
    %2572 = vmatprep.subr.mxu0 %v2227
    %2573 = vmatpush1.msra.mxu0 %v2226
    %2574 = vmatprep.subr.mxu0 %v2231
    %2575 = vmatpush1.msra.mxu0 %v2230
    %2576 = vmatprep.subr.mxu0 %v2235
    %2577 = vmatpush1.msra.mxu0 %v2234
    %2578 = vmatprep.subr.mxu0 %v2239
    %2579 = vmatpush1.msra.mxu0 %v2238
    %2580 = vmatprep.subr.mxu0 %v2243
    %2581 = vmatpush1.msra.mxu0 %v2242
    %2582 = vmatprep.subr.mxu0 %v2247
    %2583 = vmatpush1.msra.mxu0 %v2246
    %2584 = vmatprep.subr.mxu0 %v2251
    %2585 = vmatpush1.msra.mxu0 %v2250
    %2586 = vmatprep.subr.mxu0 %v2255
    %2587 = vmatpush1.msra.mxu0 %v2254
    %2588 = vmatprep.subr.mxu0 %v2259
    %2589 = vmatpush1.msra.mxu0 %v2258
    %2590 = vmatprep.subr.mxu0 %v2263
    %2591 = vmatpush1.msra.mxu0 %v2262
    %2592 = vmatprep.subr.mxu0 %v2267
    %2593 = vmatpush1.msra.mxu0 %v2266
    %2594 = vmatprep.subr.mxu0 %v2271
    %2595 = vmatpush1.msra.mxu0 %v2270
    %2596 = vmatprep.subr.mxu0 %v2275
    %2597 = vmatpush1.msra.mxu0 %v2274
    %2598 = vmatprep.subr.mxu0 %v2279
    %2599 = vmatpush1.msra.mxu0 %v2278
    %2600 = vmatprep.subr.mxu0 %v2283
    %2601 = vmatpush1.msra.mxu0 %v2282
    %2602 = vmatprep.subr.mxu0 %v2287
    %2603 = vmatpush1.msra.mxu0 %v2286
    %2604 = vmatprep.subr.mxu0 %v2291
    %2605 = vmatpush1.msra.mxu0 %v2290
    %2606 = vmatprep.subr.mxu0 %v2295
    %2607 = vmatpush1.msra.mxu0 %v2294
    %2608 = vmatprep.subr.mxu0 %v2299
    %2609 = vmatpush1.msra.mxu0 %v2298
    %2610 = vmatprep.subr.mxu0 %v2303
    %2611 = vmatpush1.msra.mxu0 %v2302
    %2612 = vmatprep.subr.mxu0 %v2307
    %2613 = vmatpush1.msra.mxu0 %v2306
    %2614 = vmatprep.subr.mxu0 %v2311
    %2615 = vmatpush1.msra.mxu0 %v2310
    %2616 = vmatprep.subr.mxu0 %v2315
    %2617 = vmatpush1.msra.mxu0 %v2314
    %2618 = vmatprep.subr.mxu0 %v2319
    %2619 = vmatpush1.msra.mxu0 %v2318
    %2620 = vmatprep.mubr.f32.mxu0 %v2062
    %2621 = vmatmul.mubr.f32.gmra.mrb[0].mxu0 %v2061
    %v2622 = vpop.f32.mrb[0].mxu0
    %v2623 = vadd.f32 %v2552, %v2622
    %v2624 = vpop.f32.mrb[0].mxu0
    %v2625 = vadd.f32 %v2554, %v2624
    %2626 = vdwg.mxu0
    %v2627 = vmax.f32 %v2481, 0.0
    %v2628 = vmax.f32 %v2483, 0.0
    %v2629 = vmax.f32 %v2623, 0.0
    %v2630 = vmax.f32 %v2625, 0.0
    %v2631 = vadd.f32 %v2627, %v353
    %v2632 = vadd.f32 %v2628, %v354
    %v2633 = vadd.f32 %v2629, %v355
    %v2634 = vadd.f32 %v2630, %v356
    %v2635 = vld [vmem:[%s5] sm:$0xff]
    %v2636 = vld [vmem:[%s5 + $0x8] sm:$0xff]
    %v2637 = vld [vmem:[%s5 + $0x10] sm:$0xff]
    %v2638 = vld [vmem:[%s5 + $0x18] sm:$0xff]
    %v2639 = vld [vmem:[%s5 + $0x20] sm:$0xff]
    %v2640 = vld [vmem:[%s5 + $0x28] sm:$0xff]
    %v2641 = vld [vmem:[%s5 + $0x30] sm:$0xff]
    %v2642 = vld [vmem:[%s5 + $0x38] sm:$0xff]
    %v2643 = vld [vmem:[%s5 + $0x40] sm:$0xff]
    %v2644 = vld [vmem:[%s5 + $0x48] sm:$0xff]
    %v2645 = vld [vmem:[%s5 + $0x50] sm:$0xff]
    %v2646 = vld [vmem:[%s5 + $0x58] sm:$0xff]
    %v2647 = vld [vmem:[%s5 + $0x60] sm:$0xff]
    %v2648 = vld [vmem:[%s5 + $0x68] sm:$0xff]
    %v2649 = vld [vmem:[%s5 + $0x70] sm:$0xff]
    %v2650 = vld [vmem:[%s5 + $0x78] sm:$0xff]
    %v2651 = vld [vmem:[%s5 + $0x80] sm:$0xff]
    %v2652 = vld [vmem:[%s5 + $0x88] sm:$0xff]
    %v2653 = vld [vmem:[%s5 + $0x90] sm:$0xff]
    %v2654 = vld [vmem:[%s5 + $0x98] sm:$0xff]
    %v2655 = vld [vmem:[%s5 + $0xa0] sm:$0xff]
    %v2656 = vld [vmem:[%s5 + $0xa8] sm:$0xff]
    %v2657 = vld [vmem:[%s5 + $0xb0] sm:$0xff]
    %v2658 = vld [vmem:[%s5 + $0xb8] sm:$0xff]
    %v2659 = vld [vmem:[%s5 + $0xc0] sm:$0xff]
    %v2660 = vld [vmem:[%s5 + $0xc8] sm:$0xff]
    %v2661 = vld [vmem:[%s5 + $0xd0] sm:$0xff]
    %v2662 = vld [vmem:[%s5 + $0xd8] sm:$0xff]
    %v2663 = vld [vmem:[%s5 + $0xe0] sm:$0xff]
    %v2664 = vld [vmem:[%s5 + $0xe8] sm:$0xff]
    %v2665 = vld [vmem:[%s5 + $0xf0] sm:$0xff]
    %v2666 = vld [vmem:[%s5 + $0xf8] sm:$0xff]
    %v2667 = vld [vmem:[%s5 + $0x100] sm:$0xff]
    %v2668 = vld [vmem:[%s5 + $0x108] sm:$0xff]
    %v2669 = vld [vmem:[%s5 + $0x110] sm:$0xff]
    %v2670 = vld [vmem:[%s5 + $0x118] sm:$0xff]
    %v2671 = vld [vmem:[%s5 + $0x120] sm:$0xff]
    %v2672 = vld [vmem:[%s5 + $0x128] sm:$0xff]
    %v2673 = vld [vmem:[%s5 + $0x130] sm:$0xff]
    %v2674 = vld [vmem:[%s5 + $0x138] sm:$0xff]
    %v2675 = vld [vmem:[%s5 + $0x140] sm:$0xff]
    %v2676 = vld [vmem:[%s5 + $0x148] sm:$0xff]
    %v2677 = vld [vmem:[%s5 + $0x150] sm:$0xff]
    %v2678 = vld [vmem:[%s5 + $0x158] sm:$0xff]
    %v2679 = vld [vmem:[%s5 + $0x160] sm:$0xff]
    %v2680 = vld [vmem:[%s5 + $0x168] sm:$0xff]
    %v2681 = vld [vmem:[%s5 + $0x170] sm:$0xff]
    %v2682 = vld [vmem:[%s5 + $0x178] sm:$0xff]
    %v2683 = vld [vmem:[%s5 + $0x180] sm:$0xff]
    %v2684 = vld [vmem:[%s5 + $0x188] sm:$0xff]
    %v2685 = vld [vmem:[%s5 + $0x190] sm:$0xff]
    %v2686 = vld [vmem:[%s5 + $0x198] sm:$0xff]
    %v2687 = vld [vmem:[%s5 + $0x1a0] sm:$0xff]
    %v2688 = vld [vmem:[%s5 + $0x1a8] sm:$0xff]
    %v2689 = vld [vmem:[%s5 + $0x1b0] sm:$0xff]
    %v2690 = vld [vmem:[%s5 + $0x1b8] sm:$0xff]
    %v2691 = vld [vmem:[%s5 + $0x1c0] sm:$0xff]
    %v2692 = vld [vmem:[%s5 + $0x1c8] sm:$0xff]
    %v2693 = vld [vmem:[%s5 + $0x1d0] sm:$0xff]
    %v2694 = vld [vmem:[%s5 + $0x1d8] sm:$0xff]
    %v2695 = vld [vmem:[%s5 + $0x1e0] sm:$0xff]
    %v2696 = vld [vmem:[%s5 + $0x1e8] sm:$0xff]
    %v2697 = vld [vmem:[%s5 + $0x1f0] sm:$0xff]
    %v2698 = vld [vmem:[%s5 + $0x1f8] sm:$0xff]
    %v2699 = vld [vmem:[#allocation9] sm:$0x1]
    %v2701 = vlaneseq
    %v2702 = vshrl.u32 %v2701, 7
    %v2703 = vsub.s32 0, %v2702
    %v2704 = vrot.slane %v2699, %v2703
    %2706 = vmatprep.subr.mxu0 0.0
    %2707 = vmatpush1.msra.mxu0 %v2635
    %2708 = vmatprep.subr.mxu0 0.0
    %2709 = vmatpush1.msra.mxu0 %v2636
    %2710 = vmatprep.subr.mxu0 0.0
    %2711 = vmatpush1.msra.mxu0 %v2637
    %2712 = vmatprep.subr.mxu0 0.0
    %2713 = vmatpush1.msra.mxu0 %v2638
    %2714 = vmatprep.subr.mxu0 0.0
    %2715 = vmatpush1.msra.mxu0 %v2639
    %2716 = vmatprep.subr.mxu0 0.0
    %2717 = vmatpush1.msra.mxu0 %v2640
    %2718 = vmatprep.subr.mxu0 0.0
    %2719 = vmatpush1.msra.mxu0 %v2641
    %2720 = vmatprep.subr.mxu0 0.0
    %2721 = vmatpush1.msra.mxu0 %v2642
    %2722 = vmatprep.subr.mxu0 0.0
    %2723 = vmatpush1.msra.mxu0 %v2643
    %2724 = vmatprep.subr.mxu0 0.0
    %2725 = vmatpush1.msra.mxu0 %v2644
    %2726 = vmatprep.subr.mxu0 0.0
    %2727 = vmatpush1.msra.mxu0 %v2645
    %2728 = vmatprep.subr.mxu0 0.0
    %2729 = vmatpush1.msra.mxu0 %v2646
    %2730 = vmatprep.subr.mxu0 0.0
    %2731 = vmatpush1.msra.mxu0 %v2647
    %2732 = vmatprep.subr.mxu0 0.0
    %2733 = vmatpush1.msra.mxu0 %v2648
    %2734 = vmatprep.subr.mxu0 0.0
    %2735 = vmatpush1.msra.mxu0 %v2649
    %2736 = vmatprep.subr.mxu0 0.0
    %2737 = vmatpush1.msra.mxu0 %v2650
    %2738 = vmatprep.subr.mxu0 0.0
    %2739 = vmatpush1.msra.mxu0 %v2651
    %2740 = vmatprep.subr.mxu0 0.0
    %2741 = vmatpush1.msra.mxu0 %v2652
    %2742 = vmatprep.subr.mxu0 0.0
    %2743 = vmatpush1.msra.mxu0 %v2653
    %2744 = vmatprep.subr.mxu0 0.0
    %2745 = vmatpush1.msra.mxu0 %v2654
    %2746 = vmatprep.subr.mxu0 0.0
    %2747 = vmatpush1.msra.mxu0 %v2655
    %2748 = vmatprep.subr.mxu0 0.0
    %2749 = vmatpush1.msra.mxu0 %v2656
    %2750 = vmatprep.subr.mxu0 0.0
    %2751 = vmatpush1.msra.mxu0 %v2657
    %2752 = vmatprep.subr.mxu0 0.0
    %2753 = vmatpush1.msra.mxu0 %v2658
    %2754 = vmatprep.subr.mxu0 0.0
    %2755 = vmatpush1.msra.mxu0 %v2659
    %2756 = vmatprep.subr.mxu0 0.0
    %2757 = vmatpush1.msra.mxu0 %v2660
    %2758 = vmatprep.subr.mxu0 0.0
    %2759 = vmatpush1.msra.mxu0 %v2661
    %2760 = vmatprep.subr.mxu0 0.0
    %2761 = vmatpush1.msra.mxu0 %v2662
    %2762 = vmatprep.subr.mxu0 0.0
    %2763 = vmatpush1.msra.mxu0 %v2663
    %2764 = vmatprep.subr.mxu0 0.0
    %2765 = vmatpush1.msra.mxu0 %v2664
    %2766 = vmatprep.subr.mxu0 0.0
    %2767 = vmatpush1.msra.mxu0 %v2665
    %2768 = vmatprep.subr.mxu0 0.0
    %2769 = vmatpush1.msra.mxu0 %v2666
    %2770 = vmatprep.mubr.f32.mxu0 %v2632
    %2771 = vmatmul.mubr.f32.gmra.mrb[0].mxu0 %v2631
    %v2772 = vpop.f32.mrb[0].mxu0
    %v2773 = vadd.f32 %v2704, %v2772
    %v2774 = vpop.f32.mrb[0].mxu0
    %2775 = vdwg.mxu0
    %2776 = vmatprep.subr.mxu0 0.0
    %2777 = vmatpush1.msra.mxu0 %v2667
    %2778 = vmatprep.subr.mxu0 0.0
    %2779 = vmatpush1.msra.mxu0 %v2668
    %2780 = vmatprep.subr.mxu0 0.0
    %2781 = vmatpush1.msra.mxu0 %v2669
    %2782 = vmatprep.subr.mxu0 0.0
    %2783 = vmatpush1.msra.mxu0 %v2670
    %2784 = vmatprep.subr.mxu0 0.0
    %2785 = vmatpush1.msra.mxu0 %v2671
    %2786 = vmatprep.subr.mxu0 0.0
    %2787 = vmatpush1.msra.mxu0 %v2672
    %2788 = vmatprep.subr.mxu0 0.0
    %2789 = vmatpush1.msra.mxu0 %v2673
    %2790 = vmatprep.subr.mxu0 0.0
    %2791 = vmatpush1.msra.mxu0 %v2674
    %2792 = vmatprep.subr.mxu0 0.0
    %2793 = vmatpush1.msra.mxu0 %v2675
    %2794 = vmatprep.subr.mxu0 0.0
    %2795 = vmatpush1.msra.mxu0 %v2676
    %2796 = vmatprep.subr.mxu0 0.0
    %2797 = vmatpush1.msra.mxu0 %v2677
    %2798 = vmatprep.subr.mxu0 0.0
    %2799 = vmatpush1.msra.mxu0 %v2678
    %2800 = vmatprep.subr.mxu0 0.0
    %2801 = vmatpush1.msra.mxu0 %v2679
    %2802 = vmatprep.subr.mxu0 0.0
    %2803 = vmatpush1.msra.mxu0 %v2680
    %2804 = vmatprep.subr.mxu0 0.0
    %2805 = vmatpush1.msra.mxu0 %v2681
    %2806 = vmatprep.subr.mxu0 0.0
    %2807 = vmatpush1.msra.mxu0 %v2682
    %2808 = vmatprep.subr.mxu0 0.0
    %2809 = vmatpush1.msra.mxu0 %v2683
    %2810 = vmatprep.subr.mxu0 0.0
    %2811 = vmatpush1.msra.mxu0 %v2684
    %2812 = vmatprep.subr.mxu0 0.0
    %2813 = vmatpush1.msra.mxu0 %v2685
    %2814 = vmatprep.subr.mxu0 0.0
    %2815 = vmatpush1.msra.mxu0 %v2686
    %2816 = vmatprep.subr.mxu0 0.0
    %2817 = vmatpush1.msra.mxu0 %v2687
    %2818 = vmatprep.subr.mxu0 0.0
    %2819 = vmatpush1.msra.mxu0 %v2688
    %2820 = vmatprep.subr.mxu0 0.0
    %2821 = vmatpush1.msra.mxu0 %v2689
    %2822 = vmatprep.subr.mxu0 0.0
    %2823 = vmatpush1.msra.mxu0 %v2690
    %2824 = vmatprep.subr.mxu0 0.0
    %2825 = vmatpush1.msra.mxu0 %v2691
    %2826 = vmatprep.subr.mxu0 0.0
    %2827 = vmatpush1.msra.mxu0 %v2692
    %2828 = vmatprep.subr.mxu0 0.0
    %2829 = vmatpush1.msra.mxu0 %v2693
    %2830 = vmatprep.subr.mxu0 0.0
    %2831 = vmatpush1.msra.mxu0 %v2694
    %2832 = vmatprep.subr.mxu0 0.0
    %2833 = vmatpush1.msra.mxu0 %v2695
    %2834 = vmatprep.subr.mxu0 0.0
    %2835 = vmatpush1.msra.mxu0 %v2696
    %2836 = vmatprep.subr.mxu0 0.0
    %2837 = vmatpush1.msra.mxu0 %v2697
    %2838 = vmatprep.subr.mxu0 0.0
    %2839 = vmatpush1.msra.mxu0 %v2698
    %2840 = vmatprep.mubr.f32.mxu0 %v2634
    %2841 = vmatmul.mubr.f32.gmra.mrb[0].mxu0 %v2633
    %v2842 = vpop.f32.mrb[0].mxu0
    %v2843 = vadd.f32 %v2773, %v2842
    %v2844 = vpop.f32.mrb[0].mxu0
    %2845 = vdwg.mxu0
    %v2846 = vmax.f32 %v2843, 0.0
    %v2847 = vld [vmem:[#allocation10] sm:$0xff]
    %v2848 = vld [vmem:[#allocation10 + $0x8] sm:$0xff]
    %v2849 = vld [vmem:[#allocation10 + $0x10] sm:$0xff]
    %v2850 = vld [vmem:[#allocation10 + $0x18] sm:$0xff]
    %v2851 = vld [vmem:[#allocation12] sm:$0x1]
    %v2853 = vlaneseq
    %v2854 = vshrl.u32 %v2853, 7
    %v2855 = vsub.s32 0, %v2854
    %v2856 = vrot.slane %v2851, %v2855
    %vm2858 = vcmask 261120
    %v2860 = vsel %vm2858, %v2846, 0
    %2862 = vmatprep.subr.mxu0 0.0
    %2863 = vmatpush1.msra.mxu0 %v2847
    %2864 = vmatprep.subr.mxu0 0.0
    %2865 = vmatpush1.msra.mxu0 %v2848
    %2866 = vmatprep.subr.mxu0 0.0
    %2867 = vmatpush1.msra.mxu0 %v2849
    %2868 = vmatprep.subr.mxu0 0.0
    %2869 = vmatpush1.msra.mxu0 %v2850
    %2870 = vmatprep.subr.mxu0 0.0
    %2871 = vmatpush1.msra.mxu0 0.0
    %2872 = vmatprep.subr.mxu0 0.0
    %2873 = vmatpush1.msra.mxu0 0.0
    %2874 = vmatprep.subr.mxu0 0.0
    %2875 = vmatpush1.msra.mxu0 0.0
    %2876 = vmatprep.subr.mxu0 0.0
    %2877 = vmatpush1.msra.mxu0 0.0
    %2878 = vmatprep.subr.mxu0 0.0
    %2879 = vmatpush1.msra.mxu0 0.0
    %2880 = vmatprep.subr.mxu0 0.0
    %2881 = vmatpush1.msra.mxu0 0.0
    %2882 = vmatprep.subr.mxu0 0.0
    %2883 = vmatpush1.msra.mxu0 0.0
    %2884 = vmatprep.subr.mxu0 0.0
    %2885 = vmatpush1.msra.mxu0 0.0
    %2886 = vmatprep.subr.mxu0 0.0
    %2887 = vmatpush1.msra.mxu0 0.0
    %2888 = vmatprep.subr.mxu0 0.0
    %2889 = vmatpush1.msra.mxu0 0.0
    %2890 = vmatprep.subr.mxu0 0.0
    %2891 = vmatpush1.msra.mxu0 0.0
    %2892 = vmatprep.subr.mxu0 0.0
    %2893 = vmatpush1.msra.mxu0 0.0
    %2894 = vmatprep.subr.mxu0 0.0
    %2895 = vmatpush1.msra.mxu0 0.0
    %2896 = vmatprep.subr.mxu0 0.0
    %2897 = vmatpush1.msra.mxu0 0.0
    %2898 = vmatprep.subr.mxu0 0.0
    %2899 = vmatpush1.msra.mxu0 0.0
    %2900 = vmatprep.subr.mxu0 0.0
    %2901 = vmatpush1.msra.mxu0 0.0
    %2902 = vmatprep.subr.mxu0 0.0
    %2903 = vmatpush1.msra.mxu0 0.0
    %2904 = vmatprep.subr.mxu0 0.0
    %2905 = vmatpush1.msra.mxu0 0.0
    %2906 = vmatprep.subr.mxu0 0.0
    %2907 = vmatpush1.msra.mxu0 0.0
    %2908 = vmatprep.subr.mxu0 0.0
    %2909 = vmatpush1.msra.mxu0 0.0
    %2910 = vmatprep.subr.mxu0 0.0
    %2911 = vmatpush1.msra.mxu0 0.0
    %2912 = vmatprep.subr.mxu0 0.0
    %2913 = vmatpush1.msra.mxu0 0.0
    %2914 = vmatprep.subr.mxu0 0.0
    %2915 = vmatpush1.msra.mxu0 0.0
    %2916 = vmatprep.subr.mxu0 0.0
    %2917 = vmatpush1.msra.mxu0 0.0
    %2918 = vmatprep.subr.mxu0 0.0
    %2919 = vmatpush1.msra.mxu0 0.0
    %2920 = vmatprep.subr.mxu0 0.0
    %2921 = vmatpush1.msra.mxu0 0.0
    %2922 = vmatprep.subr.mxu0 0.0
    %2923 = vmatpush1.msra.mxu0 0.0
    %2924 = vmatprep.subr.mxu0 0.0
    %2925 = vmatpush1.msra.mxu0 0.0
    %2926 = vmatprep.mubr.f32.mxu0 0.0
    %2927 = vmatmul.mubr.f32.gmra.mrb[0].mxu0 %v2860
    %v2928 = vpop.f32.mrb[0].mxu0
    %v2929 = vadd.f32 %v2856, %v2928
    %v2930 = vpop.f32.mrb[0].mxu0
    %2931 = vdwg.mxu0
    %v2932 = vmax.f32 %v2929, 0.0
    %v2933 = vld [vmem:[#allocation13] sm:$0xff]
    %v2934 = vld [vmem:[#allocation13 + $0x8] sm:$0xff]
    %v2935 = vld [vmem:[#allocation13 + $0x10] sm:$0xff]
    %v2936 = vld [vmem:[#allocation13 + $0x18] sm:$0xff]
    %v2937 = vld [vmem:[#allocation15] sm:$0x1]
    %v2939 = vlaneseq
    %v2940 = vshrl.u32 %v2939, 7
    %v2941 = vsub.s32 0, %v2940
    %v2942 = vrot.slane %v2937, %v2941
    %v2945 = vsel %vm2858, %v2932, 0
    %2947 = vmatprep.subr.mxu0 0.0
    %2948 = vmatpush1.msra.mxu0 %v2933
    %2949 = vmatprep.subr.mxu0 0.0
    %2950 = vmatpush1.msra.mxu0 %v2934
    %2951 = vmatprep.subr.mxu0 0.0
    %2952 = vmatpush1.msra.mxu0 %v2935
    %2953 = vmatprep.subr.mxu0 0.0
    %2954 = vmatpush1.msra.mxu0 %v2936
    %2955 = vmatprep.subr.mxu0 0.0
    %2956 = vmatpush1.msra.mxu0 0.0
    %2957 = vmatprep.subr.mxu0 0.0
    %2958 = vmatpush1.msra.mxu0 0.0
    %2959 = vmatprep.subr.mxu0 0.0
    %2960 = vmatpush1.msra.mxu0 0.0
    %2961 = vmatprep.subr.mxu0 0.0
    %2962 = vmatpush1.msra.mxu0 0.0
    %2963 = vmatprep.subr.mxu0 0.0
    %2964 = vmatpush1.msra.mxu0 0.0
    %2965 = vmatprep.subr.mxu0 0.0
    %2966 = vmatpush1.msra.mxu0 0.0
    %2967 = vmatprep.subr.mxu0 0.0
    %2968 = vmatpush1.msra.mxu0 0.0
    %2969 = vmatprep.subr.mxu0 0.0
    %2970 = vmatpush1.msra.mxu0 0.0
    %2971 = vmatprep.subr.mxu0 0.0
    %2972 = vmatpush1.msra.mxu0 0.0
    %2973 = vmatprep.subr.mxu0 0.0
    %2974 = vmatpush1.msra.mxu0 0.0
    %2975 = vmatprep.subr.mxu0 0.0
    %2976 = vmatpush1.msra.mxu0 0.0
    %2977 = vmatprep.subr.mxu0 0.0
    %2978 = vmatpush1.msra.mxu0 0.0
    %2979 = vmatprep.subr.mxu0 0.0
    %2980 = vmatpush1.msra.mxu0 0.0
    %2981 = vmatprep.subr.mxu0 0.0
    %2982 = vmatpush1.msra.mxu0 0.0
    %2983 = vmatprep.subr.mxu0 0.0
    %2984 = vmatpush1.msra.mxu0 0.0
    %2985 = vmatprep.subr.mxu0 0.0
    %2986 = vmatpush1.msra.mxu0 0.0
    %2987 = vmatprep.subr.mxu0 0.0
    %2988 = vmatpush1.msra.mxu0 0.0
    %2989 = vmatprep.subr.mxu0 0.0
    %2990 = vmatpush1.msra.mxu0 0.0
    %2991 = vmatprep.subr.mxu0 0.0
    %2992 = vmatpush1.msra.mxu0 0.0
    %2993 = vmatprep.subr.mxu0 0.0
    %2994 = vmatpush1.msra.mxu0 0.0
    %2995 = vmatprep.subr.mxu0 0.0
    %2996 = vmatpush1.msra.mxu0 0.0
    %2997 = vmatprep.subr.mxu0 0.0
    %2998 = vmatpush1.msra.mxu0 0.0
    %2999 = vmatprep.subr.mxu0 0.0
    %3000 = vmatpush1.msra.mxu0 0.0
    %3001 = vmatprep.subr.mxu0 0.0
    %3002 = vmatpush1.msra.mxu0 0.0
    %3003 = vmatprep.subr.mxu0 0.0
    %3004 = vmatpush1.msra.mxu0 0.0
    %3005 = vmatprep.subr.mxu0 0.0
    %3006 = vmatpush1.msra.mxu0 0.0
    %3007 = vmatprep.subr.mxu0 0.0
    %3008 = vmatpush1.msra.mxu0 0.0
    %3009 = vmatprep.subr.mxu0 0.0
    %3010 = vmatpush1.msra.mxu0 0.0
    %3011 = vmatprep.mubr.f32.mxu0 0.0
    %3012 = vmatmul.mubr.f32.gmra.mrb[0].mxu0 %v2945
    %v3013 = vpop.f32.mrb[0].mxu0
    %v3014 = vadd.f32 %v2942, %v3013
    %v3015 = vpop.f32.mrb[0].mxu0
    %3016 = vdwg.mxu0
    %v3017 = vsub.f32 0.0, %v3014
    %v3018 = vmul.f32 %v3017, 1.442695
    %v3019 = vpow.pop %v3018
    %v3020 = vadd.f32 %v3019, 1.0
    %v3021 = vrcp.pop %v3020
    %3022 = vst [vmem:[%s11] sm:$0xff] %v3021
    // Predicated region
    $region82: #{model_pallas.1} parent=1 // pred_check
      _
    $region83: #{model_pallas.1} parent=1 // pred_check_branch
      %3024 = sbr.rel (0) target = $region85
    $region84: #{model_pallas.1} parent=1 // pred_region
      _
    $region85: #{model_pallas.1} parent=1 // pred_fallthru
      _
    // Predicated region
    $region86: #{model_pallas.1} parent=1 // pred_check
      _
    $region87: #{model_pallas.1} parent=1 // pred_check_branch
      %3026 = sbr.rel (0) target = $region89
    $region88: #{model_pallas.1} parent=1 // pred_region
      _
    $region89: #{model_pallas.1} parent=1 // pred_fallthru
      _
    %3027 = vsyncpa [#allocation3], 1
    %3028 = vsyncpa [#allocation5], 1
    %3029 = vsyncpa [#allocation8], 1
    %3030 = vsyncpa [#allocation11], 1
    %3031 = vsyncpa [#allocation14], 1

</llo_original>
